<compile_context>
chip_gen: v5e
topology: v5e:2x2
jax: 0.10.0
libtpu: 0.0.40
codegen_flags: <defaults>
</compile_context>

<pallas_src>
import functools

import jax
import jax.numpy as jnp
from jax.experimental import pallas as pl
from jax.experimental.pallas import tpu as pltpu

NEG_FILL = -100000.0
_HIGHEST = jax.lax.Precision.HIGHEST


# ---------------------------------------------------------------------------
# Generation-aware tiling heuristics
# ---------------------------------------------------------------------------
def _vmem_limit_bytes():
    phys = 64 * 1024 * 1024                 # conservative default (v7x per-TC)
    try:
        info = pltpu.get_tpu_info()
        v = getattr(info, "vmem_capacity_bytes", None)
        if v:
            phys = int(v)
    except Exception:
        pass
    # v5e/v6e (128 MiB physical) -> 96 MiB scoped; v7x (64 MiB) -> 48 MiB.
    return min(phys * 3 // 4, 96 * 1024 * 1024)


def _pick_batch_tile(B):
    # Sublane-aligned 8-row batch tiles whenever that still yields >= 2 batch
    # tiles (keeps the "parallel" grid axis >= 2 for v7x megacore); otherwise
    # take the whole batch so the [Bt, D] output / [Bt, Nt] mask blocks stay
    # (8, 128)-legal.
    if B >= 16 and B % 8 == 0:
        return 8
    return B


def _pick_seq_tile(N, Bt, D, itemsize, attention, vmem_limit):
    # Bytes that scale with Nt: double-buffered feature tile + double-buffered
    # 2-D mask tile, plus (attention only) in-kernel f32 intermediates:
    # logits / p ([Bt*Nt, H] padded to 128 lanes) and p_full / p_full*f
    # ([Bt*Nt, D] f32).
    per_n = Bt * (2 * D * itemsize + 2 * itemsize)
    if attention:
        per_n += Bt * (2 * D + 2 * 128) * 4
    fixed = 2 * Bt * D * itemsize + 6 * Bt * max(D, 128) * 4 + (2 << 20)
    avail = int(vmem_limit * 0.6) - fixed
    cap = max(128, avail // per_n)
    n8 = -(-N // 8) * 8                      # sublane-aligned full sequence
    if n8 <= cap:
        return n8                            # single sequence tile
    return max(128, (cap // 128) * 128)      # lane-dense (%128) mask tile


# ---------------------------------------------------------------------------
# Kernels
# ---------------------------------------------------------------------------
def _masked_pool_kernel(f_ref, m_ref, o_ref, acc_ref, cnt_ref, *, mode):
    """Masked reduction over N, tiled: grid = (batch tiles, sequence tiles)."""
    nj = pl.program_id(1)

    @pl.when(nj == 0)
    def _init():
        acc_ref[...] = jnp.full_like(acc_ref, NEG_FILL if mode == "max" else 0.0)
        cnt_ref[...] = jnp.zeros_like(cnt_ref)

    f = f_ref[...]                    # [Bt, Nt, D]  native dtype (bf16/f32)
    m = m_ref[...]                    # [Bt, Nt]     native dtype, 1.0 / 0.0
    Bt, Nt, D = f.shape

    if mode in ("mean", "max"):
        cnt_ref[...] += jnp.sum(m.astype(jnp.float32), axis=-1, keepdims=True)

    if mode == "max":
        # One small XLU transpose puts N on the sublane axis; downstream work
        # is lane-dense VPU select + sublane max.
        mT = m.astype(jnp.float32).T                                   # [Nt, Bt]
        m_sub = jnp.concatenate([mT[:, b:b + 1] for b in range(Bt)],
                                axis=0)                                # [Bt*Nt, 1]
        filled = jnp.where(m_sub > 0, f.reshape(Bt * Nt, D), NEG_FILL)
        tile_max = jnp.max(filled.reshape(Bt, Nt, D), axis=1).astype(jnp.float32)
        acc_ref[...] = jnp.maximum(acc_ref[...], tile_max)
    else:  # 'sum' / 'mean'
        # Masked multiply+reduce over N on the (otherwise idle) MXU: the 2-D
        # mask row contracts directly against the feature tile — no mask
        # relayout, no f32 broadcast traffic on the VPU.
        parts = [jnp.dot(m[b:b + 1, :], f[b],
                         preferred_element_type=jnp.float32,
                         precision=_HIGHEST)
                 for b in range(Bt)]                                   # Bt x [1, D]
        acc_ref[...] += (jnp.concatenate(parts, axis=0) if Bt > 1 else parts[0])

    @pl.when(nj == pl.num_programs(1) - 1)
    def _finalize():
        acc = acc_ref[...]
        if mode == "max":
            out = jnp.where(cnt_ref[...] > 0, acc, 0.0)
        elif mode == "mean":
            out = acc / jnp.maximum(cnt_ref[...], 1.0)      # exact divide
        else:
            out = acc
        o_ref[...] = out.astype(o_ref.dtype)


def _attention_pool_kernel(f_ref, m_ref, wk_ref, bk_ref, e_ref, o_ref,
                           mrun_ref, lrun_ref, acc_ref, *, n_heads):
    """key_proj -> masked online softmax over N -> full-width weighted value sum."""
    nj = pl.program_id(1)
    H = n_heads

    @pl.when(nj == 0)
    def _init():
        mrun_ref[...] = jnp.full_like(mrun_ref, -1e30)
        lrun_ref[...] = jnp.zeros_like(lrun_ref)
        acc_ref[...] = jnp.zeros_like(acc_ref)

    f = f_ref[...]                    # [Bt, Nt, D]  native dtype
    m = m_ref[...]                    # [Bt, Nt]
    Bt, Nt, D = f.shape
    f2 = f.reshape(Bt * Nt, D)

    # key_proj: native-dtype operands into the MXU, f32 accumulation.
    logits = jnp.dot(f2, wk_ref[...], preferred_element_type=jnp.float32,
                     precision=_HIGHEST) + bk_ref[...].astype(jnp.float32)  # [Bt*Nt, H]

    # Sublane-oriented mask column from the dense 2-D mask: one small transpose.
    mT = m.astype(jnp.float32).T                                        # [Nt, Bt]
    m_sub = jnp.concatenate([mT[:, b:b + 1] for b in range(Bt)], axis=0)  # [Bt*Nt, 1]
    logits = jnp.where(m_sub > 0, logits, NEG_FILL)
    logits3 = logits.reshape(Bt, Nt, H)

    # Online (flash-style) softmax across sequence tiles.
    tile_max = jnp.max(logits3, axis=1, keepdims=True)                 # [Bt, 1, H]
    m_new = jnp.maximum(mrun_ref[...], tile_max)
    alpha = jnp.exp(mrun_ref[...] - m_new)                              # [Bt, 1, H]
    p3 = jnp.exp(logits3 - m_new)                                       # [Bt, Nt, H]
    lrun_ref[...] = alpha * lrun_ref[...] + jnp.sum(p3, axis=1, keepdims=True)
    mrun_ref[...] = m_new

    # Full-width value accumulation: expand per-head weights across each
    # head's Dh lanes with one MXU matmul against the constant 0/1
    # head-expansion matrix, then ONE dense accumulator update (no per-head
    # lane-slice read-modify-writes, dense output store).
    p_full = jnp.dot(p3.reshape(Bt * Nt, H), e_ref[...],
                     preferred_element_type=jnp.float32)                # [Bt*Nt, D]
    contrib = jnp.sum((p_full * f2.astype(jnp.float32)).reshape(Bt, Nt, D),
                      axis=1)                                           # [Bt, D]
    alpha_full = jnp.dot(jnp.sum(alpha, axis=1), e_ref[...],
                         preferred_element_type=jnp.float32)            # [Bt, D]
    acc_ref[...] = alpha_full * acc_ref[...] + contrib

    @pl.when(nj == pl.num_programs(1) - 1)
    def _finalize():
        inv = jnp.sum(1.0 / lrun_ref[...], axis=1)                      # [Bt, H] exact
        inv_full = jnp.dot(inv, e_ref[...], preferred_element_type=jnp.float32)
        o_ref[...] = (acc_ref[...] * inv_full).astype(o_ref.dtype)      # dense store


# ---------------------------------------------------------------------------
# Wrapper (parameters + mask glue + pallas_call with a real grid)
# ---------------------------------------------------------------------------
class PoolerPallas:
    def __init__(self, mode="mean", dropout_p=0.0, input_size=None, n_heads=None,
                 do_value_proj=False, key=None):
        assert mode in ("max", "sum", "mean", "attention", "first", "last")
        self.mode = mode
        self.dropout_p = dropout_p            # 0.0 -> identity (inference)
        self.n_heads = n_heads
        self.output_size = input_size
        if mode == "attention":
            assert input_size is not None and n_heads is not None
            assert input_size % n_heads == 0, "input_size must be divisible by n_heads"
            assert not do_value_proj  # TODO(synk): value_proj Linear not implemented
            k1, k2 = jax.random.split(key if key is not None else jax.random.PRNGKey(0))
            bound = 1.0 / (input_size ** 0.5)
            # torch.nn.Linear(input_size, n_heads): weight [H, D], bias [H]
            self.key_w = jax.random.uniform(k1, (n_heads, input_size), jnp.float32,
                                            -bound, bound)
            self.key_b = jax.random.uniform(k2, (n_heads,), jnp.float32, -bound, bound)
            # hoisted constants
            self.key_wT = jnp.asarray(self.key_w.T)                    # [D, H]
            self.key_b2 = jnp.asarray(self.key_b.reshape(1, -1))       # [1, H]
            dh = input_size // n_heads
            self.head_expand = jnp.repeat(jnp.eye(n_heads, dtype=jnp.float32),
                                          dh, axis=1)                  # [H, D] 0/1

    def __call__(self, features, mask, *, block_b=None, block_n=None):
        # TODO(synk): tuple-(begins, ends) mask path (F.embedding_bag) not implemented.
        B, N, D = features.shape
        mask_b = mask.astype(bool)

        if self.mode in ("first", "last"):
            # Gather exactly one row per batch (B*D bytes of HBM traffic
            # instead of streaming B*N*D through a reduction kernel).
            if self.mode == "first":
                pos = jnp.argmax(mask_b, axis=-1)
            else:
                pos = (N - 1) - jnp.argmax(mask_b[:, ::-1], axis=-1)
            rows = jnp.take_along_axis(features, pos[:, None, None], axis=1)[:, 0, :]
            any_kept = jnp.any(mask_b, axis=-1, keepdims=True)
            # TODO(synk): the gather itself is pure JAX (XLA dynamic-gather); a
            # scalar-prefetch Pallas gather kernel is a drop-in alternative.
            return jnp.where(any_kept, rows, 0).astype(features.dtype)

        itemsize = jnp.dtype(features.dtype).itemsize
        vmem_limit = _vmem_limit_bytes()
        Bt = block_b if block_b is not None else _pick_batch_tile(B)
        assert B % Bt == 0 and (Bt % 8 == 0 or Bt == B)
        Nt = block_n if block_n is not None else _pick_seq_tile(
            N, Bt, D, itemsize, self.mode == "attention", vmem_limit)
        assert Nt % 8 == 0 or Nt >= N

        # Remainder path: zero-pad the sequence (zero mask rows contribute nothing).
        Np = -(-N // Nt) * Nt
        mask_f = mask_b.astype(features.dtype)         # dense 2-D [B, N]
        if Np != N:
            features = jnp.pad(features, ((0, 0), (0, Np - N), (0, 0)))
            mask_f = jnp.pad(mask_f, ((0, 0), (0, Np - N)))
        assert Nt == Np or Nt % 128 == 0               # lane-legal mask block

        grid = (B // Bt, Np // Nt)
        f_spec = pl.BlockSpec((Bt, Nt, D), lambda b, n: (b, n, 0))
        m_spec = pl.BlockSpec((Bt, Nt), lambda b, n: (b, n))
        o_spec = pl.BlockSpec((Bt, D), lambda b, n: (b, 0))
        cparams = pltpu.CompilerParams(
            dimension_semantics=("parallel", "arbitrary"),
            vmem_limit_bytes=vmem_limit)

        if self.mode == "attention":
            H = self.n_heads
            kernel = functools.partial(_attention_pool_kernel, n_heads=H)
            wk = self.key_wT.astype(features.dtype)     # bf16 straight into the MXU
            gs = pltpu.PrefetchScalarGridSpec(
                num_scalar_prefetch=0, grid=grid,
                in_specs=[f_spec, m_spec,
                          pl.BlockSpec((D, H), lambda b, n: (0, 0)),
                          pl.BlockSpec((1, H), lambda b, n: (0, 0)),
                          pl.BlockSpec((H, D), lambda b, n: (0, 0))],
                out_specs=o_spec,
                scratch_shapes=[pltpu.VMEM((Bt, 1, H), jnp.float32),   # running max
                                pltpu.VMEM((Bt, 1, H), jnp.float32),   # running denom
                                pltpu.VMEM((Bt, D), jnp.float32)])     # value acc
            return pl.pallas_call(
                kernel,
                out_shape=jax.ShapeDtypeStruct((B, D), features.dtype),
                grid_spec=gs, compiler_params=cparams,
            )(features, mask_f, wk, self.key_b2, self.head_expand)

        kernel = functools.partial(_masked_pool_kernel, mode=self.mode)
        gs = pltpu.PrefetchScalarGridSpec(
            num_scalar_prefetch=0, grid=grid,
            in_specs=[f_spec, m_spec], out_specs=o_spec,
            scratch_shapes=[pltpu.VMEM((Bt, D), jnp.float32),          # accumulator
                            pltpu.VMEM((Bt, 1), jnp.float32)])         # kept-count
        return pl.pallas_call(
            kernel,
            out_shape=jax.ShapeDtypeStruct((B, D), features.dtype),
            grid_spec=gs, compiler_params=cparams,
        )(features, mask_f)


# ---------------------------------------------------------------------------
# Pure-JAX references (correctness checking only)
# ---------------------------------------------------------------------------
def _reference_pool(features, mask, mode):
    m = mask
    if mode == "first":
        m = m & (jnp.cumsum(m.astype(jnp.int32), axis=-1) == 1)
    elif mode == "last":
        rev = jnp.cumsum(m.astype(jnp.int32)[..., ::-1], axis=-1)[..., ::-1]
        m = m & (rev == 1)
    keep = m[..., None]
    if mode == "max":
        out = jnp.max(jnp.where(keep, features, NEG_FILL), axis=-2)
        return jnp.where(jnp.any(keep, axis=-2), out, 0.0)
    out = jnp.sum(jnp.where(keep, features, 0.0), axis=-2)
    if mode == "mean":
        out = out / jnp.maximum(jnp.sum(m.astype(jnp.float32), axis=-1, keepdims=True), 1.0)
    return out


def _reference_attention(features, mask, key_w, key_b, n_heads):
    B, N, D = features.shape
    logits = features @ key_w.T + key_b
    logits = jnp.where(mask[..., None], logits, NEG_FILL)
    w = jax.nn.softmax(logits, axis=-2)
    vals = features.reshape(B, N, n_heads, D // n_heads)
    res = jnp.einsum("bnhd,bnh->bhd", vals, w)
    return res.reshape(B, D)


# ---------------------------------------------------------------------------
if __name__ == "__main__":
    key = jax.random.PRNGKey(0)
    kf, km, kp = jax.random.split(key, 3)
    B, N, D, H = 16, 256, 64, 4

    features = jax.random.normal(kf, (B, N, D), dtype=jnp.float32)
    mask = jax.random.uniform(km, (B, N)) > 0.3
    mask = mask.at[:, 0].set(True)   # ensure at least one kept token per row

    ok = True
    # block_n=128 -> 2 sequence tiles: exercises accumulator init/finalize.
    for mode in ("mean", "sum", "max", "first", "last"):
        pooler = PoolerPallas(mode=mode)
        out = jax.block_until_ready(pooler(features, mask, block_n=128))
        ref = _reference_pool(features, mask, mode)
        tol = 2e-3 if mode in ("mean", "sum") else 1e-5
        good = bool(jnp.allclose(out, ref, atol=tol, rtol=tol))
        if not good:
            print(f"mismatch in mode={mode}: max abs err "
                  f"{float(jnp.max(jnp.abs(out - ref)))}")
        ok &= good

    # auto tile-size path (single sequence tile)
    pooler = PoolerPallas(mode="mean")
    out = jax.block_until_ready(pooler(features, mask))
    ref = _reference_pool(features, mask, "mean")
    good = bool(jnp.allclose(out, ref, atol=2e-3, rtol=2e-3))
    if not good:
        print("mismatch in mean (auto):", float(jnp.max(jnp.abs(out - ref))))
    ok &= good

    att = PoolerPallas(mode="attention", input_size=D, n_heads=H, key=kp)
    ref = _reference_attention(features, mask, att.key_w, att.key_b, H)
    # online softmax across 2 sequence tiles
    out = jax.block_until_ready(att(features, mask, block_n=128))
    good = bool(jnp.allclose(out, ref, atol=5e-3, rtol=5e-3))
    if not good:
        print("mismatch in attention (tiled):", float(jnp.max(jnp.abs(out - ref))))
    ok &= good
    # auto tile-size path (single sequence tile)
    out2 = jax.block_until_ready(att(features, mask))
    good = bool(jnp.allclose(out2, ref, atol=5e-3, rtol=5e-3))
    if not good:
        print("mismatch in attention (auto):", float(jnp.max(jnp.abs(out2 - ref))))
    ok &= good

    if ok:
        print("KERNEL_OK")
    else:
        raise SystemExit("Pallas output mismatch vs reference")
</pallas_src>

<mosaic_0001>
module attributes {stable_mosaic.version = 11 : i64} {
  func.func @_masked_pool_kernel(%arg0: i32, %arg1: i32, %arg2: memref<8x128x64xf32, #tpu.memory_space<vmem>>, %arg3: memref<8x128xf32, #tpu.memory_space<vmem>>, %arg4: memref<8x64xf32, #tpu.memory_space<vmem>>, %arg5: memref<8x64xf32, #tpu.memory_space<vmem>>, %arg6: memref<8x1xf32, #tpu.memory_space<vmem>>) attributes {dimension_semantics = [#tpu.dimension_semantics<parallel>, #tpu.dimension_semantics<arbitrary>], iteration_bounds = array<i64: 2, 2>, scalar_prefetch = 0 : i64, scratch_operands = 2 : i64, tpu.core_type = #tpu.core_type<tc>, window_params = [{transform_indices = @transform_0, window_bounds = array<i64: 8, 128, 64>}, {transform_indices = @transform_1, window_bounds = array<i64: 8, 128>}, {transform_indices = @transform_2, window_bounds = array<i64: 8, 64>}]} {
    %c0_i32 = arith.constant 0 : i32
    %0 = arith.cmpi eq, %arg1, %c0_i32 : i32
    %1 = arith.extui %0 : i1 to i32
    %c0_i32_0 = arith.constant 0 : i32
    %2 = arith.cmpi ne, %1, %c0_i32_0 : i32
    scf.if %2 {
      %cst_22 = arith.constant 0.000000e+00 : f32
      %49 = vector.broadcast %cst_22 : f32 to vector<8x64xf32>
      %c0_23 = arith.constant 0 : index
      %c0_24 = arith.constant 0 : index
      %50 = vector.load %arg5[%c0_23, %c0_24] : memref<8x64xf32, #tpu.memory_space<vmem>>, vector<8x64xf32>
      tpu.vector_store %arg5[%c0_23, %c0_24], %49 {strides = array<i32>} : memref<8x64xf32, #tpu.memory_space<vmem>>, vector<8x64xf32>,
      %cst_25 = arith.constant 0.000000e+00 : f32
      %51 = vector.broadcast %cst_25 : f32 to vector<8x1xf32>
      %c0_26 = arith.constant 0 : index
      %c0_27 = arith.constant 0 : index
      %52 = vector.load %arg6[%c0_26, %c0_27] : memref<8x1xf32, #tpu.memory_space<vmem>>, vector<8x1xf32>
      tpu.vector_store %arg6[%c0_26, %c0_27], %51 {strides = array<i32>} : memref<8x1xf32, #tpu.memory_space<vmem>>, vector<8x1xf32>,
    } else {
    }
    %c0 = arith.constant 0 : index
    %c0_1 = arith.constant 0 : index
    %c0_2 = arith.constant 0 : index
    %3 = vector.load %arg2[%c0, %c0_1, %c0_2] : memref<8x128x64xf32, #tpu.memory_space<vmem>>, vector<8x128x64xf32>
    %c0_3 = arith.constant 0 : index
    %c0_4 = arith.constant 0 : index
    %4 = vector.load %arg3[%c0_3, %c0_4] : memref<8x128xf32, #tpu.memory_space<vmem>>, vector<8x128xf32>
    %c0_5 = arith.constant 0 : index
    %c0_6 = arith.constant 0 : index
    %5 = vector.load %arg6[%c0_5, %c0_6] : memref<8x1xf32, #tpu.memory_space<vmem>>, vector<8x1xf32>
    %cst = arith.constant dense<0.000000e+00> : vector<8xf32>
    %6 = vector.multi_reduction <add>, %4, %cst [1] : vector<8x128xf32> to vector<8xf32>
    %7 = vector.shape_cast %6 : vector<8xf32> to vector<8x1xf32>
    %8 = arith.addf %5, %7 : vector<8x1xf32>
    %c0_7 = arith.constant 0 : index
    %c0_8 = arith.constant 0 : index
    %9 = vector.load %arg6[%c0_7, %c0_8] : memref<8x1xf32, #tpu.memory_space<vmem>>, vector<8x1xf32>
    tpu.vector_store %arg6[%c0_7, %c0_8], %8 {strides = array<i32>} : memref<8x1xf32, #tpu.memory_space<vmem>>, vector<8x1xf32>,
    %10 = vector.extract_strided_slice %4 {offsets = [0, 0], sizes = [1, 128], strides = [1, 1]} : vector<8x128xf32> to vector<1x128xf32>
    %11 = vector.extract_strided_slice %3 {offsets = [0, 0, 0], sizes = [1, 128, 64], strides = [1, 1, 1]} : vector<8x128x64xf32> to vector<1x128x64xf32>
    %12 = vector.shape_cast %11 : vector<1x128x64xf32> to vector<128x64xf32>
    %cst_9 = arith.constant dense<0.000000e+00> : vector<1x64xf32>
    %13 = tpu.matmul %10, %12, %cst_9 {dimension_numbers = #tpu.dot_dimension_numbers<[1], [0], [0], [1], [0, 0, 1, 1], [], []>, precision = #tpu.contract_precision<fp32>} : vector<1x128xf32>, vector<128x64xf32>, vector<1x64xf32> -> vector<1x64xf32>
    %14 = vector.extract_strided_slice %4 {offsets = [1, 0], sizes = [1, 128], strides = [1, 1]} : vector<8x128xf32> to vector<1x128xf32>
    %15 = vector.extract_strided_slice %3 {offsets = [1, 0, 0], sizes = [1, 128, 64], strides = [1, 1, 1]} : vector<8x128x64xf32> to vector<1x128x64xf32>
    %16 = vector.shape_cast %15 : vector<1x128x64xf32> to vector<128x64xf32>
    %cst_10 = arith.constant dense<0.000000e+00> : vector<1x64xf32>
    %17 = tpu.matmul %14, %16, %cst_10 {dimension_numbers = #tpu.dot_dimension_numbers<[1], [0], [0], [1], [0, 0, 1, 1], [], []>, precision = #tpu.contract_precision<fp32>} : vector<1x128xf32>, vector<128x64xf32>, vector<1x64xf32> -> vector<1x64xf32>
    %18 = vector.extract_strided_slice %4 {offsets = [2, 0], sizes = [1, 128], strides = [1, 1]} : vector<8x128xf32> to vector<1x128xf32>
    %19 = vector.extract_strided_slice %3 {offsets = [2, 0, 0], sizes = [1, 128, 64], strides = [1, 1, 1]} : vector<8x128x64xf32> to vector<1x128x64xf32>
    %20 = vector.shape_cast %19 : vector<1x128x64xf32> to vector<128x64xf32>
    %cst_11 = arith.constant dense<0.000000e+00> : vector<1x64xf32>
    %21 = tpu.matmul %18, %20, %cst_11 {dimension_numbers = #tpu.dot_dimension_numbers<[1], [0], [0], [1], [0, 0, 1, 1], [], []>, precision = #tpu.contract_precision<fp32>} : vector<1x128xf32>, vector<128x64xf32>, vector<1x64xf32> -> vector<1x64xf32>
    %22 = vector.extract_strided_slice %4 {offsets = [3, 0], sizes = [1, 128], strides = [1, 1]} : vector<8x128xf32> to vector<1x128xf32>
    %23 = vector.extract_strided_slice %3 {offsets = [3, 0, 0], sizes = [1, 128, 64], strides = [1, 1, 1]} : vector<8x128x64xf32> to vector<1x128x64xf32>
    %24 = vector.shape_cast %23 : vector<1x128x64xf32> to vector<128x64xf32>
    %cst_12 = arith.constant dense<0.000000e+00> : vector<1x64xf32>
    %25 = tpu.matmul %22, %24, %cst_12 {dimension_numbers = #tpu.dot_dimension_numbers<[1], [0], [0], [1], [0, 0, 1, 1], [], []>, precision = #tpu.contract_precision<fp32>} : vector<1x128xf32>, vector<128x64xf32>, vector<1x64xf32> -> vector<1x64xf32>
    %26 = vector.extract_strided_slice %4 {offsets = [4, 0], sizes = [1, 128], strides = [1, 1]} : vector<8x128xf32> to vector<1x128xf32>
    %27 = vector.extract_strided_slice %3 {offsets = [4, 0, 0], sizes = [1, 128, 64], strides = [1, 1, 1]} : vector<8x128x64xf32> to vector<1x128x64xf32>
    %28 = vector.shape_cast %27 : vector<1x128x64xf32> to vector<128x64xf32>
    %cst_13 = arith.constant dense<0.000000e+00> : vector<1x64xf32>
    %29 = tpu.matmul %26, %28, %cst_13 {dimension_numbers = #tpu.dot_dimension_numbers<[1], [0], [0], [1], [0, 0, 1, 1], [], []>, precision = #tpu.contract_precision<fp32>} : vector<1x128xf32>, vector<128x64xf32>, vector<1x64xf32> -> vector<1x64xf32>
    %30 = vector.extract_strided_slice %4 {offsets = [5, 0], sizes = [1, 128], strides = [1, 1]} : vector<8x128xf32> to vector<1x128xf32>
    %31 = vector.extract_strided_slice %3 {offsets = [5, 0, 0], sizes = [1, 128, 64], strides = [1, 1, 1]} : vector<8x128x64xf32> to vector<1x128x64xf32>
    %32 = vector.shape_cast %31 : vector<1x128x64xf32> to vector<128x64xf32>
    %cst_14 = arith.constant dense<0.000000e+00> : vector<1x64xf32>
    %33 = tpu.matmul %30, %32, %cst_14 {dimension_numbers = #tpu.dot_dimension_numbers<[1], [0], [0], [1], [0, 0, 1, 1], [], []>, precision = #tpu.contract_precision<fp32>} : vector<1x128xf32>, vector<128x64xf32>, vector<1x64xf32> -> vector<1x64xf32>
    %34 = vector.extract_strided_slice %4 {offsets = [6, 0], sizes = [1, 128], strides = [1, 1]} : vector<8x128xf32> to vector<1x128xf32>
    %35 = vector.extract_strided_slice %3 {offsets = [6, 0, 0], sizes = [1, 128, 64], strides = [1, 1, 1]} : vector<8x128x64xf32> to vector<1x128x64xf32>
    %36 = vector.shape_cast %35 : vector<1x128x64xf32> to vector<128x64xf32>
    %cst_15 = arith.constant dense<0.000000e+00> : vector<1x64xf32>
    %37 = tpu.matmul %34, %36, %cst_15 {dimension_numbers = #tpu.dot_dimension_numbers<[1], [0], [0], [1], [0, 0, 1, 1], [], []>, precision = #tpu.contract_precision<fp32>} : vector<1x128xf32>, vector<128x64xf32>, vector<1x64xf32> -> vector<1x64xf32>
    %38 = vector.extract_strided_slice %4 {offsets = [7, 0], sizes = [1, 128], strides = [1, 1]} : vector<8x128xf32> to vector<1x128xf32>
    %39 = vector.extract_strided_slice %3 {offsets = [7, 0, 0], sizes = [1, 128, 64], strides = [1, 1, 1]} : vector<8x128x64xf32> to vector<1x128x64xf32>
    %40 = vector.shape_cast %39 : vector<1x128x64xf32> to vector<128x64xf32>
    %cst_16 = arith.constant dense<0.000000e+00> : vector<1x64xf32>
    %41 = tpu.matmul %38, %40, %cst_16 {dimension_numbers = #tpu.dot_dimension_numbers<[1], [0], [0], [1], [0, 0, 1, 1], [], []>, precision = #tpu.contract_precision<fp32>} : vector<1x128xf32>, vector<128x64xf32>, vector<1x64xf32> -> vector<1x64xf32>
    %c0_17 = arith.constant 0 : index
    %c0_18 = arith.constant 0 : index
    %42 = vector.load %arg5[%c0_17, %c0_18] : memref<8x64xf32, #tpu.memory_space<vmem>>, vector<8x64xf32>
    %43 = tpu.concatenate %13, %17, %21, %25, %29, %33, %37, %41 in 0 : vector<1x64xf32>, vector<1x64xf32>, vector<1x64xf32>, vector<1x64xf32>, vector<1x64xf32>, vector<1x64xf32>, vector<1x64xf32>, vector<1x64xf32> -> vector<8x64xf32>
    %44 = arith.addf %42, %43 : vector<8x64xf32>
    %c0_19 = arith.constant 0 : index
    %c0_20 = arith.constant 0 : index
    %45 = vector.load %arg5[%c0_19, %c0_20] : memref<8x64xf32, #tpu.memory_space<vmem>>, vector<8x64xf32>
    tpu.vector_store %arg5[%c0_19, %c0_20], %44 {strides = array<i32>} : memref<8x64xf32, #tpu.memory_space<vmem>>, vector<8x64xf32>,
    %c1_i32 = arith.constant 1 : i32
    %46 = arith.cmpi eq, %arg1, %c1_i32 : i32
    %47 = arith.extui %46 : i1 to i32
    %c0_i32_21 = arith.constant 0 : i32
    %48 = arith.cmpi ne, %47, %c0_i32_21 : i32
    scf.if %48 {
      %c0_22 = arith.constant 0 : index
      %c0_23 = arith.constant 0 : index
      %49 = vector.load %arg5[%c0_22, %c0_23] : memref<8x64xf32, #tpu.memory_space<vmem>>, vector<8x64xf32>
      %c0_24 = arith.constant 0 : index
      %c0_25 = arith.constant 0 : index
      %50 = vector.load %arg6[%c0_24, %c0_25] : memref<8x1xf32, #tpu.memory_space<vmem>>, vector<8x1xf32>
      %cst_26 = arith.constant 1.000000e+00 : f32
      %51 = vector.broadcast %cst_26 : f32 to vector<8x1xf32>
      %52 = arith.maximumf %50, %51 : vector<8x1xf32>
      %53 = vector.broadcast %52 : vector<8x1xf32> to vector<8x64xf32>
      %54 = arith.divf %49, %53 : vector<8x64xf32>
      %c0_27 = arith.constant 0 : index
      %c0_28 = arith.constant 0 : index
      %55 = vector.load %arg4[%c0_27, %c0_28] : memref<8x64xf32, #tpu.memory_space<vmem>>, vector<8x64xf32>
      tpu.vector_store %arg4[%c0_27, %c0_28], %54 {strides = array<i32>} : memref<8x64xf32, #tpu.memory_space<vmem>>, vector<8x64xf32>,
    } else {
    }
    return
  }
  func.func @transform_0(%arg0: i32, %arg1: i32) -> (i32, i32, i32) {
    %c0_i32 = arith.constant 0 : i32
    %c0_i32_0 = arith.constant 0 : i32
    return %arg0, %arg1, %c0_i32 : i32, i32, i32
  }
  func.func @transform_1(%arg0: i32, %arg1: i32) -> (i32, i32) {
    %c0_i32 = arith.constant 0 : i32
    return %arg0, %arg1 : i32, i32
  }
  func.func @transform_2(%arg0: i32, %arg1: i32) -> (i32, i32) {
    %c0_i32 = arith.constant 0 : i32
    %c0_i32_0 = arith.constant 0 : i32
    return %arg0, %c0_i32 : i32, i32
  }
}

</mosaic_0001>

<llo_original>
// kernel: tpu_custom_call.1
$region0: #{tpu_custom_call.1}
  #allocation0 [shape = 'u32[]', space=smem, size = 0x4, offset = 0x4, fixed_abs, tag = 'smem constant byte address 0x4 - core index']
  #allocation1 [shape = 'u32[72,128]{1,0:T(1,128)}', space=vmem, size = 0x9000, scoped, tag = 'internal scratch']
  #allocation2 [shape = 'f32[8,64]{1,0:T(8,128)}', space=vmem, size = 0x1000, scoped, tag = 'scratch operand']
  #allocation3 [shape = 'f32[8,1]{1,0:T(8,128)}', space=vmem, size = 0x1000, scoped, tag = 'scratch operand']
  %s0 = inlined_call_operand.vmem [shape: f32[16,256,64], index: 0, kind: input, shape index: {}]
  %s1 = inlined_call_operand.vmem [shape: f32[16,256], index: 1, kind: input, shape index: {}]
  %s2 = inlined_call_operand.hbm [shape: f32[16,64], index: 2, kind: output, shape index: {}]
  %s3 = sld [smem:[#allocation0]]
  $region87: #{tpu_custom_call.1} parent=0
    _
  %s5 = ssub.s32 1, %s3
  %s6 = scalar_select 0, %s5, %s3
  $region1: #{tpu_custom_call.1} parent=0
    #allocation4 [shape = 'u8[1048576]{0}', space=vmem, size = 0x100000, scoped, tag = 'input window, operand 0']
    #allocation5 [shape = 'u8[8192]{0}', space=vmem, size = 0x2000, scoped, tag = 'output window, operand 0']
    #allocation6 [shape = 's32[2]{0}', space=sflag, size = 0x8, scoped, tag = 'scoped memory for tpu_custom_call.1']
    %7 = vsyncpa [#allocation6], 0
    %s8 = scalar_lea.sflag [#allocation6], 1
    %9 = vsyncpa %s8, 0
    loop: start=0, step=1, limit=6
    $region2: #{tpu_custom_call.1} parent=1 // loop_pre_header
      _
    $region3: #{tpu_custom_call.1} parent=1 // loop_header
      %s11 = sphi 0, %s15
      %p12 = scmp.ge.s32.totalorder %s11, 6
      %s18 = sphi 0, %s30
      %s19 = sphi 0, %s26
      %s20 = sphi 0, %s18
      %s21 = sphi 0, %s19
      %s22 = sphi 0, %s20
      %s23 = sphi 0, %s21
      %s35 = sphi 0, %s37
      %s38 = sphi 0, %s35
      %s39 = sphi 0, %s38
      %s55 = sphi 0, %s39
      %s63 = sphi 0, %s65
      %s66 = sphi 0, %s63
      %s67 = sphi 0, %s66
      %s83 = sphi 0, %s67
      %s89 = sphi 0, %s91
      %s92 = sphi 0, %s89
      %s93 = sphi 0, %s92
      %s109 = sphi 0, %s93
    $region4: #{tpu_custom_call.1} parent=1 // loop_header_branch
      %14 = sbr.rel (%p12) target = $region8
    $region5: #{tpu_custom_call.1} parent=1 // loop_body
      %s16 = ssub.s32 %s11, 1
      %s17 = ssub.s32 %s11, 2
      %s24 = sadd.s32 1, %s19
      %p25 = scmp.ge.s32.totalorder %s24, 2
      %s26 = scalar_select %p25, 0, %s24
      %s27 = sadd.s32 1, %s18
      %s28 = scalar_select %p25, %s27, %s18
      %p29 = scmp.ge.s32.totalorder %s28, 2
      %s30 = scalar_select %p29, 0, %s28
      %s31 = ssub.s32 %s18, %s30
      %s32 = ssub.s32 %s19, %s26
      %s33 = sor.u32 %s31, %s32
      %p34 = scmp.eq.s32.totalorder %s33, 0
      %s36 = sadd.s32 %s35, 1
      %s37 = scalar_select %p34, %s35, %s36
      %p40 = pneg %p34
      %p41 = scmp.eq.s32.totalorder %s11, 3
      %p42 = por %p40, %p41
      %p43 = scmp.ne.s32.totalorder %s35, %s38
      %p44 = scmp.eq.s32.totalorder %s11, 0
      %p45 = por %p43, %p44
      %p46 = scmp.ne.s32.totalorder %s35, %s38
      %p47 = scmp.eq.s32.totalorder %s16, 3
      %p48 = por %p46, %p47
      %p49 = scmp.ne.s32.totalorder %s38, %s39
      %p50 = scmp.eq.s32.totalorder %s16, 0
      %p51 = por %p49, %p50
      %p52 = scmp.ne.s32.totalorder %s38, %s39
      %p53 = scmp.eq.s32.totalorder %s17, 3
      %p54 = por %p52, %p53
      %p56 = scmp.ne.s32.totalorder %s39, %s55
      %p57 = scmp.eq.s32.totalorder %s17, 0
      %p58 = por %p56, %p57
      %s59 = ssub.s32 %s18, %s30
      %s60 = ssub.s32 %s19, %s26
      %s61 = sor.u32 %s59, %s60
      %p62 = scmp.eq.s32.totalorder %s61, 0
      %s64 = sadd.s32 %s63, 1
      %s65 = scalar_select %p62, %s63, %s64
      %p68 = pneg %p62
      %p69 = scmp.eq.s32.totalorder %s11, 3
      %p70 = por %p68, %p69
      %p71 = scmp.ne.s32.totalorder %s63, %s66
      %p72 = scmp.eq.s32.totalorder %s11, 0
      %p73 = por %p71, %p72
      %p74 = scmp.ne.s32.totalorder %s63, %s66
      %p75 = scmp.eq.s32.totalorder %s16, 3
      %p76 = por %p74, %p75
      %p77 = scmp.ne.s32.totalorder %s66, %s67
      %p78 = scmp.eq.s32.totalorder %s16, 0
      %p79 = por %p77, %p78
      %p80 = scmp.ne.s32.totalorder %s66, %s67
      %p81 = scmp.eq.s32.totalorder %s17, 3
      %p82 = por %p80, %p81
      %p84 = scmp.ne.s32.totalorder %s67, %s83
      %p85 = scmp.eq.s32.totalorder %s17, 0
      %p86 = por %p84, %p85
      %s87 = ssub.s32 %s18, %s30
      %p88 = scmp.eq.s32.totalorder %s87, 0
      %s90 = sadd.s32 %s89, 1
      %s91 = scalar_select %p88, %s89, %s90
      %p94 = pneg %p88
      %p95 = scmp.eq.s32.totalorder %s11, 3
      %p96 = por %p94, %p95
      %p97 = scmp.ne.s32.totalorder %s89, %s92
      %p98 = scmp.eq.s32.totalorder %s11, 0
      %p99 = por %p97, %p98
      %p100 = scmp.ne.s32.totalorder %s89, %s92
      %p101 = scmp.eq.s32.totalorder %s16, 3
      %p102 = por %p100, %p101
      %p103 = scmp.ne.s32.totalorder %s92, %s93
      %p104 = scmp.eq.s32.totalorder %s16, 0
      %p105 = por %p103, %p104
      %p106 = scmp.ne.s32.totalorder %s92, %s93
      %p107 = scmp.eq.s32.totalorder %s17, 3
      %p108 = por %p106, %p107
      %p110 = scmp.ne.s32.totalorder %s93, %s109
      %p111 = scmp.eq.s32.totalorder %s17, 0
      %p112 = por %p110, %p111
      %p113 = scmp.le.s32.totalorder 1, %s11
      %p114 = scmp.lt.s32.totalorder %s11, 5
      %p115 = pnand %p113, %p114
      %p116 = pneg %p115
      // Predicated region
      $region9: #{tpu_custom_call.1} parent=5 // pred_check
        _
      $region10: #{tpu_custom_call.1} parent=5 // pred_check_branch
        %118 = sbr.rel (%p115) target = $region12
      $region11: #{tpu_custom_call.1} parent=5 // pred_region
        %s119 = ssub.s32 %s11, 1
      $region12: #{tpu_custom_call.1} parent=5 // pred_fallthru
        _
      %p120 = scmp.lt.s32.totalorder %s11, 4
      // Predicated region
      $region13: #{tpu_custom_call.1} parent=5 // pred_check
        %p121 = pneg %p120
      $region14: #{tpu_custom_call.1} parent=5 // pred_check_branch
        %123 = sbr.rel (%p121) target = $region16
      $region15: #{tpu_custom_call.1} parent=5 // pred_region
        // Predicated region
        $region17: #{tpu_custom_call.1} parent=15 // pred_check
          %p124 = pneg %p45
        $region18: #{tpu_custom_call.1} parent=15 // pred_check_branch
          %126 = sbr.rel (%p124) target = $region20
        $region19: #{tpu_custom_call.1} parent=15 // pred_region
          %s127 = sand.u32 %s35, 1
          %s128 = sand.u32 %s35, 1
          %s129 = smul.addr %s128, 1024
          %s130 = scalar_lea.vmem [#allocation4], %s129
          %s131 = smul.u32 8, %s18
          %s132 = smul.u32 16, %s19
          %s133 = smul.addr %s131, 32
          %s134 = sadd.s32 %s132, %s133
          %s135 = smul.addr %s134, 8
          %s136 = scalar_lea.vmem %s0, %s135
          // Predicated region
          $region21: #{tpu_custom_call.1} parent=19 // pred_check
            _
          $region22: #{tpu_custom_call.1} parent=19 // pred_check_branch
            %138 = sbr.rel (0) target = $region24
          $region23: #{tpu_custom_call.1} parent=19 // pred_region
            // Predicated region
            $region25: #{tpu_custom_call.1} parent=23 // pred_check
              _
            $region26: #{tpu_custom_call.1} parent=23 // pred_check_branch
              %140 = sbr.rel (0) target = $region28
            $region27: #{tpu_custom_call.1} parent=23 // pred_region
              // Predicated region
              $region40: #{tpu_custom_call.1} parent=27 // pred_check
                _
              $region41: #{tpu_custom_call.1} parent=27 // pred_check_branch
                %410 = sbr.rel (0) target = $region43
              $region42: #{tpu_custom_call.1} parent=27 // pred_region
                loop: start=0, step=1, limit=1
                $region44: #{tpu_custom_call.1} parent=42 // loop_pre_header
                  _
                $region45: #{tpu_custom_call.1} parent=42 // loop_header
                  %s412 = sphi 0, %s416
                  %p413 = scmp.ge.s32.totalorder %s412, 1
                  %s417 = sphi %s136, %s136
                  %s418 = sphi %s130, %s130
                $region46: #{tpu_custom_call.1} parent=42 // loop_header_branch
                  %415 = sbr.rel (%p413) target = $region50
                $region47: #{tpu_custom_call.1} parent=42 // loop_body
                  %v419 = vld [vmem:[%s417] sm:$0xff]
                  %420 = vst [vmem:[%s418] sm:$0xff] %v419
                  %v421 = vld [vmem:[%s417 + $0x8] sm:$0xff]
                  %422 = vst [vmem:[%s418 + $0x8] sm:$0xff] %v421
                  %v423 = vld [vmem:[%s417 + $0x10] sm:$0xff]
                  %424 = vst [vmem:[%s418 + $0x10] sm:$0xff] %v423
                  %v425 = vld [vmem:[%s417 + $0x18] sm:$0xff]
                  %426 = vst [vmem:[%s418 + $0x18] sm:$0xff] %v425
                  %v427 = vld [vmem:[%s417 + $0x20] sm:$0xff]
                  %428 = vst [vmem:[%s418 + $0x20] sm:$0xff] %v427
                  %v429 = vld [vmem:[%s417 + $0x28] sm:$0xff]
                  %430 = vst [vmem:[%s418 + $0x28] sm:$0xff] %v429
                  %v431 = vld [vmem:[%s417 + $0x30] sm:$0xff]
                  %432 = vst [vmem:[%s418 + $0x30] sm:$0xff] %v431
                  %v433 = vld [vmem:[%s417 + $0x38] sm:$0xff]
                  %434 = vst [vmem:[%s418 + $0x38] sm:$0xff] %v433
                  %v435 = vld [vmem:[%s417 + $0x40] sm:$0xff]
                  %436 = vst [vmem:[%s418 + $0x40] sm:$0xff] %v435
                  %v437 = vld [vmem:[%s417 + $0x48] sm:$0xff]
                  %438 = vst [vmem:[%s418 + $0x48] sm:$0xff] %v437
                  %v439 = vld [vmem:[%s417 + $0x50] sm:$0xff]
                  %440 = vst [vmem:[%s418 + $0x50] sm:$0xff] %v439
                  %v441 = vld [vmem:[%s417 + $0x58] sm:$0xff]
                  %442 = vst [vmem:[%s418 + $0x58] sm:$0xff] %v441
                  %v443 = vld [vmem:[%s417 + $0x60] sm:$0xff]
                  %444 = vst [vmem:[%s418 + $0x60] sm:$0xff] %v443
                  %v445 = vld [vmem:[%s417 + $0x68] sm:$0xff]
                  %446 = vst [vmem:[%s418 + $0x68] sm:$0xff] %v445
                  %v447 = vld [vmem:[%s417 + $0x70] sm:$0xff]
                  %448 = vst [vmem:[%s418 + $0x70] sm:$0xff] %v447
                  %v449 = vld [vmem:[%s417 + $0x78] sm:$0xff]
                  %450 = vst [vmem:[%s418 + $0x78] sm:$0xff] %v449
                  %v451 = vld [vmem:[%s417 + $0x100] sm:$0xff]
                  %452 = vst [vmem:[%s418 + $0x80] sm:$0xff] %v451
                  %v453 = vld [vmem:[%s417 + $0x108] sm:$0xff]
                  %454 = vst [vmem:[%s418 + $0x88] sm:$0xff] %v453
                  %v455 = vld [vmem:[%s417 + $0x110] sm:$0xff]
                  %456 = vst [vmem:[%s418 + $0x90] sm:$0xff] %v455
                  %v457 = vld [vmem:[%s417 + $0x118] sm:$0xff]
                  %458 = vst [vmem:[%s418 + $0x98] sm:$0xff] %v457
                  %v459 = vld [vmem:[%s417 + $0x120] sm:$0xff]
                  %460 = vst [vmem:[%s418 + $0xa0] sm:$0xff] %v459
                  %v461 = vld [vmem:[%s417 + $0x128] sm:$0xff]
                  %462 = vst [vmem:[%s418 + $0xa8] sm:$0xff] %v461
                  %v463 = vld [vmem:[%s417 + $0x130] sm:$0xff]
                  %464 = vst [vmem:[%s418 + $0xb0] sm:$0xff] %v463
                  %v465 = vld [vmem:[%s417 + $0x138] sm:$0xff]
                  %466 = vst [vmem:[%s418 + $0xb8] sm:$0xff] %v465
                  %v467 = vld [vmem:[%s417 + $0x140] sm:$0xff]
                  %468 = vst [vmem:[%s418 + $0xc0] sm:$0xff] %v467
                  %v469 = vld [vmem:[%s417 + $0x148] sm:$0xff]
                  %470 = vst [vmem:[%s418 + $0xc8] sm:$0xff] %v469
                  %v471 = vld [vmem:[%s417 + $0x150] sm:$0xff]
                  %472 = vst [vmem:[%s418 + $0xd0] sm:$0xff] %v471
                  %v473 = vld [vmem:[%s417 + $0x158] sm:$0xff]
                  %474 = vst [vmem:[%s418 + $0xd8] sm:$0xff] %v473
                  %v475 = vld [vmem:[%s417 + $0x160] sm:$0xff]
                  %476 = vst [vmem:[%s418 + $0xe0] sm:$0xff] %v475
                  %v477 = vld [vmem:[%s417 + $0x168] sm:$0xff]
                  %478 = vst [vmem:[%s418 + $0xe8] sm:$0xff] %v477
                  %v479 = vld [vmem:[%s417 + $0x170] sm:$0xff]
                  %480 = vst [vmem:[%s418 + $0xf0] sm:$0xff] %v479
                  %v481 = vld [vmem:[%s417 + $0x178] sm:$0xff]
                  %482 = vst [vmem:[%s418 + $0xf8] sm:$0xff] %v481
                  %v483 = vld [vmem:[%s417 + $0x200] sm:$0xff]
                  %484 = vst [vmem:[%s418 + $0x100] sm:$0xff] %v483
                  %v485 = vld [vmem:[%s417 + $0x208] sm:$0xff]
                  %486 = vst [vmem:[%s418 + $0x108] sm:$0xff] %v485
                  %v487 = vld [vmem:[%s417 + $0x210] sm:$0xff]
                  %488 = vst [vmem:[%s418 + $0x110] sm:$0xff] %v487
                  %v489 = vld [vmem:[%s417 + $0x218] sm:$0xff]
                  %490 = vst [vmem:[%s418 + $0x118] sm:$0xff] %v489
                  %v491 = vld [vmem:[%s417 + $0x220] sm:$0xff]
                  %492 = vst [vmem:[%s418 + $0x120] sm:$0xff] %v491
                  %v493 = vld [vmem:[%s417 + $0x228] sm:$0xff]
                  %494 = vst [vmem:[%s418 + $0x128] sm:$0xff] %v493
                  %v495 = vld [vmem:[%s417 + $0x230] sm:$0xff]
                  %496 = vst [vmem:[%s418 + $0x130] sm:$0xff] %v495
                  %v497 = vld [vmem:[%s417 + $0x238] sm:$0xff]
                  %498 = vst [vmem:[%s418 + $0x138] sm:$0xff] %v497
                  %v499 = vld [vmem:[%s417 + $0x240] sm:$0xff]
                  %500 = vst [vmem:[%s418 + $0x140] sm:$0xff] %v499
                  %v501 = vld [vmem:[%s417 + $0x248] sm:$0xff]
                  %502 = vst [vmem:[%s418 + $0x148] sm:$0xff] %v501
                  %v503 = vld [vmem:[%s417 + $0x250] sm:$0xff]
                  %504 = vst [vmem:[%s418 + $0x150] sm:$0xff] %v503
                  %v505 = vld [vmem:[%s417 + $0x258] sm:$0xff]
                  %506 = vst [vmem:[%s418 + $0x158] sm:$0xff] %v505
                  %v507 = vld [vmem:[%s417 + $0x260] sm:$0xff]
                  %508 = vst [vmem:[%s418 + $0x160] sm:$0xff] %v507
                  %v509 = vld [vmem:[%s417 + $0x268] sm:$0xff]
                  %510 = vst [vmem:[%s418 + $0x168] sm:$0xff] %v509
                  %v511 = vld [vmem:[%s417 + $0x270] sm:$0xff]
                  %512 = vst [vmem:[%s418 + $0x170] sm:$0xff] %v511
                  %v513 = vld [vmem:[%s417 + $0x278] sm:$0xff]
                  %514 = vst [vmem:[%s418 + $0x178] sm:$0xff] %v513
                  %v515 = vld [vmem:[%s417 + $0x300] sm:$0xff]
                  %516 = vst [vmem:[%s418 + $0x180] sm:$0xff] %v515
                  %v517 = vld [vmem:[%s417 + $0x308] sm:$0xff]
                  %518 = vst [vmem:[%s418 + $0x188] sm:$0xff] %v517
                  %v519 = vld [vmem:[%s417 + $0x310] sm:$0xff]
                  %520 = vst [vmem:[%s418 + $0x190] sm:$0xff] %v519
                  %v521 = vld [vmem:[%s417 + $0x318] sm:$0xff]
                  %522 = vst [vmem:[%s418 + $0x198] sm:$0xff] %v521
                  %v523 = vld [vmem:[%s417 + $0x320] sm:$0xff]
                  %524 = vst [vmem:[%s418 + $0x1a0] sm:$0xff] %v523
                  %v525 = vld [vmem:[%s417 + $0x328] sm:$0xff]
                  %526 = vst [vmem:[%s418 + $0x1a8] sm:$0xff] %v525
                  %v527 = vld [vmem:[%s417 + $0x330] sm:$0xff]
                  %528 = vst [vmem:[%s418 + $0x1b0] sm:$0xff] %v527
                  %v529 = vld [vmem:[%s417 + $0x338] sm:$0xff]
                  %530 = vst [vmem:[%s418 + $0x1b8] sm:$0xff] %v529
                  %v531 = vld [vmem:[%s417 + $0x340] sm:$0xff]
                  %532 = vst [vmem:[%s418 + $0x1c0] sm:$0xff] %v531
                  %v533 = vld [vmem:[%s417 + $0x348] sm:$0xff]
                  %534 = vst [vmem:[%s418 + $0x1c8] sm:$0xff] %v533
                  %v535 = vld [vmem:[%s417 + $0x350] sm:$0xff]
                  %536 = vst [vmem:[%s418 + $0x1d0] sm:$0xff] %v535
                  %v537 = vld [vmem:[%s417 + $0x358] sm:$0xff]
                  %538 = vst [vmem:[%s418 + $0x1d8] sm:$0xff] %v537
                  %v539 = vld [vmem:[%s417 + $0x360] sm:$0xff]
                  %540 = vst [vmem:[%s418 + $0x1e0] sm:$0xff] %v539
                  %v541 = vld [vmem:[%s417 + $0x368] sm:$0xff]
                  %542 = vst [vmem:[%s418 + $0x1e8] sm:$0xff] %v541
                  %v543 = vld [vmem:[%s417 + $0x370] sm:$0xff]
                  %544 = vst [vmem:[%s418 + $0x1f0] sm:$0xff] %v543
                  %v545 = vld [vmem:[%s417 + $0x378] sm:$0xff]
                  %546 = vst [vmem:[%s418 + $0x1f8] sm:$0xff] %v545
                  %v547 = vld [vmem:[%s417 + $0x400] sm:$0xff]
                  %548 = vst [vmem:[%s418 + $0x200] sm:$0xff] %v547
                  %v549 = vld [vmem:[%s417 + $0x408] sm:$0xff]
                  %550 = vst [vmem:[%s418 + $0x208] sm:$0xff] %v549
                  %v551 = vld [vmem:[%s417 + $0x410] sm:$0xff]
                  %552 = vst [vmem:[%s418 + $0x210] sm:$0xff] %v551
                  %v553 = vld [vmem:[%s417 + $0x418] sm:$0xff]
                  %554 = vst [vmem:[%s418 + $0x218] sm:$0xff] %v553
                  %v555 = vld [vmem:[%s417 + $0x420] sm:$0xff]
                  %556 = vst [vmem:[%s418 + $0x220] sm:$0xff] %v555
                  %v557 = vld [vmem:[%s417 + $0x428] sm:$0xff]
                  %558 = vst [vmem:[%s418 + $0x228] sm:$0xff] %v557
                  %v559 = vld [vmem:[%s417 + $0x430] sm:$0xff]
                  %560 = vst [vmem:[%s418 + $0x230] sm:$0xff] %v559
                  %v561 = vld [vmem:[%s417 + $0x438] sm:$0xff]
                  %562 = vst [vmem:[%s418 + $0x238] sm:$0xff] %v561
                  %v563 = vld [vmem:[%s417 + $0x440] sm:$0xff]
                  %564 = vst [vmem:[%s418 + $0x240] sm:$0xff] %v563
                  %v565 = vld [vmem:[%s417 + $0x448] sm:$0xff]
                  %566 = vst [vmem:[%s418 + $0x248] sm:$0xff] %v565
                  %v567 = vld [vmem:[%s417 + $0x450] sm:$0xff]
                  %568 = vst [vmem:[%s418 + $0x250] sm:$0xff] %v567
                  %v569 = vld [vmem:[%s417 + $0x458] sm:$0xff]
                  %570 = vst [vmem:[%s418 + $0x258] sm:$0xff] %v569
                  %v571 = vld [vmem:[%s417 + $0x460] sm:$0xff]
                  %572 = vst [vmem:[%s418 + $0x260] sm:$0xff] %v571
                  %v573 = vld [vmem:[%s417 + $0x468] sm:$0xff]
                  %574 = vst [vmem:[%s418 + $0x268] sm:$0xff] %v573
                  %v575 = vld [vmem:[%s417 + $0x470] sm:$0xff]
                  %576 = vst [vmem:[%s418 + $0x270] sm:$0xff] %v575
                  %v577 = vld [vmem:[%s417 + $0x478] sm:$0xff]
                  %578 = vst [vmem:[%s418 + $0x278] sm:$0xff] %v577
                  %v579 = vld [vmem:[%s417 + $0x500] sm:$0xff]
                  %580 = vst [vmem:[%s418 + $0x280] sm:$0xff] %v579
                  %v581 = vld [vmem:[%s417 + $0x508] sm:$0xff]
                  %582 = vst [vmem:[%s418 + $0x288] sm:$0xff] %v581
                  %v583 = vld [vmem:[%s417 + $0x510] sm:$0xff]
                  %584 = vst [vmem:[%s418 + $0x290] sm:$0xff] %v583
                  %v585 = vld [vmem:[%s417 + $0x518] sm:$0xff]
                  %586 = vst [vmem:[%s418 + $0x298] sm:$0xff] %v585
                  %v587 = vld [vmem:[%s417 + $0x520] sm:$0xff]
                  %588 = vst [vmem:[%s418 + $0x2a0] sm:$0xff] %v587
                  %v589 = vld [vmem:[%s417 + $0x528] sm:$0xff]
                  %590 = vst [vmem:[%s418 + $0x2a8] sm:$0xff] %v589
                  %v591 = vld [vmem:[%s417 + $0x530] sm:$0xff]
                  %592 = vst [vmem:[%s418 + $0x2b0] sm:$0xff] %v591
                  %v593 = vld [vmem:[%s417 + $0x538] sm:$0xff]
                  %594 = vst [vmem:[%s418 + $0x2b8] sm:$0xff] %v593
                  %v595 = vld [vmem:[%s417 + $0x540] sm:$0xff]
                  %596 = vst [vmem:[%s418 + $0x2c0] sm:$0xff] %v595
                  %v597 = vld [vmem:[%s417 + $0x548] sm:$0xff]
                  %598 = vst [vmem:[%s418 + $0x2c8] sm:$0xff] %v597
                  %v599 = vld [vmem:[%s417 + $0x550] sm:$0xff]
                  %600 = vst [vmem:[%s418 + $0x2d0] sm:$0xff] %v599
                  %v601 = vld [vmem:[%s417 + $0x558] sm:$0xff]
                  %602 = vst [vmem:[%s418 + $0x2d8] sm:$0xff] %v601
                  %v603 = vld [vmem:[%s417 + $0x560] sm:$0xff]
                  %604 = vst [vmem:[%s418 + $0x2e0] sm:$0xff] %v603
                  %v605 = vld [vmem:[%s417 + $0x568] sm:$0xff]
                  %606 = vst [vmem:[%s418 + $0x2e8] sm:$0xff] %v605
                  %v607 = vld [vmem:[%s417 + $0x570] sm:$0xff]
                  %608 = vst [vmem:[%s418 + $0x2f0] sm:$0xff] %v607
                  %v609 = vld [vmem:[%s417 + $0x578] sm:$0xff]
                  %610 = vst [vmem:[%s418 + $0x2f8] sm:$0xff] %v609
                  %v611 = vld [vmem:[%s417 + $0x600] sm:$0xff]
                  %612 = vst [vmem:[%s418 + $0x300] sm:$0xff] %v611
                  %v613 = vld [vmem:[%s417 + $0x608] sm:$0xff]
                  %614 = vst [vmem:[%s418 + $0x308] sm:$0xff] %v613
                  %v615 = vld [vmem:[%s417 + $0x610] sm:$0xff]
                  %616 = vst [vmem:[%s418 + $0x310] sm:$0xff] %v615
                  %v617 = vld [vmem:[%s417 + $0x618] sm:$0xff]
                  %618 = vst [vmem:[%s418 + $0x318] sm:$0xff] %v617
                  %v619 = vld [vmem:[%s417 + $0x620] sm:$0xff]
                  %620 = vst [vmem:[%s418 + $0x320] sm:$0xff] %v619
                  %v621 = vld [vmem:[%s417 + $0x628] sm:$0xff]
                  %622 = vst [vmem:[%s418 + $0x328] sm:$0xff] %v621
                  %v623 = vld [vmem:[%s417 + $0x630] sm:$0xff]
                  %624 = vst [vmem:[%s418 + $0x330] sm:$0xff] %v623
                  %v625 = vld [vmem:[%s417 + $0x638] sm:$0xff]
                  %626 = vst [vmem:[%s418 + $0x338] sm:$0xff] %v625
                  %v627 = vld [vmem:[%s417 + $0x640] sm:$0xff]
                  %628 = vst [vmem:[%s418 + $0x340] sm:$0xff] %v627
                  %v629 = vld [vmem:[%s417 + $0x648] sm:$0xff]
                  %630 = vst [vmem:[%s418 + $0x348] sm:$0xff] %v629
                  %v631 = vld [vmem:[%s417 + $0x650] sm:$0xff]
                  %632 = vst [vmem:[%s418 + $0x350] sm:$0xff] %v631
                  %v633 = vld [vmem:[%s417 + $0x658] sm:$0xff]
                  %634 = vst [vmem:[%s418 + $0x358] sm:$0xff] %v633
                  %v635 = vld [vmem:[%s417 + $0x660] sm:$0xff]
                  %636 = vst [vmem:[%s418 + $0x360] sm:$0xff] %v635
                  %v637 = vld [vmem:[%s417 + $0x668] sm:$0xff]
                  %638 = vst [vmem:[%s418 + $0x368] sm:$0xff] %v637
                  %v639 = vld [vmem:[%s417 + $0x670] sm:$0xff]
                  %640 = vst [vmem:[%s418 + $0x370] sm:$0xff] %v639
                  %v641 = vld [vmem:[%s417 + $0x678] sm:$0xff]
                  %642 = vst [vmem:[%s418 + $0x378] sm:$0xff] %v641
                  %v643 = vld [vmem:[%s417 + $0x700] sm:$0xff]
                  %644 = vst [vmem:[%s418 + $0x380] sm:$0xff] %v643
                  %v645 = vld [vmem:[%s417 + $0x708] sm:$0xff]
                  %646 = vst [vmem:[%s418 + $0x388] sm:$0xff] %v645
                  %v647 = vld [vmem:[%s417 + $0x710] sm:$0xff]
                  %648 = vst [vmem:[%s418 + $0x390] sm:$0xff] %v647
                  %v649 = vld [vmem:[%s417 + $0x718] sm:$0xff]
                  %650 = vst [vmem:[%s418 + $0x398] sm:$0xff] %v649
                  %v651 = vld [vmem:[%s417 + $0x720] sm:$0xff]
                  %652 = vst [vmem:[%s418 + $0x3a0] sm:$0xff] %v651
                  %v653 = vld [vmem:[%s417 + $0x728] sm:$0xff]
                  %654 = vst [vmem:[%s418 + $0x3a8] sm:$0xff] %v653
                  %v655 = vld [vmem:[%s417 + $0x730] sm:$0xff]
                  %656 = vst [vmem:[%s418 + $0x3b0] sm:$0xff] %v655
                  %v657 = vld [vmem:[%s417 + $0x738] sm:$0xff]
                  %658 = vst [vmem:[%s418 + $0x3b8] sm:$0xff] %v657
                  %v659 = vld [vmem:[%s417 + $0x740] sm:$0xff]
                  %660 = vst [vmem:[%s418 + $0x3c0] sm:$0xff] %v659
                  %v661 = vld [vmem:[%s417 + $0x748] sm:$0xff]
                  %662 = vst [vmem:[%s418 + $0x3c8] sm:$0xff] %v661
                  %v663 = vld [vmem:[%s417 + $0x750] sm:$0xff]
                  %664 = vst [vmem:[%s418 + $0x3d0] sm:$0xff] %v663
                  %v665 = vld [vmem:[%s417 + $0x758] sm:$0xff]
                  %666 = vst [vmem:[%s418 + $0x3d8] sm:$0xff] %v665
                  %v667 = vld [vmem:[%s417 + $0x760] sm:$0xff]
                  %668 = vst [vmem:[%s418 + $0x3e0] sm:$0xff] %v667
                  %v669 = vld [vmem:[%s417 + $0x768] sm:$0xff]
                  %670 = vst [vmem:[%s418 + $0x3e8] sm:$0xff] %v669
                  %v671 = vld [vmem:[%s417 + $0x770] sm:$0xff]
                  %672 = vst [vmem:[%s418 + $0x3f0] sm:$0xff] %v671
                  %v673 = vld [vmem:[%s417 + $0x778] sm:$0xff]
                  %674 = vst [vmem:[%s418 + $0x3f8] sm:$0xff] %v673
                $region48: #{tpu_custom_call.1} parent=42 // loop_footer
                  %s416 = sadd.s32 1, %s412
                $region49: #{tpu_custom_call.1} parent=42 // loop_footer_branch
                  %411 = sbr.rel target = $region45
                $region50: #{tpu_custom_call.1} parent=42 // loop_exit
                  _
              $region43: #{tpu_custom_call.1} parent=27 // pred_fallthru
                _
              // Predicated region
              $region51: #{tpu_custom_call.1} parent=27 // pred_check
                _
              $region52: #{tpu_custom_call.1} parent=27 // pred_check_branch
                %676 = sbr.rel target = $region54
              $region53: #{tpu_custom_call.1} parent=27 // pred_region
                _
              $region54: #{tpu_custom_call.1} parent=27 // pred_fallthru
                _
            $region28: #{tpu_custom_call.1} parent=23 // pred_fallthru
              _
            // Predicated region
            $region29: #{tpu_custom_call.1} parent=23 // pred_check
              _
            $region30: #{tpu_custom_call.1} parent=23 // pred_check_branch
              %142 = sbr.rel target = $region32
            $region31: #{tpu_custom_call.1} parent=23 // pred_region
              %s144 = ssub.s32 256, 1
              loop: start=0, step=1, limit=1
              $region33: #{tpu_custom_call.1} parent=31 // loop_pre_header
                _
              $region34: #{tpu_custom_call.1} parent=31 // loop_header
                %s146 = sphi 0, %s150
                %p147 = scmp.ge.s32.totalorder %s146, 1
                %s151 = sphi %s136, %s136
                %s152 = sphi %s130, %s130
              $region35: #{tpu_custom_call.1} parent=31 // loop_header_branch
                %149 = sbr.rel (%p147) target = $region39
              $region36: #{tpu_custom_call.1} parent=31 // loop_body
                %v153 = vld [vmem:[%s151] sm:%s144]
                %154 = vst [vmem:[%s152] sm:%s144] %v153
                %v155 = vld [vmem:[%s151 + $0x8] sm:%s144]
                %156 = vst [vmem:[%s152 + $0x8] sm:%s144] %v155
                %v157 = vld [vmem:[%s151 + $0x10] sm:%s144]
                %158 = vst [vmem:[%s152 + $0x10] sm:%s144] %v157
                %v159 = vld [vmem:[%s151 + $0x18] sm:%s144]
                %160 = vst [vmem:[%s152 + $0x18] sm:%s144] %v159
                %v161 = vld [vmem:[%s151 + $0x20] sm:%s144]
                %162 = vst [vmem:[%s152 + $0x20] sm:%s144] %v161
                %v163 = vld [vmem:[%s151 + $0x28] sm:%s144]
                %164 = vst [vmem:[%s152 + $0x28] sm:%s144] %v163
                %v165 = vld [vmem:[%s151 + $0x30] sm:%s144]
                %166 = vst [vmem:[%s152 + $0x30] sm:%s144] %v165
                %v167 = vld [vmem:[%s151 + $0x38] sm:%s144]
                %168 = vst [vmem:[%s152 + $0x38] sm:%s144] %v167
                %v169 = vld [vmem:[%s151 + $0x40] sm:%s144]
                %170 = vst [vmem:[%s152 + $0x40] sm:%s144] %v169
                %v171 = vld [vmem:[%s151 + $0x48] sm:%s144]
                %172 = vst [vmem:[%s152 + $0x48] sm:%s144] %v171
                %v173 = vld [vmem:[%s151 + $0x50] sm:%s144]
                %174 = vst [vmem:[%s152 + $0x50] sm:%s144] %v173
                %v175 = vld [vmem:[%s151 + $0x58] sm:%s144]
                %176 = vst [vmem:[%s152 + $0x58] sm:%s144] %v175
                %v177 = vld [vmem:[%s151 + $0x60] sm:%s144]
                %178 = vst [vmem:[%s152 + $0x60] sm:%s144] %v177
                %v179 = vld [vmem:[%s151 + $0x68] sm:%s144]
                %180 = vst [vmem:[%s152 + $0x68] sm:%s144] %v179
                %v181 = vld [vmem:[%s151 + $0x70] sm:%s144]
                %182 = vst [vmem:[%s152 + $0x70] sm:%s144] %v181
                %v183 = vld [vmem:[%s151 + $0x78] sm:%s144]
                %184 = vst [vmem:[%s152 + $0x78] sm:%s144] %v183
                %v185 = vld [vmem:[%s151 + $0x100] sm:%s144]
                %186 = vst [vmem:[%s152 + $0x80] sm:%s144] %v185
                %v187 = vld [vmem:[%s151 + $0x108] sm:%s144]
                %188 = vst [vmem:[%s152 + $0x88] sm:%s144] %v187
                %v189 = vld [vmem:[%s151 + $0x110] sm:%s144]
                %190 = vst [vmem:[%s152 + $0x90] sm:%s144] %v189
                %v191 = vld [vmem:[%s151 + $0x118] sm:%s144]
                %192 = vst [vmem:[%s152 + $0x98] sm:%s144] %v191
                %v193 = vld [vmem:[%s151 + $0x120] sm:%s144]
                %194 = vst [vmem:[%s152 + $0xa0] sm:%s144] %v193
                %v195 = vld [vmem:[%s151 + $0x128] sm:%s144]
                %196 = vst [vmem:[%s152 + $0xa8] sm:%s144] %v195
                %v197 = vld [vmem:[%s151 + $0x130] sm:%s144]
                %198 = vst [vmem:[%s152 + $0xb0] sm:%s144] %v197
                %v199 = vld [vmem:[%s151 + $0x138] sm:%s144]
                %200 = vst [vmem:[%s152 + $0xb8] sm:%s144] %v199
                %v201 = vld [vmem:[%s151 + $0x140] sm:%s144]
                %202 = vst [vmem:[%s152 + $0xc0] sm:%s144] %v201
                %v203 = vld [vmem:[%s151 + $0x148] sm:%s144]
                %204 = vst [vmem:[%s152 + $0xc8] sm:%s144] %v203
                %v205 = vld [vmem:[%s151 + $0x150] sm:%s144]
                %206 = vst [vmem:[%s152 + $0xd0] sm:%s144] %v205
                %v207 = vld [vmem:[%s151 + $0x158] sm:%s144]
                %208 = vst [vmem:[%s152 + $0xd8] sm:%s144] %v207
                %v209 = vld [vmem:[%s151 + $0x160] sm:%s144]
                %210 = vst [vmem:[%s152 + $0xe0] sm:%s144] %v209
                %v211 = vld [vmem:[%s151 + $0x168] sm:%s144]
                %212 = vst [vmem:[%s152 + $0xe8] sm:%s144] %v211
                %v213 = vld [vmem:[%s151 + $0x170] sm:%s144]
                %214 = vst [vmem:[%s152 + $0xf0] sm:%s144] %v213
                %v215 = vld [vmem:[%s151 + $0x178] sm:%s144]
                %216 = vst [vmem:[%s152 + $0xf8] sm:%s144] %v215
                %v217 = vld [vmem:[%s151 + $0x200] sm:%s144]
                %218 = vst [vmem:[%s152 + $0x100] sm:%s144] %v217
                %v219 = vld [vmem:[%s151 + $0x208] sm:%s144]
                %220 = vst [vmem:[%s152 + $0x108] sm:%s144] %v219
                %v221 = vld [vmem:[%s151 + $0x210] sm:%s144]
                %222 = vst [vmem:[%s152 + $0x110] sm:%s144] %v221
                %v223 = vld [vmem:[%s151 + $0x218] sm:%s144]
                %224 = vst [vmem:[%s152 + $0x118] sm:%s144] %v223
                %v225 = vld [vmem:[%s151 + $0x220] sm:%s144]
                %226 = vst [vmem:[%s152 + $0x120] sm:%s144] %v225
                %v227 = vld [vmem:[%s151 + $0x228] sm:%s144]
                %228 = vst [vmem:[%s152 + $0x128] sm:%s144] %v227
                %v229 = vld [vmem:[%s151 + $0x230] sm:%s144]
                %230 = vst [vmem:[%s152 + $0x130] sm:%s144] %v229
                %v231 = vld [vmem:[%s151 + $0x238] sm:%s144]
                %232 = vst [vmem:[%s152 + $0x138] sm:%s144] %v231
                %v233 = vld [vmem:[%s151 + $0x240] sm:%s144]
                %234 = vst [vmem:[%s152 + $0x140] sm:%s144] %v233
                %v235 = vld [vmem:[%s151 + $0x248] sm:%s144]
                %236 = vst [vmem:[%s152 + $0x148] sm:%s144] %v235
                %v237 = vld [vmem:[%s151 + $0x250] sm:%s144]
                %238 = vst [vmem:[%s152 + $0x150] sm:%s144] %v237
                %v239 = vld [vmem:[%s151 + $0x258] sm:%s144]
                %240 = vst [vmem:[%s152 + $0x158] sm:%s144] %v239
                %v241 = vld [vmem:[%s151 + $0x260] sm:%s144]
                %242 = vst [vmem:[%s152 + $0x160] sm:%s144] %v241
                %v243 = vld [vmem:[%s151 + $0x268] sm:%s144]
                %244 = vst [vmem:[%s152 + $0x168] sm:%s144] %v243
                %v245 = vld [vmem:[%s151 + $0x270] sm:%s144]
                %246 = vst [vmem:[%s152 + $0x170] sm:%s144] %v245
                %v247 = vld [vmem:[%s151 + $0x278] sm:%s144]
                %248 = vst [vmem:[%s152 + $0x178] sm:%s144] %v247
                %v249 = vld [vmem:[%s151 + $0x300] sm:%s144]
                %250 = vst [vmem:[%s152 + $0x180] sm:%s144] %v249
                %v251 = vld [vmem:[%s151 + $0x308] sm:%s144]
                %252 = vst [vmem:[%s152 + $0x188] sm:%s144] %v251
                %v253 = vld [vmem:[%s151 + $0x310] sm:%s144]
                %254 = vst [vmem:[%s152 + $0x190] sm:%s144] %v253
                %v255 = vld [vmem:[%s151 + $0x318] sm:%s144]
                %256 = vst [vmem:[%s152 + $0x198] sm:%s144] %v255
                %v257 = vld [vmem:[%s151 + $0x320] sm:%s144]
                %258 = vst [vmem:[%s152 + $0x1a0] sm:%s144] %v257
                %v259 = vld [vmem:[%s151 + $0x328] sm:%s144]
                %260 = vst [vmem:[%s152 + $0x1a8] sm:%s144] %v259
                %v261 = vld [vmem:[%s151 + $0x330] sm:%s144]
                %262 = vst [vmem:[%s152 + $0x1b0] sm:%s144] %v261
                %v263 = vld [vmem:[%s151 + $0x338] sm:%s144]
                %264 = vst [vmem:[%s152 + $0x1b8] sm:%s144] %v263
                %v265 = vld [vmem:[%s151 + $0x340] sm:%s144]
                %266 = vst [vmem:[%s152 + $0x1c0] sm:%s144] %v265
                %v267 = vld [vmem:[%s151 + $0x348] sm:%s144]
                %268 = vst [vmem:[%s152 + $0x1c8] sm:%s144] %v267
                %v269 = vld [vmem:[%s151 + $0x350] sm:%s144]
                %270 = vst [vmem:[%s152 + $0x1d0] sm:%s144] %v269
                %v271 = vld [vmem:[%s151 + $0x358] sm:%s144]
                %272 = vst [vmem:[%s152 + $0x1d8] sm:%s144] %v271
                %v273 = vld [vmem:[%s151 + $0x360] sm:%s144]
                %274 = vst [vmem:[%s152 + $0x1e0] sm:%s144] %v273
                %v275 = vld [vmem:[%s151 + $0x368] sm:%s144]
                %276 = vst [vmem:[%s152 + $0x1e8] sm:%s144] %v275
                %v277 = vld [vmem:[%s151 + $0x370] sm:%s144]
                %278 = vst [vmem:[%s152 + $0x1f0] sm:%s144] %v277
                %v279 = vld [vmem:[%s151 + $0x378] sm:%s144]
                %280 = vst [vmem:[%s152 + $0x1f8] sm:%s144] %v279
                %v281 = vld [vmem:[%s151 + $0x400] sm:%s144]
                %282 = vst [vmem:[%s152 + $0x200] sm:%s144] %v281
                %v283 = vld [vmem:[%s151 + $0x408] sm:%s144]
                %284 = vst [vmem:[%s152 + $0x208] sm:%s144] %v283
                %v285 = vld [vmem:[%s151 + $0x410] sm:%s144]
                %286 = vst [vmem:[%s152 + $0x210] sm:%s144] %v285
                %v287 = vld [vmem:[%s151 + $0x418] sm:%s144]
                %288 = vst [vmem:[%s152 + $0x218] sm:%s144] %v287
                %v289 = vld [vmem:[%s151 + $0x420] sm:%s144]
                %290 = vst [vmem:[%s152 + $0x220] sm:%s144] %v289
                %v291 = vld [vmem:[%s151 + $0x428] sm:%s144]
                %292 = vst [vmem:[%s152 + $0x228] sm:%s144] %v291
                %v293 = vld [vmem:[%s151 + $0x430] sm:%s144]
                %294 = vst [vmem:[%s152 + $0x230] sm:%s144] %v293
                %v295 = vld [vmem:[%s151 + $0x438] sm:%s144]
                %296 = vst [vmem:[%s152 + $0x238] sm:%s144] %v295
                %v297 = vld [vmem:[%s151 + $0x440] sm:%s144]
                %298 = vst [vmem:[%s152 + $0x240] sm:%s144] %v297
                %v299 = vld [vmem:[%s151 + $0x448] sm:%s144]
                %300 = vst [vmem:[%s152 + $0x248] sm:%s144] %v299
                %v301 = vld [vmem:[%s151 + $0x450] sm:%s144]
                %302 = vst [vmem:[%s152 + $0x250] sm:%s144] %v301
                %v303 = vld [vmem:[%s151 + $0x458] sm:%s144]
                %304 = vst [vmem:[%s152 + $0x258] sm:%s144] %v303
                %v305 = vld [vmem:[%s151 + $0x460] sm:%s144]
                %306 = vst [vmem:[%s152 + $0x260] sm:%s144] %v305
                %v307 = vld [vmem:[%s151 + $0x468] sm:%s144]
                %308 = vst [vmem:[%s152 + $0x268] sm:%s144] %v307
                %v309 = vld [vmem:[%s151 + $0x470] sm:%s144]
                %310 = vst [vmem:[%s152 + $0x270] sm:%s144] %v309
                %v311 = vld [vmem:[%s151 + $0x478] sm:%s144]
                %312 = vst [vmem:[%s152 + $0x278] sm:%s144] %v311
                %v313 = vld [vmem:[%s151 + $0x500] sm:%s144]
                %314 = vst [vmem:[%s152 + $0x280] sm:%s144] %v313
                %v315 = vld [vmem:[%s151 + $0x508] sm:%s144]
                %316 = vst [vmem:[%s152 + $0x288] sm:%s144] %v315
                %v317 = vld [vmem:[%s151 + $0x510] sm:%s144]
                %318 = vst [vmem:[%s152 + $0x290] sm:%s144] %v317
                %v319 = vld [vmem:[%s151 + $0x518] sm:%s144]
                %320 = vst [vmem:[%s152 + $0x298] sm:%s144] %v319
                %v321 = vld [vmem:[%s151 + $0x520] sm:%s144]
                %322 = vst [vmem:[%s152 + $0x2a0] sm:%s144] %v321
                %v323 = vld [vmem:[%s151 + $0x528] sm:%s144]
                %324 = vst [vmem:[%s152 + $0x2a8] sm:%s144] %v323
                %v325 = vld [vmem:[%s151 + $0x530] sm:%s144]
                %326 = vst [vmem:[%s152 + $0x2b0] sm:%s144] %v325
                %v327 = vld [vmem:[%s151 + $0x538] sm:%s144]
                %328 = vst [vmem:[%s152 + $0x2b8] sm:%s144] %v327
                %v329 = vld [vmem:[%s151 + $0x540] sm:%s144]
                %330 = vst [vmem:[%s152 + $0x2c0] sm:%s144] %v329
                %v331 = vld [vmem:[%s151 + $0x548] sm:%s144]
                %332 = vst [vmem:[%s152 + $0x2c8] sm:%s144] %v331
                %v333 = vld [vmem:[%s151 + $0x550] sm:%s144]
                %334 = vst [vmem:[%s152 + $0x2d0] sm:%s144] %v333
                %v335 = vld [vmem:[%s151 + $0x558] sm:%s144]
                %336 = vst [vmem:[%s152 + $0x2d8] sm:%s144] %v335
                %v337 = vld [vmem:[%s151 + $0x560] sm:%s144]
                %338 = vst [vmem:[%s152 + $0x2e0] sm:%s144] %v337
                %v339 = vld [vmem:[%s151 + $0x568] sm:%s144]
                %340 = vst [vmem:[%s152 + $0x2e8] sm:%s144] %v339
                %v341 = vld [vmem:[%s151 + $0x570] sm:%s144]
                %342 = vst [vmem:[%s152 + $0x2f0] sm:%s144] %v341
                %v343 = vld [vmem:[%s151 + $0x578] sm:%s144]
                %344 = vst [vmem:[%s152 + $0x2f8] sm:%s144] %v343
                %v345 = vld [vmem:[%s151 + $0x600] sm:%s144]
                %346 = vst [vmem:[%s152 + $0x300] sm:%s144] %v345
                %v347 = vld [vmem:[%s151 + $0x608] sm:%s144]
                %348 = vst [vmem:[%s152 + $0x308] sm:%s144] %v347
                %v349 = vld [vmem:[%s151 + $0x610] sm:%s144]
                %350 = vst [vmem:[%s152 + $0x310] sm:%s144] %v349
                %v351 = vld [vmem:[%s151 + $0x618] sm:%s144]
                %352 = vst [vmem:[%s152 + $0x318] sm:%s144] %v351
                %v353 = vld [vmem:[%s151 + $0x620] sm:%s144]
                %354 = vst [vmem:[%s152 + $0x320] sm:%s144] %v353
                %v355 = vld [vmem:[%s151 + $0x628] sm:%s144]
                %356 = vst [vmem:[%s152 + $0x328] sm:%s144] %v355
                %v357 = vld [vmem:[%s151 + $0x630] sm:%s144]
                %358 = vst [vmem:[%s152 + $0x330] sm:%s144] %v357
                %v359 = vld [vmem:[%s151 + $0x638] sm:%s144]
                %360 = vst [vmem:[%s152 + $0x338] sm:%s144] %v359
                %v361 = vld [vmem:[%s151 + $0x640] sm:%s144]
                %362 = vst [vmem:[%s152 + $0x340] sm:%s144] %v361
                %v363 = vld [vmem:[%s151 + $0x648] sm:%s144]
                %364 = vst [vmem:[%s152 + $0x348] sm:%s144] %v363
                %v365 = vld [vmem:[%s151 + $0x650] sm:%s144]
                %366 = vst [vmem:[%s152 + $0x350] sm:%s144] %v365
                %v367 = vld [vmem:[%s151 + $0x658] sm:%s144]
                %368 = vst [vmem:[%s152 + $0x358] sm:%s144] %v367
                %v369 = vld [vmem:[%s151 + $0x660] sm:%s144]
                %370 = vst [vmem:[%s152 + $0x360] sm:%s144] %v369
                %v371 = vld [vmem:[%s151 + $0x668] sm:%s144]
                %372 = vst [vmem:[%s152 + $0x368] sm:%s144] %v371
                %v373 = vld [vmem:[%s151 + $0x670] sm:%s144]
                %374 = vst [vmem:[%s152 + $0x370] sm:%s144] %v373
                %v375 = vld [vmem:[%s151 + $0x678] sm:%s144]
                %376 = vst [vmem:[%s152 + $0x378] sm:%s144] %v375
                %v377 = vld [vmem:[%s151 + $0x700] sm:%s144]
                %378 = vst [vmem:[%s152 + $0x380] sm:%s144] %v377
                %v379 = vld [vmem:[%s151 + $0x708] sm:%s144]
                %380 = vst [vmem:[%s152 + $0x388] sm:%s144] %v379
                %v381 = vld [vmem:[%s151 + $0x710] sm:%s144]
                %382 = vst [vmem:[%s152 + $0x390] sm:%s144] %v381
                %v383 = vld [vmem:[%s151 + $0x718] sm:%s144]
                %384 = vst [vmem:[%s152 + $0x398] sm:%s144] %v383
                %v385 = vld [vmem:[%s151 + $0x720] sm:%s144]
                %386 = vst [vmem:[%s152 + $0x3a0] sm:%s144] %v385
                %v387 = vld [vmem:[%s151 + $0x728] sm:%s144]
                %388 = vst [vmem:[%s152 + $0x3a8] sm:%s144] %v387
                %v389 = vld [vmem:[%s151 + $0x730] sm:%s144]
                %390 = vst [vmem:[%s152 + $0x3b0] sm:%s144] %v389
                %v391 = vld [vmem:[%s151 + $0x738] sm:%s144]
                %392 = vst [vmem:[%s152 + $0x3b8] sm:%s144] %v391
                %v393 = vld [vmem:[%s151 + $0x740] sm:%s144]
                %394 = vst [vmem:[%s152 + $0x3c0] sm:%s144] %v393
                %v395 = vld [vmem:[%s151 + $0x748] sm:%s144]
                %396 = vst [vmem:[%s152 + $0x3c8] sm:%s144] %v395
                %v397 = vld [vmem:[%s151 + $0x750] sm:%s144]
                %398 = vst [vmem:[%s152 + $0x3d0] sm:%s144] %v397
                %v399 = vld [vmem:[%s151 + $0x758] sm:%s144]
                %400 = vst [vmem:[%s152 + $0x3d8] sm:%s144] %v399
                %v401 = vld [vmem:[%s151 + $0x760] sm:%s144]
                %402 = vst [vmem:[%s152 + $0x3e0] sm:%s144] %v401
                %v403 = vld [vmem:[%s151 + $0x768] sm:%s144]
                %404 = vst [vmem:[%s152 + $0x3e8] sm:%s144] %v403
                %v405 = vld [vmem:[%s151 + $0x770] sm:%s144]
                %406 = vst [vmem:[%s152 + $0x3f0] sm:%s144] %v405
                %v407 = vld [vmem:[%s151 + $0x778] sm:%s144]
                %408 = vst [vmem:[%s152 + $0x3f8] sm:%s144] %v407
              $region37: #{tpu_custom_call.1} parent=31 // loop_footer
                %s150 = sadd.s32 1, %s146
              $region38: #{tpu_custom_call.1} parent=31 // loop_footer_branch
                %145 = sbr.rel target = $region34
              $region39: #{tpu_custom_call.1} parent=31 // loop_exit
                _
            $region32: #{tpu_custom_call.1} parent=23 // pred_fallthru
              _
          $region24: #{tpu_custom_call.1} parent=19 // pred_fallthru
            _
          %677 = vnop
        $region20: #{tpu_custom_call.1} parent=15 // pred_fallthru
          _
        // Predicated region
        $region55: #{tpu_custom_call.1} parent=15 // pred_check
          %p678 = pneg %p73
        $region56: #{tpu_custom_call.1} parent=15 // pred_check_branch
          %680 = sbr.rel (%p678) target = $region58
        $region57: #{tpu_custom_call.1} parent=15 // pred_region
          %p681 = scmp.lt.s32.totalorder %s18, 1
          %s682 = scalar_select %p681, %s18, 1
          %p683 = scmp.lt.s32.totalorder %s19, 1
          %s684 = scalar_select %p683, %s19, 1
          %s685 = smul.addr %s682, 2
          %s686 = sadd.s32 %s684, %s685
          %s687 = smul.addr %s686, 8
          %s688 = scalar_lea.vmem %s1, %s687
        $region58: #{tpu_custom_call.1} parent=15 // pred_fallthru
          _
      $region16: #{tpu_custom_call.1} parent=5 // pred_fallthru
        _
      %p689 = scmp.le.s32.totalorder 1, %s11
      %p690 = scmp.lt.s32.totalorder %s11, 5
      %p691 = pnand %p689, %p690
      %p692 = pneg %p691
      // Predicated region
      $region59: #{tpu_custom_call.1} parent=5 // pred_check
        _
      $region60: #{tpu_custom_call.1} parent=5 // pred_check_branch
        %694 = sbr.rel (%p691) target = $region62
      $region61: #{tpu_custom_call.1} parent=5 // pred_region
        %s695 = ssub.s32 %s11, 1
        %s696 = sand.u32 %s38, 1
        %s697 = sand.u32 %s38, 1
        %s698 = smul.addr %s697, 1024
        %s699 = scalar_lea.vmem [#allocation4], %s698
        // Predicated region
        $region63: #{tpu_custom_call.1} parent=61 // pred_check
          %p700 = pneg %p51
        $region64: #{tpu_custom_call.1} parent=61 // pred_check_branch
          %702 = sbr.rel (%p700) target = $region66
        $region65: #{tpu_custom_call.1} parent=61 // pred_region
          _
        $region66: #{tpu_custom_call.1} parent=61 // pred_fallthru
          _
        %s703 = sand.u32 %s38, 1
        %s704 = sand.u32 %s38, 1
        %s705 = smul.addr %s704, 1024
        %s706 = scalar_lea.vmem [#allocation4], %s705
        %p707 = pneg %p51
        %p708 = pneg %p48
        %p709 = scmp.lt.s32.totalorder %s20, 1
        %s710 = scalar_select %p709, %s20, 1
        %p711 = scmp.lt.s32.totalorder %s21, 1
        %s712 = scalar_select %p711, %s21, 1
        %s713 = smul.addr %s710, 2
        %s714 = sadd.s32 %s712, %s713
        %s715 = smul.addr %s714, 8
        %s716 = scalar_lea.vmem %s1, %s715
        %p717 = pneg %p79
        %p718 = pneg %p76
        %p719 = pneg %p105
        %p720 = pneg %p102
        %s721 = sand.u32 %s92, 1
        %s722 = scalar_lea.sflag [#allocation6], %s721
        %s723 = sand.u32 %s92, 1
        %s724 = smul.addr %s723, 8
        %s725 = scalar_lea.vmem [#allocation5], %s724
        %s726 = smul.u32 8, %s20
        %s727 = smul.u32 16, %s21
        %p728 = scmp.lt.s32.totalorder %s20, 1
        %s729 = scalar_select %p728, %s20, 1
        %p730 = scmp.lt.s32.totalorder %s21, 1
        %s731 = scalar_select %p730, %s21, 1
        %s732 = smul.addr %s729, 2
        %s733 = sadd.s32 %s731, %s732
        %s734 = smul.addr %s733, 8
        %s735 = scalar_lea.vmem %s1, %s734
        %p736 = scmp.eq.s32.totalorder %s21, 0
        // Predicated region
        $region67: #{tpu_custom_call.1} parent=61 // pred_check
          %p737 = pneg %p736
        $region68: #{tpu_custom_call.1} parent=61 // pred_check_branch
          %739 = sbr.rel (%p737) target = $region70
        $region69: #{tpu_custom_call.1} parent=61 // pred_region
          %vm740 = vcmask 523264
          %741 = vst.msk [vmem:[#allocation2] sm:$0xff] %vm740, 0.0
          %vm742 = vcmask 7168
          %743 = vst.msk [vmem:[#allocation3] sm:$0xff] %vm742, 0.0
        $region70: #{tpu_custom_call.1} parent=61 // pred_fallthru
          _
        %v744 = vld [vmem:[%s699] sm:$0xff]
        %v745 = vld [vmem:[%s699 + $0x8] sm:$0xff]
        %v746 = vld [vmem:[%s699 + $0x10] sm:$0xff]
        %v747 = vld [vmem:[%s699 + $0x18] sm:$0xff]
        %v748 = vld [vmem:[%s699 + $0x20] sm:$0xff]
        %v749 = vld [vmem:[%s699 + $0x28] sm:$0xff]
        %v750 = vld [vmem:[%s699 + $0x30] sm:$0xff]
        %v751 = vld [vmem:[%s699 + $0x38] sm:$0xff]
        %v752 = vld [vmem:[%s699 + $0x40] sm:$0xff]
        %v753 = vld [vmem:[%s699 + $0x48] sm:$0xff]
        %v754 = vld [vmem:[%s699 + $0x50] sm:$0xff]
        %v755 = vld [vmem:[%s699 + $0x58] sm:$0xff]
        %v756 = vld [vmem:[%s699 + $0x60] sm:$0xff]
        %v757 = vld [vmem:[%s699 + $0x68] sm:$0xff]
        %v758 = vld [vmem:[%s699 + $0x70] sm:$0xff]
        %v759 = vld [vmem:[%s699 + $0x78] sm:$0xff]
        %v760 = vld [vmem:[%s699 + $0x80] sm:$0xff]
        %v761 = vld [vmem:[%s699 + $0x88] sm:$0xff]
        %v762 = vld [vmem:[%s699 + $0x90] sm:$0xff]
        %v763 = vld [vmem:[%s699 + $0x98] sm:$0xff]
        %v764 = vld [vmem:[%s699 + $0xa0] sm:$0xff]
        %v765 = vld [vmem:[%s699 + $0xa8] sm:$0xff]
        %v766 = vld [vmem:[%s699 + $0xb0] sm:$0xff]
        %v767 = vld [vmem:[%s699 + $0xb8] sm:$0xff]
        %v768 = vld [vmem:[%s699 + $0xc0] sm:$0xff]
        %v769 = vld [vmem:[%s699 + $0xc8] sm:$0xff]
        %v770 = vld [vmem:[%s699 + $0xd0] sm:$0xff]
        %v771 = vld [vmem:[%s699 + $0xd8] sm:$0xff]
        %v772 = vld [vmem:[%s699 + $0xe0] sm:$0xff]
        %v773 = vld [vmem:[%s699 + $0xe8] sm:$0xff]
        %v774 = vld [vmem:[%s699 + $0xf0] sm:$0xff]
        %v775 = vld [vmem:[%s699 + $0xf8] sm:$0xff]
        %v776 = vld [vmem:[%s699 + $0x100] sm:$0xff]
        %v777 = vld [vmem:[%s699 + $0x108] sm:$0xff]
        %v778 = vld [vmem:[%s699 + $0x110] sm:$0xff]
        %v779 = vld [vmem:[%s699 + $0x118] sm:$0xff]
        %v780 = vld [vmem:[%s699 + $0x120] sm:$0xff]
        %v781 = vld [vmem:[%s699 + $0x128] sm:$0xff]
        %v782 = vld [vmem:[%s699 + $0x130] sm:$0xff]
        %v783 = vld [vmem:[%s699 + $0x138] sm:$0xff]
        %v784 = vld [vmem:[%s699 + $0x140] sm:$0xff]
        %v785 = vld [vmem:[%s699 + $0x148] sm:$0xff]
        %v786 = vld [vmem:[%s699 + $0x150] sm:$0xff]
        %v787 = vld [vmem:[%s699 + $0x158] sm:$0xff]
        %v788 = vld [vmem:[%s699 + $0x160] sm:$0xff]
        %v789 = vld [vmem:[%s699 + $0x168] sm:$0xff]
        %v790 = vld [vmem:[%s699 + $0x170] sm:$0xff]
        %v791 = vld [vmem:[%s699 + $0x178] sm:$0xff]
        %v792 = vld [vmem:[%s699 + $0x180] sm:$0xff]
        %v793 = vld [vmem:[%s699 + $0x188] sm:$0xff]
        %v794 = vld [vmem:[%s699 + $0x190] sm:$0xff]
        %v795 = vld [vmem:[%s699 + $0x198] sm:$0xff]
        %v796 = vld [vmem:[%s699 + $0x1a0] sm:$0xff]
        %v797 = vld [vmem:[%s699 + $0x1a8] sm:$0xff]
        %v798 = vld [vmem:[%s699 + $0x1b0] sm:$0xff]
        %v799 = vld [vmem:[%s699 + $0x1b8] sm:$0xff]
        %v800 = vld [vmem:[%s699 + $0x1c0] sm:$0xff]
        %v801 = vld [vmem:[%s699 + $0x1c8] sm:$0xff]
        %v802 = vld [vmem:[%s699 + $0x1d0] sm:$0xff]
        %v803 = vld [vmem:[%s699 + $0x1d8] sm:$0xff]
        %v804 = vld [vmem:[%s699 + $0x1e0] sm:$0xff]
        %v805 = vld [vmem:[%s699 + $0x1e8] sm:$0xff]
        %v806 = vld [vmem:[%s699 + $0x1f0] sm:$0xff]
        %v807 = vld [vmem:[%s699 + $0x1f8] sm:$0xff]
        %v808 = vld [vmem:[%s699 + $0x200] sm:$0xff]
        %v809 = vld [vmem:[%s699 + $0x208] sm:$0xff]
        %v810 = vld [vmem:[%s699 + $0x210] sm:$0xff]
        %v811 = vld [vmem:[%s699 + $0x218] sm:$0xff]
        %v812 = vld [vmem:[%s699 + $0x220] sm:$0xff]
        %v813 = vld [vmem:[%s699 + $0x228] sm:$0xff]
        %v814 = vld [vmem:[%s699 + $0x230] sm:$0xff]
        %v815 = vld [vmem:[%s699 + $0x238] sm:$0xff]
        %v816 = vld [vmem:[%s699 + $0x240] sm:$0xff]
        %v817 = vld [vmem:[%s699 + $0x248] sm:$0xff]
        %v818 = vld [vmem:[%s699 + $0x250] sm:$0xff]
        %v819 = vld [vmem:[%s699 + $0x258] sm:$0xff]
        %v820 = vld [vmem:[%s699 + $0x260] sm:$0xff]
        %v821 = vld [vmem:[%s699 + $0x268] sm:$0xff]
        %v822 = vld [vmem:[%s699 + $0x270] sm:$0xff]
        %v823 = vld [vmem:[%s699 + $0x278] sm:$0xff]
        %v824 = vld [vmem:[%s699 + $0x280] sm:$0xff]
        %v825 = vld [vmem:[%s699 + $0x288] sm:$0xff]
        %v826 = vld [vmem:[%s699 + $0x290] sm:$0xff]
        %v827 = vld [vmem:[%s699 + $0x298] sm:$0xff]
        %v828 = vld [vmem:[%s699 + $0x2a0] sm:$0xff]
        %v829 = vld [vmem:[%s699 + $0x2a8] sm:$0xff]
        %v830 = vld [vmem:[%s699 + $0x2b0] sm:$0xff]
        %v831 = vld [vmem:[%s699 + $0x2b8] sm:$0xff]
        %v832 = vld [vmem:[%s699 + $0x2c0] sm:$0xff]
        %v833 = vld [vmem:[%s699 + $0x2c8] sm:$0xff]
        %v834 = vld [vmem:[%s699 + $0x2d0] sm:$0xff]
        %v835 = vld [vmem:[%s699 + $0x2d8] sm:$0xff]
        %v836 = vld [vmem:[%s699 + $0x2e0] sm:$0xff]
        %v837 = vld [vmem:[%s699 + $0x2e8] sm:$0xff]
        %v838 = vld [vmem:[%s699 + $0x2f0] sm:$0xff]
        %v839 = vld [vmem:[%s699 + $0x2f8] sm:$0xff]
        %v840 = vld [vmem:[%s699 + $0x300] sm:$0xff]
        %v841 = vld [vmem:[%s699 + $0x308] sm:$0xff]
        %v842 = vld [vmem:[%s699 + $0x310] sm:$0xff]
        %v843 = vld [vmem:[%s699 + $0x318] sm:$0xff]
        %v844 = vld [vmem:[%s699 + $0x320] sm:$0xff]
        %v845 = vld [vmem:[%s699 + $0x328] sm:$0xff]
        %v846 = vld [vmem:[%s699 + $0x330] sm:$0xff]
        %v847 = vld [vmem:[%s699 + $0x338] sm:$0xff]
        %v848 = vld [vmem:[%s699 + $0x340] sm:$0xff]
        %v849 = vld [vmem:[%s699 + $0x348] sm:$0xff]
        %v850 = vld [vmem:[%s699 + $0x350] sm:$0xff]
        %v851 = vld [vmem:[%s699 + $0x358] sm:$0xff]
        %v852 = vld [vmem:[%s699 + $0x360] sm:$0xff]
        %v853 = vld [vmem:[%s699 + $0x368] sm:$0xff]
        %v854 = vld [vmem:[%s699 + $0x370] sm:$0xff]
        %v855 = vld [vmem:[%s699 + $0x378] sm:$0xff]
        %v856 = vld [vmem:[%s699 + $0x380] sm:$0xff]
        %v857 = vld [vmem:[%s699 + $0x388] sm:$0xff]
        %v858 = vld [vmem:[%s699 + $0x390] sm:$0xff]
        %v859 = vld [vmem:[%s699 + $0x398] sm:$0xff]
        %v860 = vld [vmem:[%s699 + $0x3a0] sm:$0xff]
        %v861 = vld [vmem:[%s699 + $0x3a8] sm:$0xff]
        %v862 = vld [vmem:[%s699 + $0x3b0] sm:$0xff]
        %v863 = vld [vmem:[%s699 + $0x3b8] sm:$0xff]
        %v864 = vld [vmem:[%s699 + $0x3c0] sm:$0xff]
        %v865 = vld [vmem:[%s699 + $0x3c8] sm:$0xff]
        %v866 = vld [vmem:[%s699 + $0x3d0] sm:$0xff]
        %v867 = vld [vmem:[%s699 + $0x3d8] sm:$0xff]
        %v868 = vld [vmem:[%s699 + $0x3e0] sm:$0xff]
        %v869 = vld [vmem:[%s699 + $0x3e8] sm:$0xff]
        %v870 = vld [vmem:[%s699 + $0x3f0] sm:$0xff]
        %v871 = vld [vmem:[%s699 + $0x3f8] sm:$0xff]
        %v872 = vld [vmem:[%s735] sm:$0xff]
        %v873 = vld [vmem:[#allocation3] sm:$0xff]
        %874 = vadd.xlane.f32.xlu0 %v872
        %v875 = vpop.xlane.xlu0 %874
        %v876 = vadd.f32 %v873, %v875
        %vm877 = vcmask 7168
        %878 = vst.msk [vmem:[#allocation3] sm:$0xff] %vm877, %v876
        %v879 = vand.u32 %v759, 4294901760
        %880 = vmatpush.msra.mxu0 %v879
        %v881 = vand.u32 %v758, 4294901760
        %882 = vmatpush.msra.mxu0 %v881
        %v883 = vand.u32 %v757, 4294901760
        %884 = vmatpush.msra.mxu0 %v883
        %v885 = vand.u32 %v756, 4294901760
        %886 = vmatpush.msra.mxu0 %v885
        %v887 = vand.u32 %v755, 4294901760
        %888 = vmatpush.msra.mxu0 %v887
        %v889 = vand.u32 %v754, 4294901760
        %890 = vmatpush.msra.mxu0 %v889
        %v891 = vand.u32 %v753, 4294901760
        %892 = vmatpush.msra.mxu0 %v891
        %v893 = vand.u32 %v752, 4294901760
        %894 = vmatpush.msra.mxu0 %v893
        %v895 = vand.u32 %v751, 4294901760
        %896 = vmatpush.msra.mxu0 %v895
        %v897 = vand.u32 %v750, 4294901760
        %898 = vmatpush.msra.mxu0 %v897
        %v899 = vand.u32 %v749, 4294901760
        %900 = vmatpush.msra.mxu0 %v899
        %v901 = vand.u32 %v748, 4294901760
        %902 = vmatpush.msra.mxu0 %v901
        %v903 = vand.u32 %v747, 4294901760
        %904 = vmatpush.msra.mxu0 %v903
        %v905 = vand.u32 %v746, 4294901760
        %906 = vmatpush.msra.mxu0 %v905
        %v907 = vand.u32 %v745, 4294901760
        %908 = vmatpush.msra.mxu0 %v907
        %v909 = vand.u32 %v744, 4294901760
        %910 = vmatpush.msra.mxu0 %v909
        %v911 = vand.u32 %v872, 4294901760
        %v912 = vsub.f32 %v872, %v911
        %v913 = vand.u32 %v912, 4294901760
        %v914 = vsub.f32 %v912, %v913
        %v915 = vand.u32 %v914, 4294901760
        %916 = vmatmul.f32.gmra.mxu0 %v915
        %v917 = vpop.f32.mrf.mxu0
        %v918 = vadd.f32 0.0, %v917
        %919 = vdwg.mxu0
        %v920 = vand.u32 %v759, 4294901760
        %v921 = vsub.f32 %v759, %v920
        %v922 = vand.u32 %v921, 4294901760
        %v923 = vsub.f32 %v921, %v922
        %v924 = vand.u32 %v923, 4294901760
        %925 = vmatpush.msra.mxu0 %v924
        %v926 = vand.u32 %v758, 4294901760
        %v927 = vsub.f32 %v758, %v926
        %v928 = vand.u32 %v927, 4294901760
        %v929 = vsub.f32 %v927, %v928
        %v930 = vand.u32 %v929, 4294901760
        %931 = vmatpush.msra.mxu0 %v930
        %v932 = vand.u32 %v757, 4294901760
        %v933 = vsub.f32 %v757, %v932
        %v934 = vand.u32 %v933, 4294901760
        %v935 = vsub.f32 %v933, %v934
        %v936 = vand.u32 %v935, 4294901760
        %937 = vmatpush.msra.mxu0 %v936
        %v938 = vand.u32 %v756, 4294901760
        %v939 = vsub.f32 %v756, %v938
        %v940 = vand.u32 %v939, 4294901760
        %v941 = vsub.f32 %v939, %v940
        %v942 = vand.u32 %v941, 4294901760
        %943 = vmatpush.msra.mxu0 %v942
        %v944 = vand.u32 %v755, 4294901760
        %v945 = vsub.f32 %v755, %v944
        %v946 = vand.u32 %v945, 4294901760
        %v947 = vsub.f32 %v945, %v946
        %v948 = vand.u32 %v947, 4294901760
        %949 = vmatpush.msra.mxu0 %v948
        %v950 = vand.u32 %v754, 4294901760
        %v951 = vsub.f32 %v754, %v950
        %v952 = vand.u32 %v951, 4294901760
        %v953 = vsub.f32 %v951, %v952
        %v954 = vand.u32 %v953, 4294901760
        %955 = vmatpush.msra.mxu0 %v954
        %v956 = vand.u32 %v753, 4294901760
        %v957 = vsub.f32 %v753, %v956
        %v958 = vand.u32 %v957, 4294901760
        %v959 = vsub.f32 %v957, %v958
        %v960 = vand.u32 %v959, 4294901760
        %961 = vmatpush.msra.mxu0 %v960
        %v962 = vand.u32 %v752, 4294901760
        %v963 = vsub.f32 %v752, %v962
        %v964 = vand.u32 %v963, 4294901760
        %v965 = vsub.f32 %v963, %v964
        %v966 = vand.u32 %v965, 4294901760
        %967 = vmatpush.msra.mxu0 %v966
        %v968 = vand.u32 %v751, 4294901760
        %v969 = vsub.f32 %v751, %v968
        %v970 = vand.u32 %v969, 4294901760
        %v971 = vsub.f32 %v969, %v970
        %v972 = vand.u32 %v971, 4294901760
        %973 = vmatpush.msra.mxu0 %v972
        %v974 = vand.u32 %v750, 4294901760
        %v975 = vsub.f32 %v750, %v974
        %v976 = vand.u32 %v975, 4294901760
        %v977 = vsub.f32 %v975, %v976
        %v978 = vand.u32 %v977, 4294901760
        %979 = vmatpush.msra.mxu0 %v978
        %v980 = vand.u32 %v749, 4294901760
        %v981 = vsub.f32 %v749, %v980
        %v982 = vand.u32 %v981, 4294901760
        %v983 = vsub.f32 %v981, %v982
        %v984 = vand.u32 %v983, 4294901760
        %985 = vmatpush.msra.mxu0 %v984
        %v986 = vand.u32 %v748, 4294901760
        %v987 = vsub.f32 %v748, %v986
        %v988 = vand.u32 %v987, 4294901760
        %v989 = vsub.f32 %v987, %v988
        %v990 = vand.u32 %v989, 4294901760
        %991 = vmatpush.msra.mxu0 %v990
        %v992 = vand.u32 %v747, 4294901760
        %v993 = vsub.f32 %v747, %v992
        %v994 = vand.u32 %v993, 4294901760
        %v995 = vsub.f32 %v993, %v994
        %v996 = vand.u32 %v995, 4294901760
        %997 = vmatpush.msra.mxu0 %v996
        %v998 = vand.u32 %v746, 4294901760
        %v999 = vsub.f32 %v746, %v998
        %v1000 = vand.u32 %v999, 4294901760
        %v1001 = vsub.f32 %v999, %v1000
        %v1002 = vand.u32 %v1001, 4294901760
        %1003 = vmatpush.msra.mxu0 %v1002
        %v1004 = vand.u32 %v745, 4294901760
        %v1005 = vsub.f32 %v745, %v1004
        %v1006 = vand.u32 %v1005, 4294901760
        %v1007 = vsub.f32 %v1005, %v1006
        %v1008 = vand.u32 %v1007, 4294901760
        %1009 = vmatpush.msra.mxu0 %v1008
        %v1010 = vand.u32 %v744, 4294901760
        %v1011 = vsub.f32 %v744, %v1010
        %v1012 = vand.u32 %v1011, 4294901760
        %v1013 = vsub.f32 %v1011, %v1012
        %v1014 = vand.u32 %v1013, 4294901760
        %1015 = vmatpush.msra.mxu0 %v1014
        %v1016 = vand.u32 %v872, 4294901760
        %1017 = vmatmul.f32.gmra.mxu0 %v1016
        %v1018 = vpop.f32.mrf.mxu0
        %v1019 = vadd.f32 %v918, %v1018
        %1020 = vdwg.mxu0
        %v1021 = vand.u32 %v759, 4294901760
        %v1022 = vsub.f32 %v759, %v1021
        %1023 = vmatpush.msra.mxu0 %v1022
        %v1024 = vand.u32 %v758, 4294901760
        %v1025 = vsub.f32 %v758, %v1024
        %1026 = vmatpush.msra.mxu0 %v1025
        %v1027 = vand.u32 %v757, 4294901760
        %v1028 = vsub.f32 %v757, %v1027
        %1029 = vmatpush.msra.mxu0 %v1028
        %v1030 = vand.u32 %v756, 4294901760
        %v1031 = vsub.f32 %v756, %v1030
        %1032 = vmatpush.msra.mxu0 %v1031
        %v1033 = vand.u32 %v755, 4294901760
        %v1034 = vsub.f32 %v755, %v1033
        %1035 = vmatpush.msra.mxu0 %v1034
        %v1036 = vand.u32 %v754, 4294901760
        %v1037 = vsub.f32 %v754, %v1036
        %1038 = vmatpush.msra.mxu0 %v1037
        %v1039 = vand.u32 %v753, 4294901760
        %v1040 = vsub.f32 %v753, %v1039
        %1041 = vmatpush.msra.mxu0 %v1040
        %v1042 = vand.u32 %v752, 4294901760
        %v1043 = vsub.f32 %v752, %v1042
        %1044 = vmatpush.msra.mxu0 %v1043
        %v1045 = vand.u32 %v751, 4294901760
        %v1046 = vsub.f32 %v751, %v1045
        %1047 = vmatpush.msra.mxu0 %v1046
        %v1048 = vand.u32 %v750, 4294901760
        %v1049 = vsub.f32 %v750, %v1048
        %1050 = vmatpush.msra.mxu0 %v1049
        %v1051 = vand.u32 %v749, 4294901760
        %v1052 = vsub.f32 %v749, %v1051
        %1053 = vmatpush.msra.mxu0 %v1052
        %v1054 = vand.u32 %v748, 4294901760
        %v1055 = vsub.f32 %v748, %v1054
        %1056 = vmatpush.msra.mxu0 %v1055
        %v1057 = vand.u32 %v747, 4294901760
        %v1058 = vsub.f32 %v747, %v1057
        %1059 = vmatpush.msra.mxu0 %v1058
        %v1060 = vand.u32 %v746, 4294901760
        %v1061 = vsub.f32 %v746, %v1060
        %1062 = vmatpush.msra.mxu0 %v1061
        %v1063 = vand.u32 %v745, 4294901760
        %v1064 = vsub.f32 %v745, %v1063
        %1065 = vmatpush.msra.mxu0 %v1064
        %v1066 = vand.u32 %v744, 4294901760
        %v1067 = vsub.f32 %v744, %v1066
        %1068 = vmatpush.msra.mxu0 %v1067
        %v1069 = vand.u32 %v872, 4294901760
        %v1070 = vsub.f32 %v872, %v1069
        %1071 = vmatmul.f32.gmra.mxu0 %v1070
        %v1072 = vpop.f32.mrf.mxu0
        %v1073 = vadd.f32 %v1019, %v1072
        %1074 = vdwg.mxu0
        %v1075 = vand.u32 %v759, 4294901760
        %1076 = vmatpush.msra.mxu0 %v1075
        %v1077 = vand.u32 %v758, 4294901760
        %1078 = vmatpush.msra.mxu0 %v1077
        %v1079 = vand.u32 %v757, 4294901760
        %1080 = vmatpush.msra.mxu0 %v1079
        %v1081 = vand.u32 %v756, 4294901760
        %1082 = vmatpush.msra.mxu0 %v1081
        %v1083 = vand.u32 %v755, 4294901760
        %1084 = vmatpush.msra.mxu0 %v1083
        %v1085 = vand.u32 %v754, 4294901760
        %1086 = vmatpush.msra.mxu0 %v1085
        %v1087 = vand.u32 %v753, 4294901760
        %1088 = vmatpush.msra.mxu0 %v1087
        %v1089 = vand.u32 %v752, 4294901760
        %1090 = vmatpush.msra.mxu0 %v1089
        %v1091 = vand.u32 %v751, 4294901760
        %1092 = vmatpush.msra.mxu0 %v1091
        %v1093 = vand.u32 %v750, 4294901760
        %1094 = vmatpush.msra.mxu0 %v1093
        %v1095 = vand.u32 %v749, 4294901760
        %1096 = vmatpush.msra.mxu0 %v1095
        %v1097 = vand.u32 %v748, 4294901760
        %1098 = vmatpush.msra.mxu0 %v1097
        %v1099 = vand.u32 %v747, 4294901760
        %1100 = vmatpush.msra.mxu0 %v1099
        %v1101 = vand.u32 %v746, 4294901760
        %1102 = vmatpush.msra.mxu0 %v1101
        %v1103 = vand.u32 %v745, 4294901760
        %1104 = vmatpush.msra.mxu0 %v1103
        %v1105 = vand.u32 %v744, 4294901760
        %1106 = vmatpush.msra.mxu0 %v1105
        %v1107 = vand.u32 %v872, 4294901760
        %v1108 = vsub.f32 %v872, %v1107
        %v1109 = vand.u32 %v1108, 4294901760
        %1110 = vmatmul.f32.gmra.mxu0 %v1109
        %v1111 = vpop.f32.mrf.mxu0
        %v1112 = vadd.f32 %v1073, %v1111
        %1113 = vdwg.mxu0
        %v1114 = vand.u32 %v759, 4294901760
        %v1115 = vsub.f32 %v759, %v1114
        %v1116 = vand.u32 %v1115, 4294901760
        %1117 = vmatpush.msra.mxu0 %v1116
        %v1118 = vand.u32 %v758, 4294901760
        %v1119 = vsub.f32 %v758, %v1118
        %v1120 = vand.u32 %v1119, 4294901760
        %1121 = vmatpush.msra.mxu0 %v1120
        %v1122 = vand.u32 %v757, 4294901760
        %v1123 = vsub.f32 %v757, %v1122
        %v1124 = vand.u32 %v1123, 4294901760
        %1125 = vmatpush.msra.mxu0 %v1124
        %v1126 = vand.u32 %v756, 4294901760
        %v1127 = vsub.f32 %v756, %v1126
        %v1128 = vand.u32 %v1127, 4294901760
        %1129 = vmatpush.msra.mxu0 %v1128
        %v1130 = vand.u32 %v755, 4294901760
        %v1131 = vsub.f32 %v755, %v1130
        %v1132 = vand.u32 %v1131, 4294901760
        %1133 = vmatpush.msra.mxu0 %v1132
        %v1134 = vand.u32 %v754, 4294901760
        %v1135 = vsub.f32 %v754, %v1134
        %v1136 = vand.u32 %v1135, 4294901760
        %1137 = vmatpush.msra.mxu0 %v1136
        %v1138 = vand.u32 %v753, 4294901760
        %v1139 = vsub.f32 %v753, %v1138
        %v1140 = vand.u32 %v1139, 4294901760
        %1141 = vmatpush.msra.mxu0 %v1140
        %v1142 = vand.u32 %v752, 4294901760
        %v1143 = vsub.f32 %v752, %v1142
        %v1144 = vand.u32 %v1143, 4294901760
        %1145 = vmatpush.msra.mxu0 %v1144
        %v1146 = vand.u32 %v751, 4294901760
        %v1147 = vsub.f32 %v751, %v1146
        %v1148 = vand.u32 %v1147, 4294901760
        %1149 = vmatpush.msra.mxu0 %v1148
        %v1150 = vand.u32 %v750, 4294901760
        %v1151 = vsub.f32 %v750, %v1150
        %v1152 = vand.u32 %v1151, 4294901760
        %1153 = vmatpush.msra.mxu0 %v1152
        %v1154 = vand.u32 %v749, 4294901760
        %v1155 = vsub.f32 %v749, %v1154
        %v1156 = vand.u32 %v1155, 4294901760
        %1157 = vmatpush.msra.mxu0 %v1156
        %v1158 = vand.u32 %v748, 4294901760
        %v1159 = vsub.f32 %v748, %v1158
        %v1160 = vand.u32 %v1159, 4294901760
        %1161 = vmatpush.msra.mxu0 %v1160
        %v1162 = vand.u32 %v747, 4294901760
        %v1163 = vsub.f32 %v747, %v1162
        %v1164 = vand.u32 %v1163, 4294901760
        %1165 = vmatpush.msra.mxu0 %v1164
        %v1166 = vand.u32 %v746, 4294901760
        %v1167 = vsub.f32 %v746, %v1166
        %v1168 = vand.u32 %v1167, 4294901760
        %1169 = vmatpush.msra.mxu0 %v1168
        %v1170 = vand.u32 %v745, 4294901760
        %v1171 = vsub.f32 %v745, %v1170
        %v1172 = vand.u32 %v1171, 4294901760
        %1173 = vmatpush.msra.mxu0 %v1172
        %v1174 = vand.u32 %v744, 4294901760
        %v1175 = vsub.f32 %v744, %v1174
        %v1176 = vand.u32 %v1175, 4294901760
        %1177 = vmatpush.msra.mxu0 %v1176
        %v1178 = vand.u32 %v872, 4294901760
        %1179 = vmatmul.f32.gmra.mxu0 %v1178
        %v1180 = vpop.f32.mrf.mxu0
        %v1181 = vadd.f32 %v1112, %v1180
        %1182 = vdwg.mxu0
        %v1183 = vand.u32 %v759, 4294901760
        %1184 = vmatpush.msra.mxu0 %v1183
        %v1185 = vand.u32 %v758, 4294901760
        %1186 = vmatpush.msra.mxu0 %v1185
        %v1187 = vand.u32 %v757, 4294901760
        %1188 = vmatpush.msra.mxu0 %v1187
        %v1189 = vand.u32 %v756, 4294901760
        %1190 = vmatpush.msra.mxu0 %v1189
        %v1191 = vand.u32 %v755, 4294901760
        %1192 = vmatpush.msra.mxu0 %v1191
        %v1193 = vand.u32 %v754, 4294901760
        %1194 = vmatpush.msra.mxu0 %v1193
        %v1195 = vand.u32 %v753, 4294901760
        %1196 = vmatpush.msra.mxu0 %v1195
        %v1197 = vand.u32 %v752, 4294901760
        %1198 = vmatpush.msra.mxu0 %v1197
        %v1199 = vand.u32 %v751, 4294901760
        %1200 = vmatpush.msra.mxu0 %v1199
        %v1201 = vand.u32 %v750, 4294901760
        %1202 = vmatpush.msra.mxu0 %v1201
        %v1203 = vand.u32 %v749, 4294901760
        %1204 = vmatpush.msra.mxu0 %v1203
        %v1205 = vand.u32 %v748, 4294901760
        %1206 = vmatpush.msra.mxu0 %v1205
        %v1207 = vand.u32 %v747, 4294901760
        %1208 = vmatpush.msra.mxu0 %v1207
        %v1209 = vand.u32 %v746, 4294901760
        %1210 = vmatpush.msra.mxu0 %v1209
        %v1211 = vand.u32 %v745, 4294901760
        %1212 = vmatpush.msra.mxu0 %v1211
        %v1213 = vand.u32 %v744, 4294901760
        %1214 = vmatpush.msra.mxu0 %v1213
        %v1215 = vand.u32 %v872, 4294901760
        %1216 = vmatmul.f32.gmra.mxu0 %v1215
        %v1217 = vpop.f32.mrf.mxu0
        %v1218 = vadd.f32 %v1181, %v1217
        %1219 = vdwg.mxu0
        %v1221 = vrot.slane %v872, 1
        %v1223 = vand.u32 %v775, 4294901760
        %1224 = vmatpush.msra.mxu0 %v1223
        %v1225 = vand.u32 %v774, 4294901760
        %1226 = vmatpush.msra.mxu0 %v1225
        %v1227 = vand.u32 %v773, 4294901760
        %1228 = vmatpush.msra.mxu0 %v1227
        %v1229 = vand.u32 %v772, 4294901760
        %1230 = vmatpush.msra.mxu0 %v1229
        %v1231 = vand.u32 %v771, 4294901760
        %1232 = vmatpush.msra.mxu0 %v1231
        %v1233 = vand.u32 %v770, 4294901760
        %1234 = vmatpush.msra.mxu0 %v1233
        %v1235 = vand.u32 %v769, 4294901760
        %1236 = vmatpush.msra.mxu0 %v1235
        %v1237 = vand.u32 %v768, 4294901760
        %1238 = vmatpush.msra.mxu0 %v1237
        %v1239 = vand.u32 %v767, 4294901760
        %1240 = vmatpush.msra.mxu0 %v1239
        %v1241 = vand.u32 %v766, 4294901760
        %1242 = vmatpush.msra.mxu0 %v1241
        %v1243 = vand.u32 %v765, 4294901760
        %1244 = vmatpush.msra.mxu0 %v1243
        %v1245 = vand.u32 %v764, 4294901760
        %1246 = vmatpush.msra.mxu0 %v1245
        %v1247 = vand.u32 %v763, 4294901760
        %1248 = vmatpush.msra.mxu0 %v1247
        %v1249 = vand.u32 %v762, 4294901760
        %1250 = vmatpush.msra.mxu0 %v1249
        %v1251 = vand.u32 %v761, 4294901760
        %1252 = vmatpush.msra.mxu0 %v1251
        %v1253 = vand.u32 %v760, 4294901760
        %1254 = vmatpush.msra.mxu0 %v1253
        %v1255 = vand.u32 %v1221, 4294901760
        %v1256 = vsub.f32 %v1221, %v1255
        %v1257 = vand.u32 %v1256, 4294901760
        %v1258 = vsub.f32 %v1256, %v1257
        %v1259 = vand.u32 %v1258, 4294901760
        %1260 = vmatmul.f32.gmra.mxu0 %v1259
        %v1261 = vpop.f32.mrf.mxu0
        %v1262 = vadd.f32 0.0, %v1261
        %1263 = vdwg.mxu0
        %v1264 = vand.u32 %v775, 4294901760
        %v1265 = vsub.f32 %v775, %v1264
        %v1266 = vand.u32 %v1265, 4294901760
        %v1267 = vsub.f32 %v1265, %v1266
        %v1268 = vand.u32 %v1267, 4294901760
        %1269 = vmatpush.msra.mxu0 %v1268
        %v1270 = vand.u32 %v774, 4294901760
        %v1271 = vsub.f32 %v774, %v1270
        %v1272 = vand.u32 %v1271, 4294901760
        %v1273 = vsub.f32 %v1271, %v1272
        %v1274 = vand.u32 %v1273, 4294901760
        %1275 = vmatpush.msra.mxu0 %v1274
        %v1276 = vand.u32 %v773, 4294901760
        %v1277 = vsub.f32 %v773, %v1276
        %v1278 = vand.u32 %v1277, 4294901760
        %v1279 = vsub.f32 %v1277, %v1278
        %v1280 = vand.u32 %v1279, 4294901760
        %1281 = vmatpush.msra.mxu0 %v1280
        %v1282 = vand.u32 %v772, 4294901760
        %v1283 = vsub.f32 %v772, %v1282
        %v1284 = vand.u32 %v1283, 4294901760
        %v1285 = vsub.f32 %v1283, %v1284
        %v1286 = vand.u32 %v1285, 4294901760
        %1287 = vmatpush.msra.mxu0 %v1286
        %v1288 = vand.u32 %v771, 4294901760
        %v1289 = vsub.f32 %v771, %v1288
        %v1290 = vand.u32 %v1289, 4294901760
        %v1291 = vsub.f32 %v1289, %v1290
        %v1292 = vand.u32 %v1291, 4294901760
        %1293 = vmatpush.msra.mxu0 %v1292
        %v1294 = vand.u32 %v770, 4294901760
        %v1295 = vsub.f32 %v770, %v1294
        %v1296 = vand.u32 %v1295, 4294901760
        %v1297 = vsub.f32 %v1295, %v1296
        %v1298 = vand.u32 %v1297, 4294901760
        %1299 = vmatpush.msra.mxu0 %v1298
        %v1300 = vand.u32 %v769, 4294901760
        %v1301 = vsub.f32 %v769, %v1300
        %v1302 = vand.u32 %v1301, 4294901760
        %v1303 = vsub.f32 %v1301, %v1302
        %v1304 = vand.u32 %v1303, 4294901760
        %1305 = vmatpush.msra.mxu0 %v1304
        %v1306 = vand.u32 %v768, 4294901760
        %v1307 = vsub.f32 %v768, %v1306
        %v1308 = vand.u32 %v1307, 4294901760
        %v1309 = vsub.f32 %v1307, %v1308
        %v1310 = vand.u32 %v1309, 4294901760
        %1311 = vmatpush.msra.mxu0 %v1310
        %v1312 = vand.u32 %v767, 4294901760
        %v1313 = vsub.f32 %v767, %v1312
        %v1314 = vand.u32 %v1313, 4294901760
        %v1315 = vsub.f32 %v1313, %v1314
        %v1316 = vand.u32 %v1315, 4294901760
        %1317 = vmatpush.msra.mxu0 %v1316
        %v1318 = vand.u32 %v766, 4294901760
        %v1319 = vsub.f32 %v766, %v1318
        %v1320 = vand.u32 %v1319, 4294901760
        %v1321 = vsub.f32 %v1319, %v1320
        %v1322 = vand.u32 %v1321, 4294901760
        %1323 = vmatpush.msra.mxu0 %v1322
        %v1324 = vand.u32 %v765, 4294901760
        %v1325 = vsub.f32 %v765, %v1324
        %v1326 = vand.u32 %v1325, 4294901760
        %v1327 = vsub.f32 %v1325, %v1326
        %v1328 = vand.u32 %v1327, 4294901760
        %1329 = vmatpush.msra.mxu0 %v1328
        %v1330 = vand.u32 %v764, 4294901760
        %v1331 = vsub.f32 %v764, %v1330
        %v1332 = vand.u32 %v1331, 4294901760
        %v1333 = vsub.f32 %v1331, %v1332
        %v1334 = vand.u32 %v1333, 4294901760
        %1335 = vmatpush.msra.mxu0 %v1334
        %v1336 = vand.u32 %v763, 4294901760
        %v1337 = vsub.f32 %v763, %v1336
        %v1338 = vand.u32 %v1337, 4294901760
        %v1339 = vsub.f32 %v1337, %v1338
        %v1340 = vand.u32 %v1339, 4294901760
        %1341 = vmatpush.msra.mxu0 %v1340
        %v1342 = vand.u32 %v762, 4294901760
        %v1343 = vsub.f32 %v762, %v1342
        %v1344 = vand.u32 %v1343, 4294901760
        %v1345 = vsub.f32 %v1343, %v1344
        %v1346 = vand.u32 %v1345, 4294901760
        %1347 = vmatpush.msra.mxu0 %v1346
        %v1348 = vand.u32 %v761, 4294901760
        %v1349 = vsub.f32 %v761, %v1348
        %v1350 = vand.u32 %v1349, 4294901760
        %v1351 = vsub.f32 %v1349, %v1350
        %v1352 = vand.u32 %v1351, 4294901760
        %1353 = vmatpush.msra.mxu0 %v1352
        %v1354 = vand.u32 %v760, 4294901760
        %v1355 = vsub.f32 %v760, %v1354
        %v1356 = vand.u32 %v1355, 4294901760
        %v1357 = vsub.f32 %v1355, %v1356
        %v1358 = vand.u32 %v1357, 4294901760
        %1359 = vmatpush.msra.mxu0 %v1358
        %v1360 = vand.u32 %v1221, 4294901760
        %1361 = vmatmul.f32.gmra.mxu0 %v1360
        %v1362 = vpop.f32.mrf.mxu0
        %v1363 = vadd.f32 %v1262, %v1362
        %1364 = vdwg.mxu0
        %v1365 = vand.u32 %v775, 4294901760
        %v1366 = vsub.f32 %v775, %v1365
        %1367 = vmatpush.msra.mxu0 %v1366
        %v1368 = vand.u32 %v774, 4294901760
        %v1369 = vsub.f32 %v774, %v1368
        %1370 = vmatpush.msra.mxu0 %v1369
        %v1371 = vand.u32 %v773, 4294901760
        %v1372 = vsub.f32 %v773, %v1371
        %1373 = vmatpush.msra.mxu0 %v1372
        %v1374 = vand.u32 %v772, 4294901760
        %v1375 = vsub.f32 %v772, %v1374
        %1376 = vmatpush.msra.mxu0 %v1375
        %v1377 = vand.u32 %v771, 4294901760
        %v1378 = vsub.f32 %v771, %v1377
        %1379 = vmatpush.msra.mxu0 %v1378
        %v1380 = vand.u32 %v770, 4294901760
        %v1381 = vsub.f32 %v770, %v1380
        %1382 = vmatpush.msra.mxu0 %v1381
        %v1383 = vand.u32 %v769, 4294901760
        %v1384 = vsub.f32 %v769, %v1383
        %1385 = vmatpush.msra.mxu0 %v1384
        %v1386 = vand.u32 %v768, 4294901760
        %v1387 = vsub.f32 %v768, %v1386
        %1388 = vmatpush.msra.mxu0 %v1387
        %v1389 = vand.u32 %v767, 4294901760
        %v1390 = vsub.f32 %v767, %v1389
        %1391 = vmatpush.msra.mxu0 %v1390
        %v1392 = vand.u32 %v766, 4294901760
        %v1393 = vsub.f32 %v766, %v1392
        %1394 = vmatpush.msra.mxu0 %v1393
        %v1395 = vand.u32 %v765, 4294901760
        %v1396 = vsub.f32 %v765, %v1395
        %1397 = vmatpush.msra.mxu0 %v1396
        %v1398 = vand.u32 %v764, 4294901760
        %v1399 = vsub.f32 %v764, %v1398
        %1400 = vmatpush.msra.mxu0 %v1399
        %v1401 = vand.u32 %v763, 4294901760
        %v1402 = vsub.f32 %v763, %v1401
        %1403 = vmatpush.msra.mxu0 %v1402
        %v1404 = vand.u32 %v762, 4294901760
        %v1405 = vsub.f32 %v762, %v1404
        %1406 = vmatpush.msra.mxu0 %v1405
        %v1407 = vand.u32 %v761, 4294901760
        %v1408 = vsub.f32 %v761, %v1407
        %1409 = vmatpush.msra.mxu0 %v1408
        %v1410 = vand.u32 %v760, 4294901760
        %v1411 = vsub.f32 %v760, %v1410
        %1412 = vmatpush.msra.mxu0 %v1411
        %v1413 = vand.u32 %v1221, 4294901760
        %v1414 = vsub.f32 %v1221, %v1413
        %1415 = vmatmul.f32.gmra.mxu0 %v1414
        %v1416 = vpop.f32.mrf.mxu0
        %v1417 = vadd.f32 %v1363, %v1416
        %1418 = vdwg.mxu0
        %v1419 = vand.u32 %v775, 4294901760
        %1420 = vmatpush.msra.mxu0 %v1419
        %v1421 = vand.u32 %v774, 4294901760
        %1422 = vmatpush.msra.mxu0 %v1421
        %v1423 = vand.u32 %v773, 4294901760
        %1424 = vmatpush.msra.mxu0 %v1423
        %v1425 = vand.u32 %v772, 4294901760
        %1426 = vmatpush.msra.mxu0 %v1425
        %v1427 = vand.u32 %v771, 4294901760
        %1428 = vmatpush.msra.mxu0 %v1427
        %v1429 = vand.u32 %v770, 4294901760
        %1430 = vmatpush.msra.mxu0 %v1429
        %v1431 = vand.u32 %v769, 4294901760
        %1432 = vmatpush.msra.mxu0 %v1431
        %v1433 = vand.u32 %v768, 4294901760
        %1434 = vmatpush.msra.mxu0 %v1433
        %v1435 = vand.u32 %v767, 4294901760
        %1436 = vmatpush.msra.mxu0 %v1435
        %v1437 = vand.u32 %v766, 4294901760
        %1438 = vmatpush.msra.mxu0 %v1437
        %v1439 = vand.u32 %v765, 4294901760
        %1440 = vmatpush.msra.mxu0 %v1439
        %v1441 = vand.u32 %v764, 4294901760
        %1442 = vmatpush.msra.mxu0 %v1441
        %v1443 = vand.u32 %v763, 4294901760
        %1444 = vmatpush.msra.mxu0 %v1443
        %v1445 = vand.u32 %v762, 4294901760
        %1446 = vmatpush.msra.mxu0 %v1445
        %v1447 = vand.u32 %v761, 4294901760
        %1448 = vmatpush.msra.mxu0 %v1447
        %v1449 = vand.u32 %v760, 4294901760
        %1450 = vmatpush.msra.mxu0 %v1449
        %v1451 = vand.u32 %v1221, 4294901760
        %v1452 = vsub.f32 %v1221, %v1451
        %v1453 = vand.u32 %v1452, 4294901760
        %1454 = vmatmul.f32.gmra.mxu0 %v1453
        %v1455 = vpop.f32.mrf.mxu0
        %v1456 = vadd.f32 %v1417, %v1455
        %1457 = vdwg.mxu0
        %v1458 = vand.u32 %v775, 4294901760
        %v1459 = vsub.f32 %v775, %v1458
        %v1460 = vand.u32 %v1459, 4294901760
        %1461 = vmatpush.msra.mxu0 %v1460
        %v1462 = vand.u32 %v774, 4294901760
        %v1463 = vsub.f32 %v774, %v1462
        %v1464 = vand.u32 %v1463, 4294901760
        %1465 = vmatpush.msra.mxu0 %v1464
        %v1466 = vand.u32 %v773, 4294901760
        %v1467 = vsub.f32 %v773, %v1466
        %v1468 = vand.u32 %v1467, 4294901760
        %1469 = vmatpush.msra.mxu0 %v1468
        %v1470 = vand.u32 %v772, 4294901760
        %v1471 = vsub.f32 %v772, %v1470
        %v1472 = vand.u32 %v1471, 4294901760
        %1473 = vmatpush.msra.mxu0 %v1472
        %v1474 = vand.u32 %v771, 4294901760
        %v1475 = vsub.f32 %v771, %v1474
        %v1476 = vand.u32 %v1475, 4294901760
        %1477 = vmatpush.msra.mxu0 %v1476
        %v1478 = vand.u32 %v770, 4294901760
        %v1479 = vsub.f32 %v770, %v1478
        %v1480 = vand.u32 %v1479, 4294901760
        %1481 = vmatpush.msra.mxu0 %v1480
        %v1482 = vand.u32 %v769, 4294901760
        %v1483 = vsub.f32 %v769, %v1482
        %v1484 = vand.u32 %v1483, 4294901760
        %1485 = vmatpush.msra.mxu0 %v1484
        %v1486 = vand.u32 %v768, 4294901760
        %v1487 = vsub.f32 %v768, %v1486
        %v1488 = vand.u32 %v1487, 4294901760
        %1489 = vmatpush.msra.mxu0 %v1488
        %v1490 = vand.u32 %v767, 4294901760
        %v1491 = vsub.f32 %v767, %v1490
        %v1492 = vand.u32 %v1491, 4294901760
        %1493 = vmatpush.msra.mxu0 %v1492
        %v1494 = vand.u32 %v766, 4294901760
        %v1495 = vsub.f32 %v766, %v1494
        %v1496 = vand.u32 %v1495, 4294901760
        %1497 = vmatpush.msra.mxu0 %v1496
        %v1498 = vand.u32 %v765, 4294901760
        %v1499 = vsub.f32 %v765, %v1498
        %v1500 = vand.u32 %v1499, 4294901760
        %1501 = vmatpush.msra.mxu0 %v1500
        %v1502 = vand.u32 %v764, 4294901760
        %v1503 = vsub.f32 %v764, %v1502
        %v1504 = vand.u32 %v1503, 4294901760
        %1505 = vmatpush.msra.mxu0 %v1504
        %v1506 = vand.u32 %v763, 4294901760
        %v1507 = vsub.f32 %v763, %v1506
        %v1508 = vand.u32 %v1507, 4294901760
        %1509 = vmatpush.msra.mxu0 %v1508
        %v1510 = vand.u32 %v762, 4294901760
        %v1511 = vsub.f32 %v762, %v1510
        %v1512 = vand.u32 %v1511, 4294901760
        %1513 = vmatpush.msra.mxu0 %v1512
        %v1514 = vand.u32 %v761, 4294901760
        %v1515 = vsub.f32 %v761, %v1514
        %v1516 = vand.u32 %v1515, 4294901760
        %1517 = vmatpush.msra.mxu0 %v1516
        %v1518 = vand.u32 %v760, 4294901760
        %v1519 = vsub.f32 %v760, %v1518
        %v1520 = vand.u32 %v1519, 4294901760
        %1521 = vmatpush.msra.mxu0 %v1520
        %v1522 = vand.u32 %v1221, 4294901760
        %1523 = vmatmul.f32.gmra.mxu0 %v1522
        %v1524 = vpop.f32.mrf.mxu0
        %v1525 = vadd.f32 %v1456, %v1524
        %1526 = vdwg.mxu0
        %v1527 = vand.u32 %v775, 4294901760
        %1528 = vmatpush.msra.mxu0 %v1527
        %v1529 = vand.u32 %v774, 4294901760
        %1530 = vmatpush.msra.mxu0 %v1529
        %v1531 = vand.u32 %v773, 4294901760
        %1532 = vmatpush.msra.mxu0 %v1531
        %v1533 = vand.u32 %v772, 4294901760
        %1534 = vmatpush.msra.mxu0 %v1533
        %v1535 = vand.u32 %v771, 4294901760
        %1536 = vmatpush.msra.mxu0 %v1535
        %v1537 = vand.u32 %v770, 4294901760
        %1538 = vmatpush.msra.mxu0 %v1537
        %v1539 = vand.u32 %v769, 4294901760
        %1540 = vmatpush.msra.mxu0 %v1539
        %v1541 = vand.u32 %v768, 4294901760
        %1542 = vmatpush.msra.mxu0 %v1541
        %v1543 = vand.u32 %v767, 4294901760
        %1544 = vmatpush.msra.mxu0 %v1543
        %v1545 = vand.u32 %v766, 4294901760
        %1546 = vmatpush.msra.mxu0 %v1545
        %v1547 = vand.u32 %v765, 4294901760
        %1548 = vmatpush.msra.mxu0 %v1547
        %v1549 = vand.u32 %v764, 4294901760
        %1550 = vmatpush.msra.mxu0 %v1549
        %v1551 = vand.u32 %v763, 4294901760
        %1552 = vmatpush.msra.mxu0 %v1551
        %v1553 = vand.u32 %v762, 4294901760
        %1554 = vmatpush.msra.mxu0 %v1553
        %v1555 = vand.u32 %v761, 4294901760
        %1556 = vmatpush.msra.mxu0 %v1555
        %v1557 = vand.u32 %v760, 4294901760
        %1558 = vmatpush.msra.mxu0 %v1557
        %v1559 = vand.u32 %v1221, 4294901760
        %1560 = vmatmul.f32.gmra.mxu0 %v1559
        %v1561 = vpop.f32.mrf.mxu0
        %v1562 = vadd.f32 %v1525, %v1561
        %1563 = vdwg.mxu0
        %v1564 = vrot.slane %v872, 2
        %v1566 = vand.u32 %v791, 4294901760
        %1567 = vmatpush.msra.mxu0 %v1566
        %v1568 = vand.u32 %v790, 4294901760
        %1569 = vmatpush.msra.mxu0 %v1568
        %v1570 = vand.u32 %v789, 4294901760
        %1571 = vmatpush.msra.mxu0 %v1570
        %v1572 = vand.u32 %v788, 4294901760
        %1573 = vmatpush.msra.mxu0 %v1572
        %v1574 = vand.u32 %v787, 4294901760
        %1575 = vmatpush.msra.mxu0 %v1574
        %v1576 = vand.u32 %v786, 4294901760
        %1577 = vmatpush.msra.mxu0 %v1576
        %v1578 = vand.u32 %v785, 4294901760
        %1579 = vmatpush.msra.mxu0 %v1578
        %v1580 = vand.u32 %v784, 4294901760
        %1581 = vmatpush.msra.mxu0 %v1580
        %v1582 = vand.u32 %v783, 4294901760
        %1583 = vmatpush.msra.mxu0 %v1582
        %v1584 = vand.u32 %v782, 4294901760
        %1585 = vmatpush.msra.mxu0 %v1584
        %v1586 = vand.u32 %v781, 4294901760
        %1587 = vmatpush.msra.mxu0 %v1586
        %v1588 = vand.u32 %v780, 4294901760
        %1589 = vmatpush.msra.mxu0 %v1588
        %v1590 = vand.u32 %v779, 4294901760
        %1591 = vmatpush.msra.mxu0 %v1590
        %v1592 = vand.u32 %v778, 4294901760
        %1593 = vmatpush.msra.mxu0 %v1592
        %v1594 = vand.u32 %v777, 4294901760
        %1595 = vmatpush.msra.mxu0 %v1594
        %v1596 = vand.u32 %v776, 4294901760
        %1597 = vmatpush.msra.mxu0 %v1596
        %v1598 = vand.u32 %v1564, 4294901760
        %v1599 = vsub.f32 %v1564, %v1598
        %v1600 = vand.u32 %v1599, 4294901760
        %v1601 = vsub.f32 %v1599, %v1600
        %v1602 = vand.u32 %v1601, 4294901760
        %1603 = vmatmul.f32.gmra.mxu0 %v1602
        %v1604 = vpop.f32.mrf.mxu0
        %v1605 = vadd.f32 0.0, %v1604
        %1606 = vdwg.mxu0
        %v1607 = vand.u32 %v791, 4294901760
        %v1608 = vsub.f32 %v791, %v1607
        %v1609 = vand.u32 %v1608, 4294901760
        %v1610 = vsub.f32 %v1608, %v1609
        %v1611 = vand.u32 %v1610, 4294901760
        %1612 = vmatpush.msra.mxu0 %v1611
        %v1613 = vand.u32 %v790, 4294901760
        %v1614 = vsub.f32 %v790, %v1613
        %v1615 = vand.u32 %v1614, 4294901760
        %v1616 = vsub.f32 %v1614, %v1615
        %v1617 = vand.u32 %v1616, 4294901760
        %1618 = vmatpush.msra.mxu0 %v1617
        %v1619 = vand.u32 %v789, 4294901760
        %v1620 = vsub.f32 %v789, %v1619
        %v1621 = vand.u32 %v1620, 4294901760
        %v1622 = vsub.f32 %v1620, %v1621
        %v1623 = vand.u32 %v1622, 4294901760
        %1624 = vmatpush.msra.mxu0 %v1623
        %v1625 = vand.u32 %v788, 4294901760
        %v1626 = vsub.f32 %v788, %v1625
        %v1627 = vand.u32 %v1626, 4294901760
        %v1628 = vsub.f32 %v1626, %v1627
        %v1629 = vand.u32 %v1628, 4294901760
        %1630 = vmatpush.msra.mxu0 %v1629
        %v1631 = vand.u32 %v787, 4294901760
        %v1632 = vsub.f32 %v787, %v1631
        %v1633 = vand.u32 %v1632, 4294901760
        %v1634 = vsub.f32 %v1632, %v1633
        %v1635 = vand.u32 %v1634, 4294901760
        %1636 = vmatpush.msra.mxu0 %v1635
        %v1637 = vand.u32 %v786, 4294901760
        %v1638 = vsub.f32 %v786, %v1637
        %v1639 = vand.u32 %v1638, 4294901760
        %v1640 = vsub.f32 %v1638, %v1639
        %v1641 = vand.u32 %v1640, 4294901760
        %1642 = vmatpush.msra.mxu0 %v1641
        %v1643 = vand.u32 %v785, 4294901760
        %v1644 = vsub.f32 %v785, %v1643
        %v1645 = vand.u32 %v1644, 4294901760
        %v1646 = vsub.f32 %v1644, %v1645
        %v1647 = vand.u32 %v1646, 4294901760
        %1648 = vmatpush.msra.mxu0 %v1647
        %v1649 = vand.u32 %v784, 4294901760
        %v1650 = vsub.f32 %v784, %v1649
        %v1651 = vand.u32 %v1650, 4294901760
        %v1652 = vsub.f32 %v1650, %v1651
        %v1653 = vand.u32 %v1652, 4294901760
        %1654 = vmatpush.msra.mxu0 %v1653
        %v1655 = vand.u32 %v783, 4294901760
        %v1656 = vsub.f32 %v783, %v1655
        %v1657 = vand.u32 %v1656, 4294901760
        %v1658 = vsub.f32 %v1656, %v1657
        %v1659 = vand.u32 %v1658, 4294901760
        %1660 = vmatpush.msra.mxu0 %v1659
        %v1661 = vand.u32 %v782, 4294901760
        %v1662 = vsub.f32 %v782, %v1661
        %v1663 = vand.u32 %v1662, 4294901760
        %v1664 = vsub.f32 %v1662, %v1663
        %v1665 = vand.u32 %v1664, 4294901760
        %1666 = vmatpush.msra.mxu0 %v1665
        %v1667 = vand.u32 %v781, 4294901760
        %v1668 = vsub.f32 %v781, %v1667
        %v1669 = vand.u32 %v1668, 4294901760
        %v1670 = vsub.f32 %v1668, %v1669
        %v1671 = vand.u32 %v1670, 4294901760
        %1672 = vmatpush.msra.mxu0 %v1671
        %v1673 = vand.u32 %v780, 4294901760
        %v1674 = vsub.f32 %v780, %v1673
        %v1675 = vand.u32 %v1674, 4294901760
        %v1676 = vsub.f32 %v1674, %v1675
        %v1677 = vand.u32 %v1676, 4294901760
        %1678 = vmatpush.msra.mxu0 %v1677
        %v1679 = vand.u32 %v779, 4294901760
        %v1680 = vsub.f32 %v779, %v1679
        %v1681 = vand.u32 %v1680, 4294901760
        %v1682 = vsub.f32 %v1680, %v1681
        %v1683 = vand.u32 %v1682, 4294901760
        %1684 = vmatpush.msra.mxu0 %v1683
        %v1685 = vand.u32 %v778, 4294901760
        %v1686 = vsub.f32 %v778, %v1685
        %v1687 = vand.u32 %v1686, 4294901760
        %v1688 = vsub.f32 %v1686, %v1687
        %v1689 = vand.u32 %v1688, 4294901760
        %1690 = vmatpush.msra.mxu0 %v1689
        %v1691 = vand.u32 %v777, 4294901760
        %v1692 = vsub.f32 %v777, %v1691
        %v1693 = vand.u32 %v1692, 4294901760
        %v1694 = vsub.f32 %v1692, %v1693
        %v1695 = vand.u32 %v1694, 4294901760
        %1696 = vmatpush.msra.mxu0 %v1695
        %v1697 = vand.u32 %v776, 4294901760
        %v1698 = vsub.f32 %v776, %v1697
        %v1699 = vand.u32 %v1698, 4294901760
        %v1700 = vsub.f32 %v1698, %v1699
        %v1701 = vand.u32 %v1700, 4294901760
        %1702 = vmatpush.msra.mxu0 %v1701
        %v1703 = vand.u32 %v1564, 4294901760
        %1704 = vmatmul.f32.gmra.mxu0 %v1703
        %v1705 = vpop.f32.mrf.mxu0
        %v1706 = vadd.f32 %v1605, %v1705
        %1707 = vdwg.mxu0
        %v1708 = vand.u32 %v791, 4294901760
        %v1709 = vsub.f32 %v791, %v1708
        %1710 = vmatpush.msra.mxu0 %v1709
        %v1711 = vand.u32 %v790, 4294901760
        %v1712 = vsub.f32 %v790, %v1711
        %1713 = vmatpush.msra.mxu0 %v1712
        %v1714 = vand.u32 %v789, 4294901760
        %v1715 = vsub.f32 %v789, %v1714
        %1716 = vmatpush.msra.mxu0 %v1715
        %v1717 = vand.u32 %v788, 4294901760
        %v1718 = vsub.f32 %v788, %v1717
        %1719 = vmatpush.msra.mxu0 %v1718
        %v1720 = vand.u32 %v787, 4294901760
        %v1721 = vsub.f32 %v787, %v1720
        %1722 = vmatpush.msra.mxu0 %v1721
        %v1723 = vand.u32 %v786, 4294901760
        %v1724 = vsub.f32 %v786, %v1723
        %1725 = vmatpush.msra.mxu0 %v1724
        %v1726 = vand.u32 %v785, 4294901760
        %v1727 = vsub.f32 %v785, %v1726
        %1728 = vmatpush.msra.mxu0 %v1727
        %v1729 = vand.u32 %v784, 4294901760
        %v1730 = vsub.f32 %v784, %v1729
        %1731 = vmatpush.msra.mxu0 %v1730
        %v1732 = vand.u32 %v783, 4294901760
        %v1733 = vsub.f32 %v783, %v1732
        %1734 = vmatpush.msra.mxu0 %v1733
        %v1735 = vand.u32 %v782, 4294901760
        %v1736 = vsub.f32 %v782, %v1735
        %1737 = vmatpush.msra.mxu0 %v1736
        %v1738 = vand.u32 %v781, 4294901760
        %v1739 = vsub.f32 %v781, %v1738
        %1740 = vmatpush.msra.mxu0 %v1739
        %v1741 = vand.u32 %v780, 4294901760
        %v1742 = vsub.f32 %v780, %v1741
        %1743 = vmatpush.msra.mxu0 %v1742
        %v1744 = vand.u32 %v779, 4294901760
        %v1745 = vsub.f32 %v779, %v1744
        %1746 = vmatpush.msra.mxu0 %v1745
        %v1747 = vand.u32 %v778, 4294901760
        %v1748 = vsub.f32 %v778, %v1747
        %1749 = vmatpush.msra.mxu0 %v1748
        %v1750 = vand.u32 %v777, 4294901760
        %v1751 = vsub.f32 %v777, %v1750
        %1752 = vmatpush.msra.mxu0 %v1751
        %v1753 = vand.u32 %v776, 4294901760
        %v1754 = vsub.f32 %v776, %v1753
        %1755 = vmatpush.msra.mxu0 %v1754
        %v1756 = vand.u32 %v1564, 4294901760
        %v1757 = vsub.f32 %v1564, %v1756
        %1758 = vmatmul.f32.gmra.mxu0 %v1757
        %v1759 = vpop.f32.mrf.mxu0
        %v1760 = vadd.f32 %v1706, %v1759
        %1761 = vdwg.mxu0
        %v1762 = vand.u32 %v791, 4294901760
        %1763 = vmatpush.msra.mxu0 %v1762
        %v1764 = vand.u32 %v790, 4294901760
        %1765 = vmatpush.msra.mxu0 %v1764
        %v1766 = vand.u32 %v789, 4294901760
        %1767 = vmatpush.msra.mxu0 %v1766
        %v1768 = vand.u32 %v788, 4294901760
        %1769 = vmatpush.msra.mxu0 %v1768
        %v1770 = vand.u32 %v787, 4294901760
        %1771 = vmatpush.msra.mxu0 %v1770
        %v1772 = vand.u32 %v786, 4294901760
        %1773 = vmatpush.msra.mxu0 %v1772
        %v1774 = vand.u32 %v785, 4294901760
        %1775 = vmatpush.msra.mxu0 %v1774
        %v1776 = vand.u32 %v784, 4294901760
        %1777 = vmatpush.msra.mxu0 %v1776
        %v1778 = vand.u32 %v783, 4294901760
        %1779 = vmatpush.msra.mxu0 %v1778
        %v1780 = vand.u32 %v782, 4294901760
        %1781 = vmatpush.msra.mxu0 %v1780
        %v1782 = vand.u32 %v781, 4294901760
        %1783 = vmatpush.msra.mxu0 %v1782
        %v1784 = vand.u32 %v780, 4294901760
        %1785 = vmatpush.msra.mxu0 %v1784
        %v1786 = vand.u32 %v779, 4294901760
        %1787 = vmatpush.msra.mxu0 %v1786
        %v1788 = vand.u32 %v778, 4294901760
        %1789 = vmatpush.msra.mxu0 %v1788
        %v1790 = vand.u32 %v777, 4294901760
        %1791 = vmatpush.msra.mxu0 %v1790
        %v1792 = vand.u32 %v776, 4294901760
        %1793 = vmatpush.msra.mxu0 %v1792
        %v1794 = vand.u32 %v1564, 4294901760
        %v1795 = vsub.f32 %v1564, %v1794
        %v1796 = vand.u32 %v1795, 4294901760
        %1797 = vmatmul.f32.gmra.mxu0 %v1796
        %v1798 = vpop.f32.mrf.mxu0
        %v1799 = vadd.f32 %v1760, %v1798
        %1800 = vdwg.mxu0
        %v1801 = vand.u32 %v791, 4294901760
        %v1802 = vsub.f32 %v791, %v1801
        %v1803 = vand.u32 %v1802, 4294901760
        %1804 = vmatpush.msra.mxu0 %v1803
        %v1805 = vand.u32 %v790, 4294901760
        %v1806 = vsub.f32 %v790, %v1805
        %v1807 = vand.u32 %v1806, 4294901760
        %1808 = vmatpush.msra.mxu0 %v1807
        %v1809 = vand.u32 %v789, 4294901760
        %v1810 = vsub.f32 %v789, %v1809
        %v1811 = vand.u32 %v1810, 4294901760
        %1812 = vmatpush.msra.mxu0 %v1811
        %v1813 = vand.u32 %v788, 4294901760
        %v1814 = vsub.f32 %v788, %v1813
        %v1815 = vand.u32 %v1814, 4294901760
        %1816 = vmatpush.msra.mxu0 %v1815
        %v1817 = vand.u32 %v787, 4294901760
        %v1818 = vsub.f32 %v787, %v1817
        %v1819 = vand.u32 %v1818, 4294901760
        %1820 = vmatpush.msra.mxu0 %v1819
        %v1821 = vand.u32 %v786, 4294901760
        %v1822 = vsub.f32 %v786, %v1821
        %v1823 = vand.u32 %v1822, 4294901760
        %1824 = vmatpush.msra.mxu0 %v1823
        %v1825 = vand.u32 %v785, 4294901760
        %v1826 = vsub.f32 %v785, %v1825
        %v1827 = vand.u32 %v1826, 4294901760
        %1828 = vmatpush.msra.mxu0 %v1827
        %v1829 = vand.u32 %v784, 4294901760
        %v1830 = vsub.f32 %v784, %v1829
        %v1831 = vand.u32 %v1830, 4294901760
        %1832 = vmatpush.msra.mxu0 %v1831
        %v1833 = vand.u32 %v783, 4294901760
        %v1834 = vsub.f32 %v783, %v1833
        %v1835 = vand.u32 %v1834, 4294901760
        %1836 = vmatpush.msra.mxu0 %v1835
        %v1837 = vand.u32 %v782, 4294901760
        %v1838 = vsub.f32 %v782, %v1837
        %v1839 = vand.u32 %v1838, 4294901760
        %1840 = vmatpush.msra.mxu0 %v1839
        %v1841 = vand.u32 %v781, 4294901760
        %v1842 = vsub.f32 %v781, %v1841
        %v1843 = vand.u32 %v1842, 4294901760
        %1844 = vmatpush.msra.mxu0 %v1843
        %v1845 = vand.u32 %v780, 4294901760
        %v1846 = vsub.f32 %v780, %v1845
        %v1847 = vand.u32 %v1846, 4294901760
        %1848 = vmatpush.msra.mxu0 %v1847
        %v1849 = vand.u32 %v779, 4294901760
        %v1850 = vsub.f32 %v779, %v1849
        %v1851 = vand.u32 %v1850, 4294901760
        %1852 = vmatpush.msra.mxu0 %v1851
        %v1853 = vand.u32 %v778, 4294901760
        %v1854 = vsub.f32 %v778, %v1853
        %v1855 = vand.u32 %v1854, 4294901760
        %1856 = vmatpush.msra.mxu0 %v1855
        %v1857 = vand.u32 %v777, 4294901760
        %v1858 = vsub.f32 %v777, %v1857
        %v1859 = vand.u32 %v1858, 4294901760
        %1860 = vmatpush.msra.mxu0 %v1859
        %v1861 = vand.u32 %v776, 4294901760
        %v1862 = vsub.f32 %v776, %v1861
        %v1863 = vand.u32 %v1862, 4294901760
        %1864 = vmatpush.msra.mxu0 %v1863
        %v1865 = vand.u32 %v1564, 4294901760
        %1866 = vmatmul.f32.gmra.mxu0 %v1865
        %v1867 = vpop.f32.mrf.mxu0
        %v1868 = vadd.f32 %v1799, %v1867
        %1869 = vdwg.mxu0
        %v1870 = vand.u32 %v791, 4294901760
        %1871 = vmatpush.msra.mxu0 %v1870
        %v1872 = vand.u32 %v790, 4294901760
        %1873 = vmatpush.msra.mxu0 %v1872
        %v1874 = vand.u32 %v789, 4294901760
        %1875 = vmatpush.msra.mxu0 %v1874
        %v1876 = vand.u32 %v788, 4294901760
        %1877 = vmatpush.msra.mxu0 %v1876
        %v1878 = vand.u32 %v787, 4294901760
        %1879 = vmatpush.msra.mxu0 %v1878
        %v1880 = vand.u32 %v786, 4294901760
        %1881 = vmatpush.msra.mxu0 %v1880
        %v1882 = vand.u32 %v785, 4294901760
        %1883 = vmatpush.msra.mxu0 %v1882
        %v1884 = vand.u32 %v784, 4294901760
        %1885 = vmatpush.msra.mxu0 %v1884
        %v1886 = vand.u32 %v783, 4294901760
        %1887 = vmatpush.msra.mxu0 %v1886
        %v1888 = vand.u32 %v782, 4294901760
        %1889 = vmatpush.msra.mxu0 %v1888
        %v1890 = vand.u32 %v781, 4294901760
        %1891 = vmatpush.msra.mxu0 %v1890
        %v1892 = vand.u32 %v780, 4294901760
        %1893 = vmatpush.msra.mxu0 %v1892
        %v1894 = vand.u32 %v779, 4294901760
        %1895 = vmatpush.msra.mxu0 %v1894
        %v1896 = vand.u32 %v778, 4294901760
        %1897 = vmatpush.msra.mxu0 %v1896
        %v1898 = vand.u32 %v777, 4294901760
        %1899 = vmatpush.msra.mxu0 %v1898
        %v1900 = vand.u32 %v776, 4294901760
        %1901 = vmatpush.msra.mxu0 %v1900
        %v1902 = vand.u32 %v1564, 4294901760
        %1903 = vmatmul.f32.gmra.mxu0 %v1902
        %v1904 = vpop.f32.mrf.mxu0
        %v1905 = vadd.f32 %v1868, %v1904
        %1906 = vdwg.mxu0
        %v1907 = vrot.slane %v872, 3
        %v1909 = vand.u32 %v807, 4294901760
        %1910 = vmatpush.msra.mxu0 %v1909
        %v1911 = vand.u32 %v806, 4294901760
        %1912 = vmatpush.msra.mxu0 %v1911
        %v1913 = vand.u32 %v805, 4294901760
        %1914 = vmatpush.msra.mxu0 %v1913
        %v1915 = vand.u32 %v804, 4294901760
        %1916 = vmatpush.msra.mxu0 %v1915
        %v1917 = vand.u32 %v803, 4294901760
        %1918 = vmatpush.msra.mxu0 %v1917
        %v1919 = vand.u32 %v802, 4294901760
        %1920 = vmatpush.msra.mxu0 %v1919
        %v1921 = vand.u32 %v801, 4294901760
        %1922 = vmatpush.msra.mxu0 %v1921
        %v1923 = vand.u32 %v800, 4294901760
        %1924 = vmatpush.msra.mxu0 %v1923
        %v1925 = vand.u32 %v799, 4294901760
        %1926 = vmatpush.msra.mxu0 %v1925
        %v1927 = vand.u32 %v798, 4294901760
        %1928 = vmatpush.msra.mxu0 %v1927
        %v1929 = vand.u32 %v797, 4294901760
        %1930 = vmatpush.msra.mxu0 %v1929
        %v1931 = vand.u32 %v796, 4294901760
        %1932 = vmatpush.msra.mxu0 %v1931
        %v1933 = vand.u32 %v795, 4294901760
        %1934 = vmatpush.msra.mxu0 %v1933
        %v1935 = vand.u32 %v794, 4294901760
        %1936 = vmatpush.msra.mxu0 %v1935
        %v1937 = vand.u32 %v793, 4294901760
        %1938 = vmatpush.msra.mxu0 %v1937
        %v1939 = vand.u32 %v792, 4294901760
        %1940 = vmatpush.msra.mxu0 %v1939
        %v1941 = vand.u32 %v1907, 4294901760
        %v1942 = vsub.f32 %v1907, %v1941
        %v1943 = vand.u32 %v1942, 4294901760
        %v1944 = vsub.f32 %v1942, %v1943
        %v1945 = vand.u32 %v1944, 4294901760
        %1946 = vmatmul.f32.gmra.mxu0 %v1945
        %v1947 = vpop.f32.mrf.mxu0
        %v1948 = vadd.f32 0.0, %v1947
        %1949 = vdwg.mxu0
        %v1950 = vand.u32 %v807, 4294901760
        %v1951 = vsub.f32 %v807, %v1950
        %v1952 = vand.u32 %v1951, 4294901760
        %v1953 = vsub.f32 %v1951, %v1952
        %v1954 = vand.u32 %v1953, 4294901760
        %1955 = vmatpush.msra.mxu0 %v1954
        %v1956 = vand.u32 %v806, 4294901760
        %v1957 = vsub.f32 %v806, %v1956
        %v1958 = vand.u32 %v1957, 4294901760
        %v1959 = vsub.f32 %v1957, %v1958
        %v1960 = vand.u32 %v1959, 4294901760
        %1961 = vmatpush.msra.mxu0 %v1960
        %v1962 = vand.u32 %v805, 4294901760
        %v1963 = vsub.f32 %v805, %v1962
        %v1964 = vand.u32 %v1963, 4294901760
        %v1965 = vsub.f32 %v1963, %v1964
        %v1966 = vand.u32 %v1965, 4294901760
        %1967 = vmatpush.msra.mxu0 %v1966
        %v1968 = vand.u32 %v804, 4294901760
        %v1969 = vsub.f32 %v804, %v1968
        %v1970 = vand.u32 %v1969, 4294901760
        %v1971 = vsub.f32 %v1969, %v1970
        %v1972 = vand.u32 %v1971, 4294901760
        %1973 = vmatpush.msra.mxu0 %v1972
        %v1974 = vand.u32 %v803, 4294901760
        %v1975 = vsub.f32 %v803, %v1974
        %v1976 = vand.u32 %v1975, 4294901760
        %v1977 = vsub.f32 %v1975, %v1976
        %v1978 = vand.u32 %v1977, 4294901760
        %1979 = vmatpush.msra.mxu0 %v1978
        %v1980 = vand.u32 %v802, 4294901760
        %v1981 = vsub.f32 %v802, %v1980
        %v1982 = vand.u32 %v1981, 4294901760
        %v1983 = vsub.f32 %v1981, %v1982
        %v1984 = vand.u32 %v1983, 4294901760
        %1985 = vmatpush.msra.mxu0 %v1984
        %v1986 = vand.u32 %v801, 4294901760
        %v1987 = vsub.f32 %v801, %v1986
        %v1988 = vand.u32 %v1987, 4294901760
        %v1989 = vsub.f32 %v1987, %v1988
        %v1990 = vand.u32 %v1989, 4294901760
        %1991 = vmatpush.msra.mxu0 %v1990
        %v1992 = vand.u32 %v800, 4294901760
        %v1993 = vsub.f32 %v800, %v1992
        %v1994 = vand.u32 %v1993, 4294901760
        %v1995 = vsub.f32 %v1993, %v1994
        %v1996 = vand.u32 %v1995, 4294901760
        %1997 = vmatpush.msra.mxu0 %v1996
        %v1998 = vand.u32 %v799, 4294901760
        %v1999 = vsub.f32 %v799, %v1998
        %v2000 = vand.u32 %v1999, 4294901760
        %v2001 = vsub.f32 %v1999, %v2000
        %v2002 = vand.u32 %v2001, 4294901760
        %2003 = vmatpush.msra.mxu0 %v2002
        %v2004 = vand.u32 %v798, 4294901760
        %v2005 = vsub.f32 %v798, %v2004
        %v2006 = vand.u32 %v2005, 4294901760
        %v2007 = vsub.f32 %v2005, %v2006
        %v2008 = vand.u32 %v2007, 4294901760
        %2009 = vmatpush.msra.mxu0 %v2008
        %v2010 = vand.u32 %v797, 4294901760
        %v2011 = vsub.f32 %v797, %v2010
        %v2012 = vand.u32 %v2011, 4294901760
        %v2013 = vsub.f32 %v2011, %v2012
        %v2014 = vand.u32 %v2013, 4294901760
        %2015 = vmatpush.msra.mxu0 %v2014
        %v2016 = vand.u32 %v796, 4294901760
        %v2017 = vsub.f32 %v796, %v2016
        %v2018 = vand.u32 %v2017, 4294901760
        %v2019 = vsub.f32 %v2017, %v2018
        %v2020 = vand.u32 %v2019, 4294901760
        %2021 = vmatpush.msra.mxu0 %v2020
        %v2022 = vand.u32 %v795, 4294901760
        %v2023 = vsub.f32 %v795, %v2022
        %v2024 = vand.u32 %v2023, 4294901760
        %v2025 = vsub.f32 %v2023, %v2024
        %v2026 = vand.u32 %v2025, 4294901760
        %2027 = vmatpush.msra.mxu0 %v2026
        %v2028 = vand.u32 %v794, 4294901760
        %v2029 = vsub.f32 %v794, %v2028
        %v2030 = vand.u32 %v2029, 4294901760
        %v2031 = vsub.f32 %v2029, %v2030
        %v2032 = vand.u32 %v2031, 4294901760
        %2033 = vmatpush.msra.mxu0 %v2032
        %v2034 = vand.u32 %v793, 4294901760
        %v2035 = vsub.f32 %v793, %v2034
        %v2036 = vand.u32 %v2035, 4294901760
        %v2037 = vsub.f32 %v2035, %v2036
        %v2038 = vand.u32 %v2037, 4294901760
        %2039 = vmatpush.msra.mxu0 %v2038
        %v2040 = vand.u32 %v792, 4294901760
        %v2041 = vsub.f32 %v792, %v2040
        %v2042 = vand.u32 %v2041, 4294901760
        %v2043 = vsub.f32 %v2041, %v2042
        %v2044 = vand.u32 %v2043, 4294901760
        %2045 = vmatpush.msra.mxu0 %v2044
        %v2046 = vand.u32 %v1907, 4294901760
        %2047 = vmatmul.f32.gmra.mxu0 %v2046
        %v2048 = vpop.f32.mrf.mxu0
        %v2049 = vadd.f32 %v1948, %v2048
        %2050 = vdwg.mxu0
        %v2051 = vand.u32 %v807, 4294901760
        %v2052 = vsub.f32 %v807, %v2051
        %2053 = vmatpush.msra.mxu0 %v2052
        %v2054 = vand.u32 %v806, 4294901760
        %v2055 = vsub.f32 %v806, %v2054
        %2056 = vmatpush.msra.mxu0 %v2055
        %v2057 = vand.u32 %v805, 4294901760
        %v2058 = vsub.f32 %v805, %v2057
        %2059 = vmatpush.msra.mxu0 %v2058
        %v2060 = vand.u32 %v804, 4294901760
        %v2061 = vsub.f32 %v804, %v2060
        %2062 = vmatpush.msra.mxu0 %v2061
        %v2063 = vand.u32 %v803, 4294901760
        %v2064 = vsub.f32 %v803, %v2063
        %2065 = vmatpush.msra.mxu0 %v2064
        %v2066 = vand.u32 %v802, 4294901760
        %v2067 = vsub.f32 %v802, %v2066
        %2068 = vmatpush.msra.mxu0 %v2067
        %v2069 = vand.u32 %v801, 4294901760
        %v2070 = vsub.f32 %v801, %v2069
        %2071 = vmatpush.msra.mxu0 %v2070
        %v2072 = vand.u32 %v800, 4294901760
        %v2073 = vsub.f32 %v800, %v2072
        %2074 = vmatpush.msra.mxu0 %v2073
        %v2075 = vand.u32 %v799, 4294901760
        %v2076 = vsub.f32 %v799, %v2075
        %2077 = vmatpush.msra.mxu0 %v2076
        %v2078 = vand.u32 %v798, 4294901760
        %v2079 = vsub.f32 %v798, %v2078
        %2080 = vmatpush.msra.mxu0 %v2079
        %v2081 = vand.u32 %v797, 4294901760
        %v2082 = vsub.f32 %v797, %v2081
        %2083 = vmatpush.msra.mxu0 %v2082
        %v2084 = vand.u32 %v796, 4294901760
        %v2085 = vsub.f32 %v796, %v2084
        %2086 = vmatpush.msra.mxu0 %v2085
        %v2087 = vand.u32 %v795, 4294901760
        %v2088 = vsub.f32 %v795, %v2087
        %2089 = vmatpush.msra.mxu0 %v2088
        %v2090 = vand.u32 %v794, 4294901760
        %v2091 = vsub.f32 %v794, %v2090
        %2092 = vmatpush.msra.mxu0 %v2091
        %v2093 = vand.u32 %v793, 4294901760
        %v2094 = vsub.f32 %v793, %v2093
        %2095 = vmatpush.msra.mxu0 %v2094
        %v2096 = vand.u32 %v792, 4294901760
        %v2097 = vsub.f32 %v792, %v2096
        %2098 = vmatpush.msra.mxu0 %v2097
        %v2099 = vand.u32 %v1907, 4294901760
        %v2100 = vsub.f32 %v1907, %v2099
        %2101 = vmatmul.f32.gmra.mxu0 %v2100
        %v2102 = vpop.f32.mrf.mxu0
        %v2103 = vadd.f32 %v2049, %v2102
        %2104 = vdwg.mxu0
        %v2105 = vand.u32 %v807, 4294901760
        %2106 = vmatpush.msra.mxu0 %v2105
        %v2107 = vand.u32 %v806, 4294901760
        %2108 = vmatpush.msra.mxu0 %v2107
        %v2109 = vand.u32 %v805, 4294901760
        %2110 = vmatpush.msra.mxu0 %v2109
        %v2111 = vand.u32 %v804, 4294901760
        %2112 = vmatpush.msra.mxu0 %v2111
        %v2113 = vand.u32 %v803, 4294901760
        %2114 = vmatpush.msra.mxu0 %v2113
        %v2115 = vand.u32 %v802, 4294901760
        %2116 = vmatpush.msra.mxu0 %v2115
        %v2117 = vand.u32 %v801, 4294901760
        %2118 = vmatpush.msra.mxu0 %v2117
        %v2119 = vand.u32 %v800, 4294901760
        %2120 = vmatpush.msra.mxu0 %v2119
        %v2121 = vand.u32 %v799, 4294901760
        %2122 = vmatpush.msra.mxu0 %v2121
        %v2123 = vand.u32 %v798, 4294901760
        %2124 = vmatpush.msra.mxu0 %v2123
        %v2125 = vand.u32 %v797, 4294901760
        %2126 = vmatpush.msra.mxu0 %v2125
        %v2127 = vand.u32 %v796, 4294901760
        %2128 = vmatpush.msra.mxu0 %v2127
        %v2129 = vand.u32 %v795, 4294901760
        %2130 = vmatpush.msra.mxu0 %v2129
        %v2131 = vand.u32 %v794, 4294901760
        %2132 = vmatpush.msra.mxu0 %v2131
        %v2133 = vand.u32 %v793, 4294901760
        %2134 = vmatpush.msra.mxu0 %v2133
        %v2135 = vand.u32 %v792, 4294901760
        %2136 = vmatpush.msra.mxu0 %v2135
        %v2137 = vand.u32 %v1907, 4294901760
        %v2138 = vsub.f32 %v1907, %v2137
        %v2139 = vand.u32 %v2138, 4294901760
        %2140 = vmatmul.f32.gmra.mxu0 %v2139
        %v2141 = vpop.f32.mrf.mxu0
        %v2142 = vadd.f32 %v2103, %v2141
        %2143 = vdwg.mxu0
        %v2144 = vand.u32 %v807, 4294901760
        %v2145 = vsub.f32 %v807, %v2144
        %v2146 = vand.u32 %v2145, 4294901760
        %2147 = vmatpush.msra.mxu0 %v2146
        %v2148 = vand.u32 %v806, 4294901760
        %v2149 = vsub.f32 %v806, %v2148
        %v2150 = vand.u32 %v2149, 4294901760
        %2151 = vmatpush.msra.mxu0 %v2150
        %v2152 = vand.u32 %v805, 4294901760
        %v2153 = vsub.f32 %v805, %v2152
        %v2154 = vand.u32 %v2153, 4294901760
        %2155 = vmatpush.msra.mxu0 %v2154
        %v2156 = vand.u32 %v804, 4294901760
        %v2157 = vsub.f32 %v804, %v2156
        %v2158 = vand.u32 %v2157, 4294901760
        %2159 = vmatpush.msra.mxu0 %v2158
        %v2160 = vand.u32 %v803, 4294901760
        %v2161 = vsub.f32 %v803, %v2160
        %v2162 = vand.u32 %v2161, 4294901760
        %2163 = vmatpush.msra.mxu0 %v2162
        %v2164 = vand.u32 %v802, 4294901760
        %v2165 = vsub.f32 %v802, %v2164
        %v2166 = vand.u32 %v2165, 4294901760
        %2167 = vmatpush.msra.mxu0 %v2166
        %v2168 = vand.u32 %v801, 4294901760
        %v2169 = vsub.f32 %v801, %v2168
        %v2170 = vand.u32 %v2169, 4294901760
        %2171 = vmatpush.msra.mxu0 %v2170
        %v2172 = vand.u32 %v800, 4294901760
        %v2173 = vsub.f32 %v800, %v2172
        %v2174 = vand.u32 %v2173, 4294901760
        %2175 = vmatpush.msra.mxu0 %v2174
        %v2176 = vand.u32 %v799, 4294901760
        %v2177 = vsub.f32 %v799, %v2176
        %v2178 = vand.u32 %v2177, 4294901760
        %2179 = vmatpush.msra.mxu0 %v2178
        %v2180 = vand.u32 %v798, 4294901760
        %v2181 = vsub.f32 %v798, %v2180
        %v2182 = vand.u32 %v2181, 4294901760
        %2183 = vmatpush.msra.mxu0 %v2182
        %v2184 = vand.u32 %v797, 4294901760
        %v2185 = vsub.f32 %v797, %v2184
        %v2186 = vand.u32 %v2185, 4294901760
        %2187 = vmatpush.msra.mxu0 %v2186
        %v2188 = vand.u32 %v796, 4294901760
        %v2189 = vsub.f32 %v796, %v2188
        %v2190 = vand.u32 %v2189, 4294901760
        %2191 = vmatpush.msra.mxu0 %v2190
        %v2192 = vand.u32 %v795, 4294901760
        %v2193 = vsub.f32 %v795, %v2192
        %v2194 = vand.u32 %v2193, 4294901760
        %2195 = vmatpush.msra.mxu0 %v2194
        %v2196 = vand.u32 %v794, 4294901760
        %v2197 = vsub.f32 %v794, %v2196
        %v2198 = vand.u32 %v2197, 4294901760
        %2199 = vmatpush.msra.mxu0 %v2198
        %v2200 = vand.u32 %v793, 4294901760
        %v2201 = vsub.f32 %v793, %v2200
        %v2202 = vand.u32 %v2201, 4294901760
        %2203 = vmatpush.msra.mxu0 %v2202
        %v2204 = vand.u32 %v792, 4294901760
        %v2205 = vsub.f32 %v792, %v2204
        %v2206 = vand.u32 %v2205, 4294901760
        %2207 = vmatpush.msra.mxu0 %v2206
        %v2208 = vand.u32 %v1907, 4294901760
        %2209 = vmatmul.f32.gmra.mxu0 %v2208
        %v2210 = vpop.f32.mrf.mxu0
        %v2211 = vadd.f32 %v2142, %v2210
        %2212 = vdwg.mxu0
        %v2213 = vand.u32 %v807, 4294901760
        %2214 = vmatpush.msra.mxu0 %v2213
        %v2215 = vand.u32 %v806, 4294901760
        %2216 = vmatpush.msra.mxu0 %v2215
        %v2217 = vand.u32 %v805, 4294901760
        %2218 = vmatpush.msra.mxu0 %v2217
        %v2219 = vand.u32 %v804, 4294901760
        %2220 = vmatpush.msra.mxu0 %v2219
        %v2221 = vand.u32 %v803, 4294901760
        %2222 = vmatpush.msra.mxu0 %v2221
        %v2223 = vand.u32 %v802, 4294901760
        %2224 = vmatpush.msra.mxu0 %v2223
        %v2225 = vand.u32 %v801, 4294901760
        %2226 = vmatpush.msra.mxu0 %v2225
        %v2227 = vand.u32 %v800, 4294901760
        %2228 = vmatpush.msra.mxu0 %v2227
        %v2229 = vand.u32 %v799, 4294901760
        %2230 = vmatpush.msra.mxu0 %v2229
        %v2231 = vand.u32 %v798, 4294901760
        %2232 = vmatpush.msra.mxu0 %v2231
        %v2233 = vand.u32 %v797, 4294901760
        %2234 = vmatpush.msra.mxu0 %v2233
        %v2235 = vand.u32 %v796, 4294901760
        %2236 = vmatpush.msra.mxu0 %v2235
        %v2237 = vand.u32 %v795, 4294901760
        %2238 = vmatpush.msra.mxu0 %v2237
        %v2239 = vand.u32 %v794, 4294901760
        %2240 = vmatpush.msra.mxu0 %v2239
        %v2241 = vand.u32 %v793, 4294901760
        %2242 = vmatpush.msra.mxu0 %v2241
        %v2243 = vand.u32 %v792, 4294901760
        %2244 = vmatpush.msra.mxu0 %v2243
        %v2245 = vand.u32 %v1907, 4294901760
        %2246 = vmatmul.f32.gmra.mxu0 %v2245
        %v2247 = vpop.f32.mrf.mxu0
        %v2248 = vadd.f32 %v2211, %v2247
        %2249 = vdwg.mxu0
        %v2250 = vrot.slane %v872, 4
        %v2252 = vand.u32 %v823, 4294901760
        %2253 = vmatpush.msra.mxu0 %v2252
        %v2254 = vand.u32 %v822, 4294901760
        %2255 = vmatpush.msra.mxu0 %v2254
        %v2256 = vand.u32 %v821, 4294901760
        %2257 = vmatpush.msra.mxu0 %v2256
        %v2258 = vand.u32 %v820, 4294901760
        %2259 = vmatpush.msra.mxu0 %v2258
        %v2260 = vand.u32 %v819, 4294901760
        %2261 = vmatpush.msra.mxu0 %v2260
        %v2262 = vand.u32 %v818, 4294901760
        %2263 = vmatpush.msra.mxu0 %v2262
        %v2264 = vand.u32 %v817, 4294901760
        %2265 = vmatpush.msra.mxu0 %v2264
        %v2266 = vand.u32 %v816, 4294901760
        %2267 = vmatpush.msra.mxu0 %v2266
        %v2268 = vand.u32 %v815, 4294901760
        %2269 = vmatpush.msra.mxu0 %v2268
        %v2270 = vand.u32 %v814, 4294901760
        %2271 = vmatpush.msra.mxu0 %v2270
        %v2272 = vand.u32 %v813, 4294901760
        %2273 = vmatpush.msra.mxu0 %v2272
        %v2274 = vand.u32 %v812, 4294901760
        %2275 = vmatpush.msra.mxu0 %v2274
        %v2276 = vand.u32 %v811, 4294901760
        %2277 = vmatpush.msra.mxu0 %v2276
        %v2278 = vand.u32 %v810, 4294901760
        %2279 = vmatpush.msra.mxu0 %v2278
        %v2280 = vand.u32 %v809, 4294901760
        %2281 = vmatpush.msra.mxu0 %v2280
        %v2282 = vand.u32 %v808, 4294901760
        %2283 = vmatpush.msra.mxu0 %v2282
        %v2284 = vand.u32 %v2250, 4294901760
        %v2285 = vsub.f32 %v2250, %v2284
        %v2286 = vand.u32 %v2285, 4294901760
        %v2287 = vsub.f32 %v2285, %v2286
        %v2288 = vand.u32 %v2287, 4294901760
        %2289 = vmatmul.f32.gmra.mxu0 %v2288
        %v2290 = vpop.f32.mrf.mxu0
        %v2291 = vadd.f32 0.0, %v2290
        %2292 = vdwg.mxu0
        %v2293 = vand.u32 %v823, 4294901760
        %v2294 = vsub.f32 %v823, %v2293
        %v2295 = vand.u32 %v2294, 4294901760
        %v2296 = vsub.f32 %v2294, %v2295
        %v2297 = vand.u32 %v2296, 4294901760
        %2298 = vmatpush.msra.mxu0 %v2297
        %v2299 = vand.u32 %v822, 4294901760
        %v2300 = vsub.f32 %v822, %v2299
        %v2301 = vand.u32 %v2300, 4294901760
        %v2302 = vsub.f32 %v2300, %v2301
        %v2303 = vand.u32 %v2302, 4294901760
        %2304 = vmatpush.msra.mxu0 %v2303
        %v2305 = vand.u32 %v821, 4294901760
        %v2306 = vsub.f32 %v821, %v2305
        %v2307 = vand.u32 %v2306, 4294901760
        %v2308 = vsub.f32 %v2306, %v2307
        %v2309 = vand.u32 %v2308, 4294901760
        %2310 = vmatpush.msra.mxu0 %v2309
        %v2311 = vand.u32 %v820, 4294901760
        %v2312 = vsub.f32 %v820, %v2311
        %v2313 = vand.u32 %v2312, 4294901760
        %v2314 = vsub.f32 %v2312, %v2313
        %v2315 = vand.u32 %v2314, 4294901760
        %2316 = vmatpush.msra.mxu0 %v2315
        %v2317 = vand.u32 %v819, 4294901760
        %v2318 = vsub.f32 %v819, %v2317
        %v2319 = vand.u32 %v2318, 4294901760
        %v2320 = vsub.f32 %v2318, %v2319
        %v2321 = vand.u32 %v2320, 4294901760
        %2322 = vmatpush.msra.mxu0 %v2321
        %v2323 = vand.u32 %v818, 4294901760
        %v2324 = vsub.f32 %v818, %v2323
        %v2325 = vand.u32 %v2324, 4294901760
        %v2326 = vsub.f32 %v2324, %v2325
        %v2327 = vand.u32 %v2326, 4294901760
        %2328 = vmatpush.msra.mxu0 %v2327
        %v2329 = vand.u32 %v817, 4294901760
        %v2330 = vsub.f32 %v817, %v2329
        %v2331 = vand.u32 %v2330, 4294901760
        %v2332 = vsub.f32 %v2330, %v2331
        %v2333 = vand.u32 %v2332, 4294901760
        %2334 = vmatpush.msra.mxu0 %v2333
        %v2335 = vand.u32 %v816, 4294901760
        %v2336 = vsub.f32 %v816, %v2335
        %v2337 = vand.u32 %v2336, 4294901760
        %v2338 = vsub.f32 %v2336, %v2337
        %v2339 = vand.u32 %v2338, 4294901760
        %2340 = vmatpush.msra.mxu0 %v2339
        %v2341 = vand.u32 %v815, 4294901760
        %v2342 = vsub.f32 %v815, %v2341
        %v2343 = vand.u32 %v2342, 4294901760
        %v2344 = vsub.f32 %v2342, %v2343
        %v2345 = vand.u32 %v2344, 4294901760
        %2346 = vmatpush.msra.mxu0 %v2345
        %v2347 = vand.u32 %v814, 4294901760
        %v2348 = vsub.f32 %v814, %v2347
        %v2349 = vand.u32 %v2348, 4294901760
        %v2350 = vsub.f32 %v2348, %v2349
        %v2351 = vand.u32 %v2350, 4294901760
        %2352 = vmatpush.msra.mxu0 %v2351
        %v2353 = vand.u32 %v813, 4294901760
        %v2354 = vsub.f32 %v813, %v2353
        %v2355 = vand.u32 %v2354, 4294901760
        %v2356 = vsub.f32 %v2354, %v2355
        %v2357 = vand.u32 %v2356, 4294901760
        %2358 = vmatpush.msra.mxu0 %v2357
        %v2359 = vand.u32 %v812, 4294901760
        %v2360 = vsub.f32 %v812, %v2359
        %v2361 = vand.u32 %v2360, 4294901760
        %v2362 = vsub.f32 %v2360, %v2361
        %v2363 = vand.u32 %v2362, 4294901760
        %2364 = vmatpush.msra.mxu0 %v2363
        %v2365 = vand.u32 %v811, 4294901760
        %v2366 = vsub.f32 %v811, %v2365
        %v2367 = vand.u32 %v2366, 4294901760
        %v2368 = vsub.f32 %v2366, %v2367
        %v2369 = vand.u32 %v2368, 4294901760
        %2370 = vmatpush.msra.mxu0 %v2369
        %v2371 = vand.u32 %v810, 4294901760
        %v2372 = vsub.f32 %v810, %v2371
        %v2373 = vand.u32 %v2372, 4294901760
        %v2374 = vsub.f32 %v2372, %v2373
        %v2375 = vand.u32 %v2374, 4294901760
        %2376 = vmatpush.msra.mxu0 %v2375
        %v2377 = vand.u32 %v809, 4294901760
        %v2378 = vsub.f32 %v809, %v2377
        %v2379 = vand.u32 %v2378, 4294901760
        %v2380 = vsub.f32 %v2378, %v2379
        %v2381 = vand.u32 %v2380, 4294901760
        %2382 = vmatpush.msra.mxu0 %v2381
        %v2383 = vand.u32 %v808, 4294901760
        %v2384 = vsub.f32 %v808, %v2383
        %v2385 = vand.u32 %v2384, 4294901760
        %v2386 = vsub.f32 %v2384, %v2385
        %v2387 = vand.u32 %v2386, 4294901760
        %2388 = vmatpush.msra.mxu0 %v2387
        %v2389 = vand.u32 %v2250, 4294901760
        %2390 = vmatmul.f32.gmra.mxu0 %v2389
        %v2391 = vpop.f32.mrf.mxu0
        %v2392 = vadd.f32 %v2291, %v2391
        %2393 = vdwg.mxu0
        %v2394 = vand.u32 %v823, 4294901760
        %v2395 = vsub.f32 %v823, %v2394
        %2396 = vmatpush.msra.mxu0 %v2395
        %v2397 = vand.u32 %v822, 4294901760
        %v2398 = vsub.f32 %v822, %v2397
        %2399 = vmatpush.msra.mxu0 %v2398
        %v2400 = vand.u32 %v821, 4294901760
        %v2401 = vsub.f32 %v821, %v2400
        %2402 = vmatpush.msra.mxu0 %v2401
        %v2403 = vand.u32 %v820, 4294901760
        %v2404 = vsub.f32 %v820, %v2403
        %2405 = vmatpush.msra.mxu0 %v2404
        %v2406 = vand.u32 %v819, 4294901760
        %v2407 = vsub.f32 %v819, %v2406
        %2408 = vmatpush.msra.mxu0 %v2407
        %v2409 = vand.u32 %v818, 4294901760
        %v2410 = vsub.f32 %v818, %v2409
        %2411 = vmatpush.msra.mxu0 %v2410
        %v2412 = vand.u32 %v817, 4294901760
        %v2413 = vsub.f32 %v817, %v2412
        %2414 = vmatpush.msra.mxu0 %v2413
        %v2415 = vand.u32 %v816, 4294901760
        %v2416 = vsub.f32 %v816, %v2415
        %2417 = vmatpush.msra.mxu0 %v2416
        %v2418 = vand.u32 %v815, 4294901760
        %v2419 = vsub.f32 %v815, %v2418
        %2420 = vmatpush.msra.mxu0 %v2419
        %v2421 = vand.u32 %v814, 4294901760
        %v2422 = vsub.f32 %v814, %v2421
        %2423 = vmatpush.msra.mxu0 %v2422
        %v2424 = vand.u32 %v813, 4294901760
        %v2425 = vsub.f32 %v813, %v2424
        %2426 = vmatpush.msra.mxu0 %v2425
        %v2427 = vand.u32 %v812, 4294901760
        %v2428 = vsub.f32 %v812, %v2427
        %2429 = vmatpush.msra.mxu0 %v2428
        %v2430 = vand.u32 %v811, 4294901760
        %v2431 = vsub.f32 %v811, %v2430
        %2432 = vmatpush.msra.mxu0 %v2431
        %v2433 = vand.u32 %v810, 4294901760
        %v2434 = vsub.f32 %v810, %v2433
        %2435 = vmatpush.msra.mxu0 %v2434
        %v2436 = vand.u32 %v809, 4294901760
        %v2437 = vsub.f32 %v809, %v2436
        %2438 = vmatpush.msra.mxu0 %v2437
        %v2439 = vand.u32 %v808, 4294901760
        %v2440 = vsub.f32 %v808, %v2439
        %2441 = vmatpush.msra.mxu0 %v2440
        %v2442 = vand.u32 %v2250, 4294901760
        %v2443 = vsub.f32 %v2250, %v2442
        %2444 = vmatmul.f32.gmra.mxu0 %v2443
        %v2445 = vpop.f32.mrf.mxu0
        %v2446 = vadd.f32 %v2392, %v2445
        %2447 = vdwg.mxu0
        %v2448 = vand.u32 %v823, 4294901760
        %2449 = vmatpush.msra.mxu0 %v2448
        %v2450 = vand.u32 %v822, 4294901760
        %2451 = vmatpush.msra.mxu0 %v2450
        %v2452 = vand.u32 %v821, 4294901760
        %2453 = vmatpush.msra.mxu0 %v2452
        %v2454 = vand.u32 %v820, 4294901760
        %2455 = vmatpush.msra.mxu0 %v2454
        %v2456 = vand.u32 %v819, 4294901760
        %2457 = vmatpush.msra.mxu0 %v2456
        %v2458 = vand.u32 %v818, 4294901760
        %2459 = vmatpush.msra.mxu0 %v2458
        %v2460 = vand.u32 %v817, 4294901760
        %2461 = vmatpush.msra.mxu0 %v2460
        %v2462 = vand.u32 %v816, 4294901760
        %2463 = vmatpush.msra.mxu0 %v2462
        %v2464 = vand.u32 %v815, 4294901760
        %2465 = vmatpush.msra.mxu0 %v2464
        %v2466 = vand.u32 %v814, 4294901760
        %2467 = vmatpush.msra.mxu0 %v2466
        %v2468 = vand.u32 %v813, 4294901760
        %2469 = vmatpush.msra.mxu0 %v2468
        %v2470 = vand.u32 %v812, 4294901760
        %2471 = vmatpush.msra.mxu0 %v2470
        %v2472 = vand.u32 %v811, 4294901760
        %2473 = vmatpush.msra.mxu0 %v2472
        %v2474 = vand.u32 %v810, 4294901760
        %2475 = vmatpush.msra.mxu0 %v2474
        %v2476 = vand.u32 %v809, 4294901760
        %2477 = vmatpush.msra.mxu0 %v2476
        %v2478 = vand.u32 %v808, 4294901760
        %2479 = vmatpush.msra.mxu0 %v2478
        %v2480 = vand.u32 %v2250, 4294901760
        %v2481 = vsub.f32 %v2250, %v2480
        %v2482 = vand.u32 %v2481, 4294901760
        %2483 = vmatmul.f32.gmra.mxu0 %v2482
        %v2484 = vpop.f32.mrf.mxu0
        %v2485 = vadd.f32 %v2446, %v2484
        %2486 = vdwg.mxu0
        %v2487 = vand.u32 %v823, 4294901760
        %v2488 = vsub.f32 %v823, %v2487
        %v2489 = vand.u32 %v2488, 4294901760
        %2490 = vmatpush.msra.mxu0 %v2489
        %v2491 = vand.u32 %v822, 4294901760
        %v2492 = vsub.f32 %v822, %v2491
        %v2493 = vand.u32 %v2492, 4294901760
        %2494 = vmatpush.msra.mxu0 %v2493
        %v2495 = vand.u32 %v821, 4294901760
        %v2496 = vsub.f32 %v821, %v2495
        %v2497 = vand.u32 %v2496, 4294901760
        %2498 = vmatpush.msra.mxu0 %v2497
        %v2499 = vand.u32 %v820, 4294901760
        %v2500 = vsub.f32 %v820, %v2499
        %v2501 = vand.u32 %v2500, 4294901760
        %2502 = vmatpush.msra.mxu0 %v2501
        %v2503 = vand.u32 %v819, 4294901760
        %v2504 = vsub.f32 %v819, %v2503
        %v2505 = vand.u32 %v2504, 4294901760
        %2506 = vmatpush.msra.mxu0 %v2505
        %v2507 = vand.u32 %v818, 4294901760
        %v2508 = vsub.f32 %v818, %v2507
        %v2509 = vand.u32 %v2508, 4294901760
        %2510 = vmatpush.msra.mxu0 %v2509
        %v2511 = vand.u32 %v817, 4294901760
        %v2512 = vsub.f32 %v817, %v2511
        %v2513 = vand.u32 %v2512, 4294901760
        %2514 = vmatpush.msra.mxu0 %v2513
        %v2515 = vand.u32 %v816, 4294901760
        %v2516 = vsub.f32 %v816, %v2515
        %v2517 = vand.u32 %v2516, 4294901760
        %2518 = vmatpush.msra.mxu0 %v2517
        %v2519 = vand.u32 %v815, 4294901760
        %v2520 = vsub.f32 %v815, %v2519
        %v2521 = vand.u32 %v2520, 4294901760
        %2522 = vmatpush.msra.mxu0 %v2521
        %v2523 = vand.u32 %v814, 4294901760
        %v2524 = vsub.f32 %v814, %v2523
        %v2525 = vand.u32 %v2524, 4294901760
        %2526 = vmatpush.msra.mxu0 %v2525
        %v2527 = vand.u32 %v813, 4294901760
        %v2528 = vsub.f32 %v813, %v2527
        %v2529 = vand.u32 %v2528, 4294901760
        %2530 = vmatpush.msra.mxu0 %v2529
        %v2531 = vand.u32 %v812, 4294901760
        %v2532 = vsub.f32 %v812, %v2531
        %v2533 = vand.u32 %v2532, 4294901760
        %2534 = vmatpush.msra.mxu0 %v2533
        %v2535 = vand.u32 %v811, 4294901760
        %v2536 = vsub.f32 %v811, %v2535
        %v2537 = vand.u32 %v2536, 4294901760
        %2538 = vmatpush.msra.mxu0 %v2537
        %v2539 = vand.u32 %v810, 4294901760
        %v2540 = vsub.f32 %v810, %v2539
        %v2541 = vand.u32 %v2540, 4294901760
        %2542 = vmatpush.msra.mxu0 %v2541
        %v2543 = vand.u32 %v809, 4294901760
        %v2544 = vsub.f32 %v809, %v2543
        %v2545 = vand.u32 %v2544, 4294901760
        %2546 = vmatpush.msra.mxu0 %v2545
        %v2547 = vand.u32 %v808, 4294901760
        %v2548 = vsub.f32 %v808, %v2547
        %v2549 = vand.u32 %v2548, 4294901760
        %2550 = vmatpush.msra.mxu0 %v2549
        %v2551 = vand.u32 %v2250, 4294901760
        %2552 = vmatmul.f32.gmra.mxu0 %v2551
        %v2553 = vpop.f32.mrf.mxu0
        %v2554 = vadd.f32 %v2485, %v2553
        %2555 = vdwg.mxu0
        %v2556 = vand.u32 %v823, 4294901760
        %2557 = vmatpush.msra.mxu0 %v2556
        %v2558 = vand.u32 %v822, 4294901760
        %2559 = vmatpush.msra.mxu0 %v2558
        %v2560 = vand.u32 %v821, 4294901760
        %2561 = vmatpush.msra.mxu0 %v2560
        %v2562 = vand.u32 %v820, 4294901760
        %2563 = vmatpush.msra.mxu0 %v2562
        %v2564 = vand.u32 %v819, 4294901760
        %2565 = vmatpush.msra.mxu0 %v2564
        %v2566 = vand.u32 %v818, 4294901760
        %2567 = vmatpush.msra.mxu0 %v2566
        %v2568 = vand.u32 %v817, 4294901760
        %2569 = vmatpush.msra.mxu0 %v2568
        %v2570 = vand.u32 %v816, 4294901760
        %2571 = vmatpush.msra.mxu0 %v2570
        %v2572 = vand.u32 %v815, 4294901760
        %2573 = vmatpush.msra.mxu0 %v2572
        %v2574 = vand.u32 %v814, 4294901760
        %2575 = vmatpush.msra.mxu0 %v2574
        %v2576 = vand.u32 %v813, 4294901760
        %2577 = vmatpush.msra.mxu0 %v2576
        %v2578 = vand.u32 %v812, 4294901760
        %2579 = vmatpush.msra.mxu0 %v2578
        %v2580 = vand.u32 %v811, 4294901760
        %2581 = vmatpush.msra.mxu0 %v2580
        %v2582 = vand.u32 %v810, 4294901760
        %2583 = vmatpush.msra.mxu0 %v2582
        %v2584 = vand.u32 %v809, 4294901760
        %2585 = vmatpush.msra.mxu0 %v2584
        %v2586 = vand.u32 %v808, 4294901760
        %2587 = vmatpush.msra.mxu0 %v2586
        %v2588 = vand.u32 %v2250, 4294901760
        %2589 = vmatmul.f32.gmra.mxu0 %v2588
        %v2590 = vpop.f32.mrf.mxu0
        %v2591 = vadd.f32 %v2554, %v2590
        %2592 = vdwg.mxu0
        %v2593 = vrot.slane %v872, 5
        %v2595 = vand.u32 %v839, 4294901760
        %2596 = vmatpush.msra.mxu0 %v2595
        %v2597 = vand.u32 %v838, 4294901760
        %2598 = vmatpush.msra.mxu0 %v2597
        %v2599 = vand.u32 %v837, 4294901760
        %2600 = vmatpush.msra.mxu0 %v2599
        %v2601 = vand.u32 %v836, 4294901760
        %2602 = vmatpush.msra.mxu0 %v2601
        %v2603 = vand.u32 %v835, 4294901760
        %2604 = vmatpush.msra.mxu0 %v2603
        %v2605 = vand.u32 %v834, 4294901760
        %2606 = vmatpush.msra.mxu0 %v2605
        %v2607 = vand.u32 %v833, 4294901760
        %2608 = vmatpush.msra.mxu0 %v2607
        %v2609 = vand.u32 %v832, 4294901760
        %2610 = vmatpush.msra.mxu0 %v2609
        %v2611 = vand.u32 %v831, 4294901760
        %2612 = vmatpush.msra.mxu0 %v2611
        %v2613 = vand.u32 %v830, 4294901760
        %2614 = vmatpush.msra.mxu0 %v2613
        %v2615 = vand.u32 %v829, 4294901760
        %2616 = vmatpush.msra.mxu0 %v2615
        %v2617 = vand.u32 %v828, 4294901760
        %2618 = vmatpush.msra.mxu0 %v2617
        %v2619 = vand.u32 %v827, 4294901760
        %2620 = vmatpush.msra.mxu0 %v2619
        %v2621 = vand.u32 %v826, 4294901760
        %2622 = vmatpush.msra.mxu0 %v2621
        %v2623 = vand.u32 %v825, 4294901760
        %2624 = vmatpush.msra.mxu0 %v2623
        %v2625 = vand.u32 %v824, 4294901760
        %2626 = vmatpush.msra.mxu0 %v2625
        %v2627 = vand.u32 %v2593, 4294901760
        %v2628 = vsub.f32 %v2593, %v2627
        %v2629 = vand.u32 %v2628, 4294901760
        %v2630 = vsub.f32 %v2628, %v2629
        %v2631 = vand.u32 %v2630, 4294901760
        %2632 = vmatmul.f32.gmra.mxu0 %v2631
        %v2633 = vpop.f32.mrf.mxu0
        %v2634 = vadd.f32 0.0, %v2633
        %2635 = vdwg.mxu0
        %v2636 = vand.u32 %v839, 4294901760
        %v2637 = vsub.f32 %v839, %v2636
        %v2638 = vand.u32 %v2637, 4294901760
        %v2639 = vsub.f32 %v2637, %v2638
        %v2640 = vand.u32 %v2639, 4294901760
        %2641 = vmatpush.msra.mxu0 %v2640
        %v2642 = vand.u32 %v838, 4294901760
        %v2643 = vsub.f32 %v838, %v2642
        %v2644 = vand.u32 %v2643, 4294901760
        %v2645 = vsub.f32 %v2643, %v2644
        %v2646 = vand.u32 %v2645, 4294901760
        %2647 = vmatpush.msra.mxu0 %v2646
        %v2648 = vand.u32 %v837, 4294901760
        %v2649 = vsub.f32 %v837, %v2648
        %v2650 = vand.u32 %v2649, 4294901760
        %v2651 = vsub.f32 %v2649, %v2650
        %v2652 = vand.u32 %v2651, 4294901760
        %2653 = vmatpush.msra.mxu0 %v2652
        %v2654 = vand.u32 %v836, 4294901760
        %v2655 = vsub.f32 %v836, %v2654
        %v2656 = vand.u32 %v2655, 4294901760
        %v2657 = vsub.f32 %v2655, %v2656
        %v2658 = vand.u32 %v2657, 4294901760
        %2659 = vmatpush.msra.mxu0 %v2658
        %v2660 = vand.u32 %v835, 4294901760
        %v2661 = vsub.f32 %v835, %v2660
        %v2662 = vand.u32 %v2661, 4294901760
        %v2663 = vsub.f32 %v2661, %v2662
        %v2664 = vand.u32 %v2663, 4294901760
        %2665 = vmatpush.msra.mxu0 %v2664
        %v2666 = vand.u32 %v834, 4294901760
        %v2667 = vsub.f32 %v834, %v2666
        %v2668 = vand.u32 %v2667, 4294901760
        %v2669 = vsub.f32 %v2667, %v2668
        %v2670 = vand.u32 %v2669, 4294901760
        %2671 = vmatpush.msra.mxu0 %v2670
        %v2672 = vand.u32 %v833, 4294901760
        %v2673 = vsub.f32 %v833, %v2672
        %v2674 = vand.u32 %v2673, 4294901760
        %v2675 = vsub.f32 %v2673, %v2674
        %v2676 = vand.u32 %v2675, 4294901760
        %2677 = vmatpush.msra.mxu0 %v2676
        %v2678 = vand.u32 %v832, 4294901760
        %v2679 = vsub.f32 %v832, %v2678
        %v2680 = vand.u32 %v2679, 4294901760
        %v2681 = vsub.f32 %v2679, %v2680
        %v2682 = vand.u32 %v2681, 4294901760
        %2683 = vmatpush.msra.mxu0 %v2682
        %v2684 = vand.u32 %v831, 4294901760
        %v2685 = vsub.f32 %v831, %v2684
        %v2686 = vand.u32 %v2685, 4294901760
        %v2687 = vsub.f32 %v2685, %v2686
        %v2688 = vand.u32 %v2687, 4294901760
        %2689 = vmatpush.msra.mxu0 %v2688
        %v2690 = vand.u32 %v830, 4294901760
        %v2691 = vsub.f32 %v830, %v2690
        %v2692 = vand.u32 %v2691, 4294901760
        %v2693 = vsub.f32 %v2691, %v2692
        %v2694 = vand.u32 %v2693, 4294901760
        %2695 = vmatpush.msra.mxu0 %v2694
        %v2696 = vand.u32 %v829, 4294901760
        %v2697 = vsub.f32 %v829, %v2696
        %v2698 = vand.u32 %v2697, 4294901760
        %v2699 = vsub.f32 %v2697, %v2698
        %v2700 = vand.u32 %v2699, 4294901760
        %2701 = vmatpush.msra.mxu0 %v2700
        %v2702 = vand.u32 %v828, 4294901760
        %v2703 = vsub.f32 %v828, %v2702
        %v2704 = vand.u32 %v2703, 4294901760
        %v2705 = vsub.f32 %v2703, %v2704
        %v2706 = vand.u32 %v2705, 4294901760
        %2707 = vmatpush.msra.mxu0 %v2706
        %v2708 = vand.u32 %v827, 4294901760
        %v2709 = vsub.f32 %v827, %v2708
        %v2710 = vand.u32 %v2709, 4294901760
        %v2711 = vsub.f32 %v2709, %v2710
        %v2712 = vand.u32 %v2711, 4294901760
        %2713 = vmatpush.msra.mxu0 %v2712
        %v2714 = vand.u32 %v826, 4294901760
        %v2715 = vsub.f32 %v826, %v2714
        %v2716 = vand.u32 %v2715, 4294901760
        %v2717 = vsub.f32 %v2715, %v2716
        %v2718 = vand.u32 %v2717, 4294901760
        %2719 = vmatpush.msra.mxu0 %v2718
        %v2720 = vand.u32 %v825, 4294901760
        %v2721 = vsub.f32 %v825, %v2720
        %v2722 = vand.u32 %v2721, 4294901760
        %v2723 = vsub.f32 %v2721, %v2722
        %v2724 = vand.u32 %v2723, 4294901760
        %2725 = vmatpush.msra.mxu0 %v2724
        %v2726 = vand.u32 %v824, 4294901760
        %v2727 = vsub.f32 %v824, %v2726
        %v2728 = vand.u32 %v2727, 4294901760
        %v2729 = vsub.f32 %v2727, %v2728
        %v2730 = vand.u32 %v2729, 4294901760
        %2731 = vmatpush.msra.mxu0 %v2730
        %v2732 = vand.u32 %v2593, 4294901760
        %2733 = vmatmul.f32.gmra.mxu0 %v2732
        %v2734 = vpop.f32.mrf.mxu0
        %v2735 = vadd.f32 %v2634, %v2734
        %2736 = vdwg.mxu0
        %v2737 = vand.u32 %v839, 4294901760
        %v2738 = vsub.f32 %v839, %v2737
        %2739 = vmatpush.msra.mxu0 %v2738
        %v2740 = vand.u32 %v838, 4294901760
        %v2741 = vsub.f32 %v838, %v2740
        %2742 = vmatpush.msra.mxu0 %v2741
        %v2743 = vand.u32 %v837, 4294901760
        %v2744 = vsub.f32 %v837, %v2743
        %2745 = vmatpush.msra.mxu0 %v2744
        %v2746 = vand.u32 %v836, 4294901760
        %v2747 = vsub.f32 %v836, %v2746
        %2748 = vmatpush.msra.mxu0 %v2747
        %v2749 = vand.u32 %v835, 4294901760
        %v2750 = vsub.f32 %v835, %v2749
        %2751 = vmatpush.msra.mxu0 %v2750
        %v2752 = vand.u32 %v834, 4294901760
        %v2753 = vsub.f32 %v834, %v2752
        %2754 = vmatpush.msra.mxu0 %v2753
        %v2755 = vand.u32 %v833, 4294901760
        %v2756 = vsub.f32 %v833, %v2755
        %2757 = vmatpush.msra.mxu0 %v2756
        %v2758 = vand.u32 %v832, 4294901760
        %v2759 = vsub.f32 %v832, %v2758
        %2760 = vmatpush.msra.mxu0 %v2759
        %v2761 = vand.u32 %v831, 4294901760
        %v2762 = vsub.f32 %v831, %v2761
        %2763 = vmatpush.msra.mxu0 %v2762
        %v2764 = vand.u32 %v830, 4294901760
        %v2765 = vsub.f32 %v830, %v2764
        %2766 = vmatpush.msra.mxu0 %v2765
        %v2767 = vand.u32 %v829, 4294901760
        %v2768 = vsub.f32 %v829, %v2767
        %2769 = vmatpush.msra.mxu0 %v2768
        %v2770 = vand.u32 %v828, 4294901760
        %v2771 = vsub.f32 %v828, %v2770
        %2772 = vmatpush.msra.mxu0 %v2771
        %v2773 = vand.u32 %v827, 4294901760
        %v2774 = vsub.f32 %v827, %v2773
        %2775 = vmatpush.msra.mxu0 %v2774
        %v2776 = vand.u32 %v826, 4294901760
        %v2777 = vsub.f32 %v826, %v2776
        %2778 = vmatpush.msra.mxu0 %v2777
        %v2779 = vand.u32 %v825, 4294901760
        %v2780 = vsub.f32 %v825, %v2779
        %2781 = vmatpush.msra.mxu0 %v2780
        %v2782 = vand.u32 %v824, 4294901760
        %v2783 = vsub.f32 %v824, %v2782
        %2784 = vmatpush.msra.mxu0 %v2783
        %v2785 = vand.u32 %v2593, 4294901760
        %v2786 = vsub.f32 %v2593, %v2785
        %2787 = vmatmul.f32.gmra.mxu0 %v2786
        %v2788 = vpop.f32.mrf.mxu0
        %v2789 = vadd.f32 %v2735, %v2788
        %2790 = vdwg.mxu0
        %v2791 = vand.u32 %v839, 4294901760
        %2792 = vmatpush.msra.mxu0 %v2791
        %v2793 = vand.u32 %v838, 4294901760
        %2794 = vmatpush.msra.mxu0 %v2793
        %v2795 = vand.u32 %v837, 4294901760
        %2796 = vmatpush.msra.mxu0 %v2795
        %v2797 = vand.u32 %v836, 4294901760
        %2798 = vmatpush.msra.mxu0 %v2797
        %v2799 = vand.u32 %v835, 4294901760
        %2800 = vmatpush.msra.mxu0 %v2799
        %v2801 = vand.u32 %v834, 4294901760
        %2802 = vmatpush.msra.mxu0 %v2801
        %v2803 = vand.u32 %v833, 4294901760
        %2804 = vmatpush.msra.mxu0 %v2803
        %v2805 = vand.u32 %v832, 4294901760
        %2806 = vmatpush.msra.mxu0 %v2805
        %v2807 = vand.u32 %v831, 4294901760
        %2808 = vmatpush.msra.mxu0 %v2807
        %v2809 = vand.u32 %v830, 4294901760
        %2810 = vmatpush.msra.mxu0 %v2809
        %v2811 = vand.u32 %v829, 4294901760
        %2812 = vmatpush.msra.mxu0 %v2811
        %v2813 = vand.u32 %v828, 4294901760
        %2814 = vmatpush.msra.mxu0 %v2813
        %v2815 = vand.u32 %v827, 4294901760
        %2816 = vmatpush.msra.mxu0 %v2815
        %v2817 = vand.u32 %v826, 4294901760
        %2818 = vmatpush.msra.mxu0 %v2817
        %v2819 = vand.u32 %v825, 4294901760
        %2820 = vmatpush.msra.mxu0 %v2819
        %v2821 = vand.u32 %v824, 4294901760
        %2822 = vmatpush.msra.mxu0 %v2821
        %v2823 = vand.u32 %v2593, 4294901760
        %v2824 = vsub.f32 %v2593, %v2823
        %v2825 = vand.u32 %v2824, 4294901760
        %2826 = vmatmul.f32.gmra.mxu0 %v2825
        %v2827 = vpop.f32.mrf.mxu0
        %v2828 = vadd.f32 %v2789, %v2827
        %2829 = vdwg.mxu0
        %v2830 = vand.u32 %v839, 4294901760
        %v2831 = vsub.f32 %v839, %v2830
        %v2832 = vand.u32 %v2831, 4294901760
        %2833 = vmatpush.msra.mxu0 %v2832
        %v2834 = vand.u32 %v838, 4294901760
        %v2835 = vsub.f32 %v838, %v2834
        %v2836 = vand.u32 %v2835, 4294901760
        %2837 = vmatpush.msra.mxu0 %v2836
        %v2838 = vand.u32 %v837, 4294901760
        %v2839 = vsub.f32 %v837, %v2838
        %v2840 = vand.u32 %v2839, 4294901760
        %2841 = vmatpush.msra.mxu0 %v2840
        %v2842 = vand.u32 %v836, 4294901760
        %v2843 = vsub.f32 %v836, %v2842
        %v2844 = vand.u32 %v2843, 4294901760
        %2845 = vmatpush.msra.mxu0 %v2844
        %v2846 = vand.u32 %v835, 4294901760
        %v2847 = vsub.f32 %v835, %v2846
        %v2848 = vand.u32 %v2847, 4294901760
        %2849 = vmatpush.msra.mxu0 %v2848
        %v2850 = vand.u32 %v834, 4294901760
        %v2851 = vsub.f32 %v834, %v2850
        %v2852 = vand.u32 %v2851, 4294901760
        %2853 = vmatpush.msra.mxu0 %v2852
        %v2854 = vand.u32 %v833, 4294901760
        %v2855 = vsub.f32 %v833, %v2854
        %v2856 = vand.u32 %v2855, 4294901760
        %2857 = vmatpush.msra.mxu0 %v2856
        %v2858 = vand.u32 %v832, 4294901760
        %v2859 = vsub.f32 %v832, %v2858
        %v2860 = vand.u32 %v2859, 4294901760
        %2861 = vmatpush.msra.mxu0 %v2860
        %v2862 = vand.u32 %v831, 4294901760
        %v2863 = vsub.f32 %v831, %v2862
        %v2864 = vand.u32 %v2863, 4294901760
        %2865 = vmatpush.msra.mxu0 %v2864
        %v2866 = vand.u32 %v830, 4294901760
        %v2867 = vsub.f32 %v830, %v2866
        %v2868 = vand.u32 %v2867, 4294901760
        %2869 = vmatpush.msra.mxu0 %v2868
        %v2870 = vand.u32 %v829, 4294901760
        %v2871 = vsub.f32 %v829, %v2870
        %v2872 = vand.u32 %v2871, 4294901760
        %2873 = vmatpush.msra.mxu0 %v2872
        %v2874 = vand.u32 %v828, 4294901760
        %v2875 = vsub.f32 %v828, %v2874
        %v2876 = vand.u32 %v2875, 4294901760
        %2877 = vmatpush.msra.mxu0 %v2876
        %v2878 = vand.u32 %v827, 4294901760
        %v2879 = vsub.f32 %v827, %v2878
        %v2880 = vand.u32 %v2879, 4294901760
        %2881 = vmatpush.msra.mxu0 %v2880
        %v2882 = vand.u32 %v826, 4294901760
        %v2883 = vsub.f32 %v826, %v2882
        %v2884 = vand.u32 %v2883, 4294901760
        %2885 = vmatpush.msra.mxu0 %v2884
        %v2886 = vand.u32 %v825, 4294901760
        %v2887 = vsub.f32 %v825, %v2886
        %v2888 = vand.u32 %v2887, 4294901760
        %2889 = vmatpush.msra.mxu0 %v2888
        %v2890 = vand.u32 %v824, 4294901760
        %v2891 = vsub.f32 %v824, %v2890
        %v2892 = vand.u32 %v2891, 4294901760
        %2893 = vmatpush.msra.mxu0 %v2892
        %v2894 = vand.u32 %v2593, 4294901760
        %2895 = vmatmul.f32.gmra.mxu0 %v2894
        %v2896 = vpop.f32.mrf.mxu0
        %v2897 = vadd.f32 %v2828, %v2896
        %2898 = vdwg.mxu0
        %v2899 = vand.u32 %v839, 4294901760
        %2900 = vmatpush.msra.mxu0 %v2899
        %v2901 = vand.u32 %v838, 4294901760
        %2902 = vmatpush.msra.mxu0 %v2901
        %v2903 = vand.u32 %v837, 4294901760
        %2904 = vmatpush.msra.mxu0 %v2903
        %v2905 = vand.u32 %v836, 4294901760
        %2906 = vmatpush.msra.mxu0 %v2905
        %v2907 = vand.u32 %v835, 4294901760
        %2908 = vmatpush.msra.mxu0 %v2907
        %v2909 = vand.u32 %v834, 4294901760
        %2910 = vmatpush.msra.mxu0 %v2909
        %v2911 = vand.u32 %v833, 4294901760
        %2912 = vmatpush.msra.mxu0 %v2911
        %v2913 = vand.u32 %v832, 4294901760
        %2914 = vmatpush.msra.mxu0 %v2913
        %v2915 = vand.u32 %v831, 4294901760
        %2916 = vmatpush.msra.mxu0 %v2915
        %v2917 = vand.u32 %v830, 4294901760
        %2918 = vmatpush.msra.mxu0 %v2917
        %v2919 = vand.u32 %v829, 4294901760
        %2920 = vmatpush.msra.mxu0 %v2919
        %v2921 = vand.u32 %v828, 4294901760
        %2922 = vmatpush.msra.mxu0 %v2921
        %v2923 = vand.u32 %v827, 4294901760
        %2924 = vmatpush.msra.mxu0 %v2923
        %v2925 = vand.u32 %v826, 4294901760
        %2926 = vmatpush.msra.mxu0 %v2925
        %v2927 = vand.u32 %v825, 4294901760
        %2928 = vmatpush.msra.mxu0 %v2927
        %v2929 = vand.u32 %v824, 4294901760
        %2930 = vmatpush.msra.mxu0 %v2929
        %v2931 = vand.u32 %v2593, 4294901760
        %2932 = vmatmul.f32.gmra.mxu0 %v2931
        %v2933 = vpop.f32.mrf.mxu0
        %v2934 = vadd.f32 %v2897, %v2933
        %2935 = vdwg.mxu0
        %v2936 = vrot.slane %v872, 6
        %v2938 = vand.u32 %v855, 4294901760
        %2939 = vmatpush.msra.mxu0 %v2938
        %v2940 = vand.u32 %v854, 4294901760
        %2941 = vmatpush.msra.mxu0 %v2940
        %v2942 = vand.u32 %v853, 4294901760
        %2943 = vmatpush.msra.mxu0 %v2942
        %v2944 = vand.u32 %v852, 4294901760
        %2945 = vmatpush.msra.mxu0 %v2944
        %v2946 = vand.u32 %v851, 4294901760
        %2947 = vmatpush.msra.mxu0 %v2946
        %v2948 = vand.u32 %v850, 4294901760
        %2949 = vmatpush.msra.mxu0 %v2948
        %v2950 = vand.u32 %v849, 4294901760
        %2951 = vmatpush.msra.mxu0 %v2950
        %v2952 = vand.u32 %v848, 4294901760
        %2953 = vmatpush.msra.mxu0 %v2952
        %v2954 = vand.u32 %v847, 4294901760
        %2955 = vmatpush.msra.mxu0 %v2954
        %v2956 = vand.u32 %v846, 4294901760
        %2957 = vmatpush.msra.mxu0 %v2956
        %v2958 = vand.u32 %v845, 4294901760
        %2959 = vmatpush.msra.mxu0 %v2958
        %v2960 = vand.u32 %v844, 4294901760
        %2961 = vmatpush.msra.mxu0 %v2960
        %v2962 = vand.u32 %v843, 4294901760
        %2963 = vmatpush.msra.mxu0 %v2962
        %v2964 = vand.u32 %v842, 4294901760
        %2965 = vmatpush.msra.mxu0 %v2964
        %v2966 = vand.u32 %v841, 4294901760
        %2967 = vmatpush.msra.mxu0 %v2966
        %v2968 = vand.u32 %v840, 4294901760
        %2969 = vmatpush.msra.mxu0 %v2968
        %v2970 = vand.u32 %v2936, 4294901760
        %v2971 = vsub.f32 %v2936, %v2970
        %v2972 = vand.u32 %v2971, 4294901760
        %v2973 = vsub.f32 %v2971, %v2972
        %v2974 = vand.u32 %v2973, 4294901760
        %2975 = vmatmul.f32.gmra.mxu0 %v2974
        %v2976 = vpop.f32.mrf.mxu0
        %v2977 = vadd.f32 0.0, %v2976
        %2978 = vdwg.mxu0
        %v2979 = vand.u32 %v855, 4294901760
        %v2980 = vsub.f32 %v855, %v2979
        %v2981 = vand.u32 %v2980, 4294901760
        %v2982 = vsub.f32 %v2980, %v2981
        %v2983 = vand.u32 %v2982, 4294901760
        %2984 = vmatpush.msra.mxu0 %v2983
        %v2985 = vand.u32 %v854, 4294901760
        %v2986 = vsub.f32 %v854, %v2985
        %v2987 = vand.u32 %v2986, 4294901760
        %v2988 = vsub.f32 %v2986, %v2987
        %v2989 = vand.u32 %v2988, 4294901760
        %2990 = vmatpush.msra.mxu0 %v2989
        %v2991 = vand.u32 %v853, 4294901760
        %v2992 = vsub.f32 %v853, %v2991
        %v2993 = vand.u32 %v2992, 4294901760
        %v2994 = vsub.f32 %v2992, %v2993
        %v2995 = vand.u32 %v2994, 4294901760
        %2996 = vmatpush.msra.mxu0 %v2995
        %v2997 = vand.u32 %v852, 4294901760
        %v2998 = vsub.f32 %v852, %v2997
        %v2999 = vand.u32 %v2998, 4294901760
        %v3000 = vsub.f32 %v2998, %v2999
        %v3001 = vand.u32 %v3000, 4294901760
        %3002 = vmatpush.msra.mxu0 %v3001
        %v3003 = vand.u32 %v851, 4294901760
        %v3004 = vsub.f32 %v851, %v3003
        %v3005 = vand.u32 %v3004, 4294901760
        %v3006 = vsub.f32 %v3004, %v3005
        %v3007 = vand.u32 %v3006, 4294901760
        %3008 = vmatpush.msra.mxu0 %v3007
        %v3009 = vand.u32 %v850, 4294901760
        %v3010 = vsub.f32 %v850, %v3009
        %v3011 = vand.u32 %v3010, 4294901760
        %v3012 = vsub.f32 %v3010, %v3011
        %v3013 = vand.u32 %v3012, 4294901760
        %3014 = vmatpush.msra.mxu0 %v3013
        %v3015 = vand.u32 %v849, 4294901760
        %v3016 = vsub.f32 %v849, %v3015
        %v3017 = vand.u32 %v3016, 4294901760
        %v3018 = vsub.f32 %v3016, %v3017
        %v3019 = vand.u32 %v3018, 4294901760
        %3020 = vmatpush.msra.mxu0 %v3019
        %v3021 = vand.u32 %v848, 4294901760
        %v3022 = vsub.f32 %v848, %v3021
        %v3023 = vand.u32 %v3022, 4294901760
        %v3024 = vsub.f32 %v3022, %v3023
        %v3025 = vand.u32 %v3024, 4294901760
        %3026 = vmatpush.msra.mxu0 %v3025
        %v3027 = vand.u32 %v847, 4294901760
        %v3028 = vsub.f32 %v847, %v3027
        %v3029 = vand.u32 %v3028, 4294901760
        %v3030 = vsub.f32 %v3028, %v3029
        %v3031 = vand.u32 %v3030, 4294901760
        %3032 = vmatpush.msra.mxu0 %v3031
        %v3033 = vand.u32 %v846, 4294901760
        %v3034 = vsub.f32 %v846, %v3033
        %v3035 = vand.u32 %v3034, 4294901760
        %v3036 = vsub.f32 %v3034, %v3035
        %v3037 = vand.u32 %v3036, 4294901760
        %3038 = vmatpush.msra.mxu0 %v3037
        %v3039 = vand.u32 %v845, 4294901760
        %v3040 = vsub.f32 %v845, %v3039
        %v3041 = vand.u32 %v3040, 4294901760
        %v3042 = vsub.f32 %v3040, %v3041
        %v3043 = vand.u32 %v3042, 4294901760
        %3044 = vmatpush.msra.mxu0 %v3043
        %v3045 = vand.u32 %v844, 4294901760
        %v3046 = vsub.f32 %v844, %v3045
        %v3047 = vand.u32 %v3046, 4294901760
        %v3048 = vsub.f32 %v3046, %v3047
        %v3049 = vand.u32 %v3048, 4294901760
        %3050 = vmatpush.msra.mxu0 %v3049
        %v3051 = vand.u32 %v843, 4294901760
        %v3052 = vsub.f32 %v843, %v3051
        %v3053 = vand.u32 %v3052, 4294901760
        %v3054 = vsub.f32 %v3052, %v3053
        %v3055 = vand.u32 %v3054, 4294901760
        %3056 = vmatpush.msra.mxu0 %v3055
        %v3057 = vand.u32 %v842, 4294901760
        %v3058 = vsub.f32 %v842, %v3057
        %v3059 = vand.u32 %v3058, 4294901760
        %v3060 = vsub.f32 %v3058, %v3059
        %v3061 = vand.u32 %v3060, 4294901760
        %3062 = vmatpush.msra.mxu0 %v3061
        %v3063 = vand.u32 %v841, 4294901760
        %v3064 = vsub.f32 %v841, %v3063
        %v3065 = vand.u32 %v3064, 4294901760
        %v3066 = vsub.f32 %v3064, %v3065
        %v3067 = vand.u32 %v3066, 4294901760
        %3068 = vmatpush.msra.mxu0 %v3067
        %v3069 = vand.u32 %v840, 4294901760
        %v3070 = vsub.f32 %v840, %v3069
        %v3071 = vand.u32 %v3070, 4294901760
        %v3072 = vsub.f32 %v3070, %v3071
        %v3073 = vand.u32 %v3072, 4294901760
        %3074 = vmatpush.msra.mxu0 %v3073
        %v3075 = vand.u32 %v2936, 4294901760
        %3076 = vmatmul.f32.gmra.mxu0 %v3075
        %v3077 = vpop.f32.mrf.mxu0
        %v3078 = vadd.f32 %v2977, %v3077
        %3079 = vdwg.mxu0
        %v3080 = vand.u32 %v855, 4294901760
        %v3081 = vsub.f32 %v855, %v3080
        %3082 = vmatpush.msra.mxu0 %v3081
        %v3083 = vand.u32 %v854, 4294901760
        %v3084 = vsub.f32 %v854, %v3083
        %3085 = vmatpush.msra.mxu0 %v3084
        %v3086 = vand.u32 %v853, 4294901760
        %v3087 = vsub.f32 %v853, %v3086
        %3088 = vmatpush.msra.mxu0 %v3087
        %v3089 = vand.u32 %v852, 4294901760
        %v3090 = vsub.f32 %v852, %v3089
        %3091 = vmatpush.msra.mxu0 %v3090
        %v3092 = vand.u32 %v851, 4294901760
        %v3093 = vsub.f32 %v851, %v3092
        %3094 = vmatpush.msra.mxu0 %v3093
        %v3095 = vand.u32 %v850, 4294901760
        %v3096 = vsub.f32 %v850, %v3095
        %3097 = vmatpush.msra.mxu0 %v3096
        %v3098 = vand.u32 %v849, 4294901760
        %v3099 = vsub.f32 %v849, %v3098
        %3100 = vmatpush.msra.mxu0 %v3099
        %v3101 = vand.u32 %v848, 4294901760
        %v3102 = vsub.f32 %v848, %v3101
        %3103 = vmatpush.msra.mxu0 %v3102
        %v3104 = vand.u32 %v847, 4294901760
        %v3105 = vsub.f32 %v847, %v3104
        %3106 = vmatpush.msra.mxu0 %v3105
        %v3107 = vand.u32 %v846, 4294901760
        %v3108 = vsub.f32 %v846, %v3107
        %3109 = vmatpush.msra.mxu0 %v3108
        %v3110 = vand.u32 %v845, 4294901760
        %v3111 = vsub.f32 %v845, %v3110
        %3112 = vmatpush.msra.mxu0 %v3111
        %v3113 = vand.u32 %v844, 4294901760
        %v3114 = vsub.f32 %v844, %v3113
        %3115 = vmatpush.msra.mxu0 %v3114
        %v3116 = vand.u32 %v843, 4294901760
        %v3117 = vsub.f32 %v843, %v3116
        %3118 = vmatpush.msra.mxu0 %v3117
        %v3119 = vand.u32 %v842, 4294901760
        %v3120 = vsub.f32 %v842, %v3119
        %3121 = vmatpush.msra.mxu0 %v3120
        %v3122 = vand.u32 %v841, 4294901760
        %v3123 = vsub.f32 %v841, %v3122
        %3124 = vmatpush.msra.mxu0 %v3123
        %v3125 = vand.u32 %v840, 4294901760
        %v3126 = vsub.f32 %v840, %v3125
        %3127 = vmatpush.msra.mxu0 %v3126
        %v3128 = vand.u32 %v2936, 4294901760
        %v3129 = vsub.f32 %v2936, %v3128
        %3130 = vmatmul.f32.gmra.mxu0 %v3129
        %v3131 = vpop.f32.mrf.mxu0
        %v3132 = vadd.f32 %v3078, %v3131
        %3133 = vdwg.mxu0
        %v3134 = vand.u32 %v855, 4294901760
        %3135 = vmatpush.msra.mxu0 %v3134
        %v3136 = vand.u32 %v854, 4294901760
        %3137 = vmatpush.msra.mxu0 %v3136
        %v3138 = vand.u32 %v853, 4294901760
        %3139 = vmatpush.msra.mxu0 %v3138
        %v3140 = vand.u32 %v852, 4294901760
        %3141 = vmatpush.msra.mxu0 %v3140
        %v3142 = vand.u32 %v851, 4294901760
        %3143 = vmatpush.msra.mxu0 %v3142
        %v3144 = vand.u32 %v850, 4294901760
        %3145 = vmatpush.msra.mxu0 %v3144
        %v3146 = vand.u32 %v849, 4294901760
        %3147 = vmatpush.msra.mxu0 %v3146
        %v3148 = vand.u32 %v848, 4294901760
        %3149 = vmatpush.msra.mxu0 %v3148
        %v3150 = vand.u32 %v847, 4294901760
        %3151 = vmatpush.msra.mxu0 %v3150
        %v3152 = vand.u32 %v846, 4294901760
        %3153 = vmatpush.msra.mxu0 %v3152
        %v3154 = vand.u32 %v845, 4294901760
        %3155 = vmatpush.msra.mxu0 %v3154
        %v3156 = vand.u32 %v844, 4294901760
        %3157 = vmatpush.msra.mxu0 %v3156
        %v3158 = vand.u32 %v843, 4294901760
        %3159 = vmatpush.msra.mxu0 %v3158
        %v3160 = vand.u32 %v842, 4294901760
        %3161 = vmatpush.msra.mxu0 %v3160
        %v3162 = vand.u32 %v841, 4294901760
        %3163 = vmatpush.msra.mxu0 %v3162
        %v3164 = vand.u32 %v840, 4294901760
        %3165 = vmatpush.msra.mxu0 %v3164
        %v3166 = vand.u32 %v2936, 4294901760
        %v3167 = vsub.f32 %v2936, %v3166
        %v3168 = vand.u32 %v3167, 4294901760
        %3169 = vmatmul.f32.gmra.mxu0 %v3168
        %v3170 = vpop.f32.mrf.mxu0
        %v3171 = vadd.f32 %v3132, %v3170
        %3172 = vdwg.mxu0
        %v3173 = vand.u32 %v855, 4294901760
        %v3174 = vsub.f32 %v855, %v3173
        %v3175 = vand.u32 %v3174, 4294901760
        %3176 = vmatpush.msra.mxu0 %v3175
        %v3177 = vand.u32 %v854, 4294901760
        %v3178 = vsub.f32 %v854, %v3177
        %v3179 = vand.u32 %v3178, 4294901760
        %3180 = vmatpush.msra.mxu0 %v3179
        %v3181 = vand.u32 %v853, 4294901760
        %v3182 = vsub.f32 %v853, %v3181
        %v3183 = vand.u32 %v3182, 4294901760
        %3184 = vmatpush.msra.mxu0 %v3183
        %v3185 = vand.u32 %v852, 4294901760
        %v3186 = vsub.f32 %v852, %v3185
        %v3187 = vand.u32 %v3186, 4294901760
        %3188 = vmatpush.msra.mxu0 %v3187
        %v3189 = vand.u32 %v851, 4294901760
        %v3190 = vsub.f32 %v851, %v3189
        %v3191 = vand.u32 %v3190, 4294901760
        %3192 = vmatpush.msra.mxu0 %v3191
        %v3193 = vand.u32 %v850, 4294901760
        %v3194 = vsub.f32 %v850, %v3193
        %v3195 = vand.u32 %v3194, 4294901760
        %3196 = vmatpush.msra.mxu0 %v3195
        %v3197 = vand.u32 %v849, 4294901760
        %v3198 = vsub.f32 %v849, %v3197
        %v3199 = vand.u32 %v3198, 4294901760
        %3200 = vmatpush.msra.mxu0 %v3199
        %v3201 = vand.u32 %v848, 4294901760
        %v3202 = vsub.f32 %v848, %v3201
        %v3203 = vand.u32 %v3202, 4294901760
        %3204 = vmatpush.msra.mxu0 %v3203
        %v3205 = vand.u32 %v847, 4294901760
        %v3206 = vsub.f32 %v847, %v3205
        %v3207 = vand.u32 %v3206, 4294901760
        %3208 = vmatpush.msra.mxu0 %v3207
        %v3209 = vand.u32 %v846, 4294901760
        %v3210 = vsub.f32 %v846, %v3209
        %v3211 = vand.u32 %v3210, 4294901760
        %3212 = vmatpush.msra.mxu0 %v3211
        %v3213 = vand.u32 %v845, 4294901760
        %v3214 = vsub.f32 %v845, %v3213
        %v3215 = vand.u32 %v3214, 4294901760
        %3216 = vmatpush.msra.mxu0 %v3215
        %v3217 = vand.u32 %v844, 4294901760
        %v3218 = vsub.f32 %v844, %v3217
        %v3219 = vand.u32 %v3218, 4294901760
        %3220 = vmatpush.msra.mxu0 %v3219
        %v3221 = vand.u32 %v843, 4294901760
        %v3222 = vsub.f32 %v843, %v3221
        %v3223 = vand.u32 %v3222, 4294901760
        %3224 = vmatpush.msra.mxu0 %v3223
        %v3225 = vand.u32 %v842, 4294901760
        %v3226 = vsub.f32 %v842, %v3225
        %v3227 = vand.u32 %v3226, 4294901760
        %3228 = vmatpush.msra.mxu0 %v3227
        %v3229 = vand.u32 %v841, 4294901760
        %v3230 = vsub.f32 %v841, %v3229
        %v3231 = vand.u32 %v3230, 4294901760
        %3232 = vmatpush.msra.mxu0 %v3231
        %v3233 = vand.u32 %v840, 4294901760
        %v3234 = vsub.f32 %v840, %v3233
        %v3235 = vand.u32 %v3234, 4294901760
        %3236 = vmatpush.msra.mxu0 %v3235
        %v3237 = vand.u32 %v2936, 4294901760
        %3238 = vmatmul.f32.gmra.mxu0 %v3237
        %v3239 = vpop.f32.mrf.mxu0
        %v3240 = vadd.f32 %v3171, %v3239
        %3241 = vdwg.mxu0
        %v3242 = vand.u32 %v855, 4294901760
        %3243 = vmatpush.msra.mxu0 %v3242
        %v3244 = vand.u32 %v854, 4294901760
        %3245 = vmatpush.msra.mxu0 %v3244
        %v3246 = vand.u32 %v853, 4294901760
        %3247 = vmatpush.msra.mxu0 %v3246
        %v3248 = vand.u32 %v852, 4294901760
        %3249 = vmatpush.msra.mxu0 %v3248
        %v3250 = vand.u32 %v851, 4294901760
        %3251 = vmatpush.msra.mxu0 %v3250
        %v3252 = vand.u32 %v850, 4294901760
        %3253 = vmatpush.msra.mxu0 %v3252
        %v3254 = vand.u32 %v849, 4294901760
        %3255 = vmatpush.msra.mxu0 %v3254
        %v3256 = vand.u32 %v848, 4294901760
        %3257 = vmatpush.msra.mxu0 %v3256
        %v3258 = vand.u32 %v847, 4294901760
        %3259 = vmatpush.msra.mxu0 %v3258
        %v3260 = vand.u32 %v846, 4294901760
        %3261 = vmatpush.msra.mxu0 %v3260
        %v3262 = vand.u32 %v845, 4294901760
        %3263 = vmatpush.msra.mxu0 %v3262
        %v3264 = vand.u32 %v844, 4294901760
        %3265 = vmatpush.msra.mxu0 %v3264
        %v3266 = vand.u32 %v843, 4294901760
        %3267 = vmatpush.msra.mxu0 %v3266
        %v3268 = vand.u32 %v842, 4294901760
        %3269 = vmatpush.msra.mxu0 %v3268
        %v3270 = vand.u32 %v841, 4294901760
        %3271 = vmatpush.msra.mxu0 %v3270
        %v3272 = vand.u32 %v840, 4294901760
        %3273 = vmatpush.msra.mxu0 %v3272
        %v3274 = vand.u32 %v2936, 4294901760
        %3275 = vmatmul.f32.gmra.mxu0 %v3274
        %v3276 = vpop.f32.mrf.mxu0
        %v3277 = vadd.f32 %v3240, %v3276
        %3278 = vdwg.mxu0
        %v3279 = vrot.slane %v872, 7
        %v3281 = vand.u32 %v871, 4294901760
        %3282 = vmatpush.msra.mxu0 %v3281
        %v3283 = vand.u32 %v870, 4294901760
        %3284 = vmatpush.msra.mxu0 %v3283
        %v3285 = vand.u32 %v869, 4294901760
        %3286 = vmatpush.msra.mxu0 %v3285
        %v3287 = vand.u32 %v868, 4294901760
        %3288 = vmatpush.msra.mxu0 %v3287
        %v3289 = vand.u32 %v867, 4294901760
        %3290 = vmatpush.msra.mxu0 %v3289
        %v3291 = vand.u32 %v866, 4294901760
        %3292 = vmatpush.msra.mxu0 %v3291
        %v3293 = vand.u32 %v865, 4294901760
        %3294 = vmatpush.msra.mxu0 %v3293
        %v3295 = vand.u32 %v864, 4294901760
        %3296 = vmatpush.msra.mxu0 %v3295
        %v3297 = vand.u32 %v863, 4294901760
        %3298 = vmatpush.msra.mxu0 %v3297
        %v3299 = vand.u32 %v862, 4294901760
        %3300 = vmatpush.msra.mxu0 %v3299
        %v3301 = vand.u32 %v861, 4294901760
        %3302 = vmatpush.msra.mxu0 %v3301
        %v3303 = vand.u32 %v860, 4294901760
        %3304 = vmatpush.msra.mxu0 %v3303
        %v3305 = vand.u32 %v859, 4294901760
        %3306 = vmatpush.msra.mxu0 %v3305
        %v3307 = vand.u32 %v858, 4294901760
        %3308 = vmatpush.msra.mxu0 %v3307
        %v3309 = vand.u32 %v857, 4294901760
        %3310 = vmatpush.msra.mxu0 %v3309
        %v3311 = vand.u32 %v856, 4294901760
        %3312 = vmatpush.msra.mxu0 %v3311
        %v3313 = vand.u32 %v3279, 4294901760
        %v3314 = vsub.f32 %v3279, %v3313
        %v3315 = vand.u32 %v3314, 4294901760
        %v3316 = vsub.f32 %v3314, %v3315
        %v3317 = vand.u32 %v3316, 4294901760
        %3318 = vmatmul.f32.gmra.mxu0 %v3317
        %v3319 = vpop.f32.mrf.mxu0
        %v3320 = vadd.f32 0.0, %v3319
        %3321 = vdwg.mxu0
        %v3322 = vand.u32 %v871, 4294901760
        %v3323 = vsub.f32 %v871, %v3322
        %v3324 = vand.u32 %v3323, 4294901760
        %v3325 = vsub.f32 %v3323, %v3324
        %v3326 = vand.u32 %v3325, 4294901760
        %3327 = vmatpush.msra.mxu0 %v3326
        %v3328 = vand.u32 %v870, 4294901760
        %v3329 = vsub.f32 %v870, %v3328
        %v3330 = vand.u32 %v3329, 4294901760
        %v3331 = vsub.f32 %v3329, %v3330
        %v3332 = vand.u32 %v3331, 4294901760
        %3333 = vmatpush.msra.mxu0 %v3332
        %v3334 = vand.u32 %v869, 4294901760
        %v3335 = vsub.f32 %v869, %v3334
        %v3336 = vand.u32 %v3335, 4294901760
        %v3337 = vsub.f32 %v3335, %v3336
        %v3338 = vand.u32 %v3337, 4294901760
        %3339 = vmatpush.msra.mxu0 %v3338
        %v3340 = vand.u32 %v868, 4294901760
        %v3341 = vsub.f32 %v868, %v3340
        %v3342 = vand.u32 %v3341, 4294901760
        %v3343 = vsub.f32 %v3341, %v3342
        %v3344 = vand.u32 %v3343, 4294901760
        %3345 = vmatpush.msra.mxu0 %v3344
        %v3346 = vand.u32 %v867, 4294901760
        %v3347 = vsub.f32 %v867, %v3346
        %v3348 = vand.u32 %v3347, 4294901760
        %v3349 = vsub.f32 %v3347, %v3348
        %v3350 = vand.u32 %v3349, 4294901760
        %3351 = vmatpush.msra.mxu0 %v3350
        %v3352 = vand.u32 %v866, 4294901760
        %v3353 = vsub.f32 %v866, %v3352
        %v3354 = vand.u32 %v3353, 4294901760
        %v3355 = vsub.f32 %v3353, %v3354
        %v3356 = vand.u32 %v3355, 4294901760
        %3357 = vmatpush.msra.mxu0 %v3356
        %v3358 = vand.u32 %v865, 4294901760
        %v3359 = vsub.f32 %v865, %v3358
        %v3360 = vand.u32 %v3359, 4294901760
        %v3361 = vsub.f32 %v3359, %v3360
        %v3362 = vand.u32 %v3361, 4294901760
        %3363 = vmatpush.msra.mxu0 %v3362
        %v3364 = vand.u32 %v864, 4294901760
        %v3365 = vsub.f32 %v864, %v3364
        %v3366 = vand.u32 %v3365, 4294901760
        %v3367 = vsub.f32 %v3365, %v3366
        %v3368 = vand.u32 %v3367, 4294901760
        %3369 = vmatpush.msra.mxu0 %v3368
        %v3370 = vand.u32 %v863, 4294901760
        %v3371 = vsub.f32 %v863, %v3370
        %v3372 = vand.u32 %v3371, 4294901760
        %v3373 = vsub.f32 %v3371, %v3372
        %v3374 = vand.u32 %v3373, 4294901760
        %3375 = vmatpush.msra.mxu0 %v3374
        %v3376 = vand.u32 %v862, 4294901760
        %v3377 = vsub.f32 %v862, %v3376
        %v3378 = vand.u32 %v3377, 4294901760
        %v3379 = vsub.f32 %v3377, %v3378
        %v3380 = vand.u32 %v3379, 4294901760
        %3381 = vmatpush.msra.mxu0 %v3380
        %v3382 = vand.u32 %v861, 4294901760
        %v3383 = vsub.f32 %v861, %v3382
        %v3384 = vand.u32 %v3383, 4294901760
        %v3385 = vsub.f32 %v3383, %v3384
        %v3386 = vand.u32 %v3385, 4294901760
        %3387 = vmatpush.msra.mxu0 %v3386
        %v3388 = vand.u32 %v860, 4294901760
        %v3389 = vsub.f32 %v860, %v3388
        %v3390 = vand.u32 %v3389, 4294901760
        %v3391 = vsub.f32 %v3389, %v3390
        %v3392 = vand.u32 %v3391, 4294901760
        %3393 = vmatpush.msra.mxu0 %v3392
        %v3394 = vand.u32 %v859, 4294901760
        %v3395 = vsub.f32 %v859, %v3394
        %v3396 = vand.u32 %v3395, 4294901760
        %v3397 = vsub.f32 %v3395, %v3396
        %v3398 = vand.u32 %v3397, 4294901760
        %3399 = vmatpush.msra.mxu0 %v3398
        %v3400 = vand.u32 %v858, 4294901760
        %v3401 = vsub.f32 %v858, %v3400
        %v3402 = vand.u32 %v3401, 4294901760
        %v3403 = vsub.f32 %v3401, %v3402
        %v3404 = vand.u32 %v3403, 4294901760
        %3405 = vmatpush.msra.mxu0 %v3404
        %v3406 = vand.u32 %v857, 4294901760
        %v3407 = vsub.f32 %v857, %v3406
        %v3408 = vand.u32 %v3407, 4294901760
        %v3409 = vsub.f32 %v3407, %v3408
        %v3410 = vand.u32 %v3409, 4294901760
        %3411 = vmatpush.msra.mxu0 %v3410
        %v3412 = vand.u32 %v856, 4294901760
        %v3413 = vsub.f32 %v856, %v3412
        %v3414 = vand.u32 %v3413, 4294901760
        %v3415 = vsub.f32 %v3413, %v3414
        %v3416 = vand.u32 %v3415, 4294901760
        %3417 = vmatpush.msra.mxu0 %v3416
        %v3418 = vand.u32 %v3279, 4294901760
        %3419 = vmatmul.f32.gmra.mxu0 %v3418
        %v3420 = vpop.f32.mrf.mxu0
        %v3421 = vadd.f32 %v3320, %v3420
        %3422 = vdwg.mxu0
        %v3423 = vand.u32 %v871, 4294901760
        %v3424 = vsub.f32 %v871, %v3423
        %3425 = vmatpush.msra.mxu0 %v3424
        %v3426 = vand.u32 %v870, 4294901760
        %v3427 = vsub.f32 %v870, %v3426
        %3428 = vmatpush.msra.mxu0 %v3427
        %v3429 = vand.u32 %v869, 4294901760
        %v3430 = vsub.f32 %v869, %v3429
        %3431 = vmatpush.msra.mxu0 %v3430
        %v3432 = vand.u32 %v868, 4294901760
        %v3433 = vsub.f32 %v868, %v3432
        %3434 = vmatpush.msra.mxu0 %v3433
        %v3435 = vand.u32 %v867, 4294901760
        %v3436 = vsub.f32 %v867, %v3435
        %3437 = vmatpush.msra.mxu0 %v3436
        %v3438 = vand.u32 %v866, 4294901760
        %v3439 = vsub.f32 %v866, %v3438
        %3440 = vmatpush.msra.mxu0 %v3439
        %v3441 = vand.u32 %v865, 4294901760
        %v3442 = vsub.f32 %v865, %v3441
        %3443 = vmatpush.msra.mxu0 %v3442
        %v3444 = vand.u32 %v864, 4294901760
        %v3445 = vsub.f32 %v864, %v3444
        %3446 = vmatpush.msra.mxu0 %v3445
        %v3447 = vand.u32 %v863, 4294901760
        %v3448 = vsub.f32 %v863, %v3447
        %3449 = vmatpush.msra.mxu0 %v3448
        %v3450 = vand.u32 %v862, 4294901760
        %v3451 = vsub.f32 %v862, %v3450
        %3452 = vmatpush.msra.mxu0 %v3451
        %v3453 = vand.u32 %v861, 4294901760
        %v3454 = vsub.f32 %v861, %v3453
        %3455 = vmatpush.msra.mxu0 %v3454
        %v3456 = vand.u32 %v860, 4294901760
        %v3457 = vsub.f32 %v860, %v3456
        %3458 = vmatpush.msra.mxu0 %v3457
        %v3459 = vand.u32 %v859, 4294901760
        %v3460 = vsub.f32 %v859, %v3459
        %3461 = vmatpush.msra.mxu0 %v3460
        %v3462 = vand.u32 %v858, 4294901760
        %v3463 = vsub.f32 %v858, %v3462
        %3464 = vmatpush.msra.mxu0 %v3463
        %v3465 = vand.u32 %v857, 4294901760
        %v3466 = vsub.f32 %v857, %v3465
        %3467 = vmatpush.msra.mxu0 %v3466
        %v3468 = vand.u32 %v856, 4294901760
        %v3469 = vsub.f32 %v856, %v3468
        %3470 = vmatpush.msra.mxu0 %v3469
        %v3471 = vand.u32 %v3279, 4294901760
        %v3472 = vsub.f32 %v3279, %v3471
        %3473 = vmatmul.f32.gmra.mxu0 %v3472
        %v3474 = vpop.f32.mrf.mxu0
        %v3475 = vadd.f32 %v3421, %v3474
        %3476 = vdwg.mxu0
        %v3477 = vand.u32 %v871, 4294901760
        %3478 = vmatpush.msra.mxu0 %v3477
        %v3479 = vand.u32 %v870, 4294901760
        %3480 = vmatpush.msra.mxu0 %v3479
        %v3481 = vand.u32 %v869, 4294901760
        %3482 = vmatpush.msra.mxu0 %v3481
        %v3483 = vand.u32 %v868, 4294901760
        %3484 = vmatpush.msra.mxu0 %v3483
        %v3485 = vand.u32 %v867, 4294901760
        %3486 = vmatpush.msra.mxu0 %v3485
        %v3487 = vand.u32 %v866, 4294901760
        %3488 = vmatpush.msra.mxu0 %v3487
        %v3489 = vand.u32 %v865, 4294901760
        %3490 = vmatpush.msra.mxu0 %v3489
        %v3491 = vand.u32 %v864, 4294901760
        %3492 = vmatpush.msra.mxu0 %v3491
        %v3493 = vand.u32 %v863, 4294901760
        %3494 = vmatpush.msra.mxu0 %v3493
        %v3495 = vand.u32 %v862, 4294901760
        %3496 = vmatpush.msra.mxu0 %v3495
        %v3497 = vand.u32 %v861, 4294901760
        %3498 = vmatpush.msra.mxu0 %v3497
        %v3499 = vand.u32 %v860, 4294901760
        %3500 = vmatpush.msra.mxu0 %v3499
        %v3501 = vand.u32 %v859, 4294901760
        %3502 = vmatpush.msra.mxu0 %v3501
        %v3503 = vand.u32 %v858, 4294901760
        %3504 = vmatpush.msra.mxu0 %v3503
        %v3505 = vand.u32 %v857, 4294901760
        %3506 = vmatpush.msra.mxu0 %v3505
        %v3507 = vand.u32 %v856, 4294901760
        %3508 = vmatpush.msra.mxu0 %v3507
        %v3509 = vand.u32 %v3279, 4294901760
        %v3510 = vsub.f32 %v3279, %v3509
        %v3511 = vand.u32 %v3510, 4294901760
        %3512 = vmatmul.f32.gmra.mxu0 %v3511
        %v3513 = vpop.f32.mrf.mxu0
        %v3514 = vadd.f32 %v3475, %v3513
        %3515 = vdwg.mxu0
        %v3516 = vand.u32 %v871, 4294901760
        %v3517 = vsub.f32 %v871, %v3516
        %v3518 = vand.u32 %v3517, 4294901760
        %3519 = vmatpush.msra.mxu0 %v3518
        %v3520 = vand.u32 %v870, 4294901760
        %v3521 = vsub.f32 %v870, %v3520
        %v3522 = vand.u32 %v3521, 4294901760
        %3523 = vmatpush.msra.mxu0 %v3522
        %v3524 = vand.u32 %v869, 4294901760
        %v3525 = vsub.f32 %v869, %v3524
        %v3526 = vand.u32 %v3525, 4294901760
        %3527 = vmatpush.msra.mxu0 %v3526
        %v3528 = vand.u32 %v868, 4294901760
        %v3529 = vsub.f32 %v868, %v3528
        %v3530 = vand.u32 %v3529, 4294901760
        %3531 = vmatpush.msra.mxu0 %v3530
        %v3532 = vand.u32 %v867, 4294901760
        %v3533 = vsub.f32 %v867, %v3532
        %v3534 = vand.u32 %v3533, 4294901760
        %3535 = vmatpush.msra.mxu0 %v3534
        %v3536 = vand.u32 %v866, 4294901760
        %v3537 = vsub.f32 %v866, %v3536
        %v3538 = vand.u32 %v3537, 4294901760
        %3539 = vmatpush.msra.mxu0 %v3538
        %v3540 = vand.u32 %v865, 4294901760
        %v3541 = vsub.f32 %v865, %v3540
        %v3542 = vand.u32 %v3541, 4294901760
        %3543 = vmatpush.msra.mxu0 %v3542
        %v3544 = vand.u32 %v864, 4294901760
        %v3545 = vsub.f32 %v864, %v3544
        %v3546 = vand.u32 %v3545, 4294901760
        %3547 = vmatpush.msra.mxu0 %v3546
        %v3548 = vand.u32 %v863, 4294901760
        %v3549 = vsub.f32 %v863, %v3548
        %v3550 = vand.u32 %v3549, 4294901760
        %3551 = vmatpush.msra.mxu0 %v3550
        %v3552 = vand.u32 %v862, 4294901760
        %v3553 = vsub.f32 %v862, %v3552
        %v3554 = vand.u32 %v3553, 4294901760
        %3555 = vmatpush.msra.mxu0 %v3554
        %v3556 = vand.u32 %v861, 4294901760
        %v3557 = vsub.f32 %v861, %v3556
        %v3558 = vand.u32 %v3557, 4294901760
        %3559 = vmatpush.msra.mxu0 %v3558
        %v3560 = vand.u32 %v860, 4294901760
        %v3561 = vsub.f32 %v860, %v3560
        %v3562 = vand.u32 %v3561, 4294901760
        %3563 = vmatpush.msra.mxu0 %v3562
        %v3564 = vand.u32 %v859, 4294901760
        %v3565 = vsub.f32 %v859, %v3564
        %v3566 = vand.u32 %v3565, 4294901760
        %3567 = vmatpush.msra.mxu0 %v3566
        %v3568 = vand.u32 %v858, 4294901760
        %v3569 = vsub.f32 %v858, %v3568
        %v3570 = vand.u32 %v3569, 4294901760
        %3571 = vmatpush.msra.mxu0 %v3570
        %v3572 = vand.u32 %v857, 4294901760
        %v3573 = vsub.f32 %v857, %v3572
        %v3574 = vand.u32 %v3573, 4294901760
        %3575 = vmatpush.msra.mxu0 %v3574
        %v3576 = vand.u32 %v856, 4294901760
        %v3577 = vsub.f32 %v856, %v3576
        %v3578 = vand.u32 %v3577, 4294901760
        %3579 = vmatpush.msra.mxu0 %v3578
        %v3580 = vand.u32 %v3279, 4294901760
        %3581 = vmatmul.f32.gmra.mxu0 %v3580
        %v3582 = vpop.f32.mrf.mxu0
        %v3583 = vadd.f32 %v3514, %v3582
        %3584 = vdwg.mxu0
        %v3585 = vand.u32 %v871, 4294901760
        %3586 = vmatpush.msra.mxu0 %v3585
        %v3587 = vand.u32 %v870, 4294901760
        %3588 = vmatpush.msra.mxu0 %v3587
        %v3589 = vand.u32 %v869, 4294901760
        %3590 = vmatpush.msra.mxu0 %v3589
        %v3591 = vand.u32 %v868, 4294901760
        %3592 = vmatpush.msra.mxu0 %v3591
        %v3593 = vand.u32 %v867, 4294901760
        %3594 = vmatpush.msra.mxu0 %v3593
        %v3595 = vand.u32 %v866, 4294901760
        %3596 = vmatpush.msra.mxu0 %v3595
        %v3597 = vand.u32 %v865, 4294901760
        %3598 = vmatpush.msra.mxu0 %v3597
        %v3599 = vand.u32 %v864, 4294901760
        %3600 = vmatpush.msra.mxu0 %v3599
        %v3601 = vand.u32 %v863, 4294901760
        %3602 = vmatpush.msra.mxu0 %v3601
        %v3603 = vand.u32 %v862, 4294901760
        %3604 = vmatpush.msra.mxu0 %v3603
        %v3605 = vand.u32 %v861, 4294901760
        %3606 = vmatpush.msra.mxu0 %v3605
        %v3607 = vand.u32 %v860, 4294901760
        %3608 = vmatpush.msra.mxu0 %v3607
        %v3609 = vand.u32 %v859, 4294901760
        %3610 = vmatpush.msra.mxu0 %v3609
        %v3611 = vand.u32 %v858, 4294901760
        %3612 = vmatpush.msra.mxu0 %v3611
        %v3613 = vand.u32 %v857, 4294901760
        %3614 = vmatpush.msra.mxu0 %v3613
        %v3615 = vand.u32 %v856, 4294901760
        %3616 = vmatpush.msra.mxu0 %v3615
        %v3617 = vand.u32 %v3279, 4294901760
        %3618 = vmatmul.f32.gmra.mxu0 %v3617
        %v3619 = vpop.f32.mrf.mxu0
        %v3620 = vadd.f32 %v3583, %v3619
        %3621 = vdwg.mxu0
        %v3622 = vld [vmem:[#allocation2] sm:$0xff]
        %v3624 = vrot.slane %v1562, 7
        %v3627 = vrot.slane %v1905, 6
        %v3630 = vrot.slane %v2248, 5
        %v3633 = vrot.slane %v2591, 4
        %v3636 = vrot.slane %v2934, 3
        %v3639 = vrot.slane %v3277, 2
        %v3642 = vrot.slane %v3620, 1
        %vm3644 = vcmask 1040384
        %v3645 = vsel %vm3644, %v1218, %v3624
        %vm3646 = vcmask 1041408
        %v3647 = vsel %vm3646, %v3645, %v3627
        %vm3648 = vcmask 1042432
        %v3649 = vsel %vm3648, %v3647, %v3630
        %vm3650 = vcmask 1043456
        %v3651 = vsel %vm3650, %v3649, %v3633
        %vm3652 = vcmask 1044480
        %v3653 = vsel %vm3652, %v3651, %v3636
        %vm3654 = vcmask 1045504
        %v3655 = vsel %vm3654, %v3653, %v3639
        %vm3656 = vcmask 1046528
        %v3657 = vsel %vm3656, %v3655, %v3642
        %v3658 = vadd.f32 %v3622, %v3657
        %vm3659 = vcmask 523264
        %3660 = vst.msk [vmem:[#allocation2] sm:$0xff] %vm3659, %v3658
        %p3661 = scmp.eq.s32.totalorder %s21, 1
        // Predicated region
        $region71: #{tpu_custom_call.1} parent=61 // pred_check
          %p3662 = pneg %p3661
        $region72: #{tpu_custom_call.1} parent=61 // pred_check_branch
          %3664 = sbr.rel (%p3662) target = $region74
        $region73: #{tpu_custom_call.1} parent=61 // pred_region
          %v3665 = vld [vmem:[#allocation2] sm:$0xff]
          %v3666 = vld [vmem:[#allocation3] sm:$0xff]
          %v3667 = vmax.f32 %v3666, 1.0
          %3669 = vset.pattern.permute.xlu0 0
          %3670 = vperm.xlu0 %3669, %v3667
          %v3671 = vpop.permute.xlu0 %3670
          %v3673 = vrcp.pop %v3671
          %v3674 = vmul.f32 %v3671, %v3673
          %v3675 = vsub.f32 1.0, %v3674
          %v3676 = vmul.f32 %v3673, %v3675
          %v3677 = vadd.f32 %v3673, %v3676
          %vm3678 = vweird.f32 %v3671
          %vm3679 = vweird.f32 %v3673
          %vm3680 = vmor %vm3678, %vm3679
          %v3681 = vsel %vm3680, %v3673, %v3677
          %v3682 = vand.u32 2147483647, %v3671
          %vm3683 = vcmp.eq.f32.partialorder %v3682, 8.507059e+37
          %v3684 = vand.u32 %v3671, 2147483648
          %v3685 = vor.u32 1.1754944e-38, %v3684
          %v3686 = vsel %vm3683, %v3685, %v3681
          %v3687 = vmul.f32 %v3665, %v3686
          %3688 = vst.msk [vmem:[%s725] sm:$0xff] %vm3659, %v3687
        $region74: #{tpu_custom_call.1} parent=61 // pred_fallthru
          _
        %s3689 = sand.u32 %s92, 1
        %s3690 = scalar_lea.sflag [#allocation6], %s3689
        %s3691 = sand.u32 %s92, 1
        %s3692 = smul.addr %s3691, 8
        %s3693 = scalar_lea.vmem [#allocation5], %s3692
        // Predicated region
        $region75: #{tpu_custom_call.1} parent=61 // pred_check
          %p3694 = pneg %p102
        $region76: #{tpu_custom_call.1} parent=61 // pred_check_branch
          %3696 = sbr.rel (%p3694) target = $region78
        $region77: #{tpu_custom_call.1} parent=61 // pred_region
          %3698 = vsyncadd %s3690, 0
          %s3699 = smul.addr %s20, 8
          %s3700 = scalar_lea.hbm %s2, %s3699
          %s3702 = sshll.u32 %s3693, 4
          %s3703 = int_to_ptr.vmem [resolvable:$true] %s3702
          %s3704 = sshll.u32 %s3700, 4
          %s3705 = int_to_ptr.hbm [resolvable:$true] %s3704
          %3707 = dma.vmem_to_hbm [thread:$0]  %s3703, 128, %s3705, %s3690
        $region78: #{tpu_custom_call.1} parent=61 // pred_fallthru
          _
      $region62: #{tpu_custom_call.1} parent=5 // pred_fallthru
        _
      %p3708 = scmp.le.s32.totalorder 2, %s11
      // Predicated region
      $region79: #{tpu_custom_call.1} parent=5 // pred_check
        %p3709 = pneg %p3708
      $region80: #{tpu_custom_call.1} parent=5 // pred_check_branch
        %3711 = sbr.rel (%p3709) target = $region82
      $region81: #{tpu_custom_call.1} parent=5 // pred_region
        %s3712 = ssub.s32 %s11, 2
        // Predicated region
        $region83: #{tpu_custom_call.1} parent=81 // pred_check
          %p3713 = pneg %p108
        $region84: #{tpu_custom_call.1} parent=81 // pred_check_branch
          %3715 = sbr.rel (%p3713) target = $region86
        $region85: #{tpu_custom_call.1} parent=81 // pred_region
          %s3716 = sand.u32 %s93, 1
          %s3717 = scalar_lea.sflag [#allocation6], %s3716
          %s3718 = sand.u32 %s93, 1
          %s3719 = smul.addr %s3718, 8
          %s3720 = scalar_lea.vmem [#allocation5], %s3719
          %3722 = dma.done %s3717, 128
        $region86: #{tpu_custom_call.1} parent=81 // pred_fallthru
          _
      $region82: #{tpu_custom_call.1} parent=5 // pred_fallthru
        _
    $region6: #{tpu_custom_call.1} parent=1 // loop_footer
      %s15 = sadd.s32 1, %s11
    $region7: #{tpu_custom_call.1} parent=1 // loop_footer_branch
      %10 = sbr.rel target = $region3
    $region8: #{tpu_custom_call.1} parent=1 // loop_exit
      _
    %3723 = vsyncpa [#allocation6], 1
    %s3724 = scalar_lea.sflag [#allocation6], 1
    %3725 = vsyncpa %s3724, 1

</llo_original>
